<compile_context>
chip_gen: v7x
topology: tpu7x:2x2x1
jax: 0.10.0
libtpu: 0.0.40
codegen_flags: <defaults>
</compile_context>

<pallas_src>
import math
import functools

import numpy as np
import jax
import jax.numpy as jnp
from jax.experimental import pallas as pl
from jax.experimental.pallas import tpu as pltpu

NEG_INF = jnp.float32(-1e30)   # finite "-inf" for additive masking
_LANE = 128


def _round_up(x, m):
    return (x + m - 1) // m * m


# --------------------------------------------------------------------------------
# One-time probe: is pltpu.roll with a per-sublane stride supported here, and does it
# follow jnp.roll direction (result[j] = x[(j - shift_eff) mod n])?
# --------------------------------------------------------------------------------
@functools.lru_cache(maxsize=None)
def _strided_roll_ok() -> bool:
    H, L, W = 4, 8, _LANE

    def probe_kernel(x_ref, o_ref):
        o_ref[...] = pltpu.roll(x_ref[...], 0, 2, stride=1, stride_axis=1)

    try:
        lane = jnp.arange(W, dtype=jnp.float32)
        x = jnp.broadcast_to(lane[None, None, :], (H, L, W))
        out = pl.pallas_call(
            probe_kernel,
            out_shape=jax.ShapeDtypeStruct((H, L, W), jnp.float32))(x)
        out = np.asarray(jax.block_until_ready(out))
        want = np.stack(
            [np.roll(np.arange(W, dtype=np.float32), i) for i in range(L)])
        return all(np.array_equal(out[h], want) for h in range(H))
    except Exception:
        return False


# --------------------------------------------------------------------------------
# Kernel: one batch element per grid step.
# --------------------------------------------------------------------------------
def _rel_mha_kernel(*refs, n_head, d_k, has_kp, has_am, with_weights, use_roll):
    it = iter(refs)
    xq_ref, xk_ref, xv_ref, xp_ref = next(it), next(it), next(it), next(it)
    kpb_ref = next(it) if has_kp else None         # (1, 1, S) additive f32 bias
    amb_ref = next(it) if has_am else None         # (L, S)    additive f32 bias
    wq_ref, wk_ref, wv_ref, wp_ref, wo_ref = (next(it) for _ in range(5))
    bq_ref, bk_ref, bv_ref, bo_ref = (next(it) for _ in range(4))
    pbu_ref, pbv_ref = next(it), next(it)
    out_ref = next(it)
    attw_ref = next(it) if with_weights else None

    L = xq_ref.shape[1]
    S = xk_ref.shape[1]
    H = n_head
    cdt = xq_ref.dtype                      # compute (MXU) dtype, bf16 by default
    f32 = jnp.float32

    x_q = xq_ref[0]            # (L, E)
    x_k = xk_ref[0]            # (S, E)
    x_v = xv_ref[0]            # (S, E)
    x_p = xp_ref[0]            # (W, E), W = round_up(2L-1, 128), zero padded rows

    def proj_heads(x, w_ref):
        # Per-head (T, E) @ (E, d) matmuls (f32 accumulation), stacked on a fresh
        # leading axis -> (H, T, d) with no lane slicing / relayout.
        return jnp.stack(
            [jnp.dot(x, w_ref[h], preferred_element_type=f32) for h in range(H)],
            axis=0)

    q = proj_heads(x_q, wq_ref) + bq_ref[...]      # (H, L, d) f32
    k = proj_heads(x_k, wk_ref) + bk_ref[...]      # (H, S, d)
    v = proj_heads(x_v, wv_ref) + bv_ref[...]      # (H, S, d)
    p = proj_heads(x_p, wp_ref)                    # (H, W, d), no bias

    # Fold 1/sqrt(d_k) into the biased queries (scales both ac and bd terms).
    scale = f32(1.0 / math.sqrt(d_k))
    q_u = ((q + pbu_ref[...]) * scale).astype(cdt)
    q_v = ((q + pbv_ref[...]) * scale).astype(cdt)
    kh = k.astype(cdt)
    vh = v.astype(cdt)
    ph = p.astype(cdt)

    # Head-batched score matmuls (heads = leading batch dim), f32 accumulation.
    ac = jnp.einsum('hld,hsd->hls', q_u, kh, preferred_element_type=f32)
    bd_full = jnp.einsum('hld,hwd->hlw', q_v, ph, preferred_element_type=f32)

    # rel_shift: bd[h, i, j] = bd_full[h, i, (L-1) - i + j].
    if use_roll:
        # Row i rolls right by i (single strided XLU roll), then take cols [L-1, L-1+S).
        rolled = pltpu.roll(bd_full, 0, 2, stride=1, stride_axis=1)
        bd = rolled[:, :, L - 1:L - 1 + S]
    else:
        # Fallback: static per-row slices + one concatenate.
        bd = jnp.concatenate(
            [bd_full[:, i:i + 1, L - 1 - i:L - 1 - i + S] for i in range(L)], axis=1)

    scores = ac + bd                               # (H, L, S) f32
    if has_am:
        scores = scores + amb_ref[...]
    if has_kp:
        scores = scores + kpb_ref[...]

    # Numerically stable softmax over keys (f32); reciprocal on the EUP.
    m = jnp.max(scores, axis=-1, keepdims=True)
    e = jnp.exp(scores - m)
    s = jnp.sum(e, axis=-1, keepdims=True)
    attn = e * pl.reciprocal(s, approx=True)

    # Context per head, then head-batched output projection + sum over heads.
    ctx = jnp.einsum('hls,hsd->hld', attn.astype(cdt), vh,
                     preferred_element_type=f32)
    out_h = jnp.einsum('hld,hde->hle', ctx.astype(cdt), wo_ref[...],
                       preferred_element_type=f32)         # (H, L, E)
    out_ref[0] = jnp.sum(out_h, axis=0) + bo_ref[...]

    if with_weights:
        attw_ref[0] = jnp.mean(attn, axis=0)       # head-averaged weights


# --------------------------------------------------------------------------------
# One-time parameter preparation (per-head weight slabs, bf16 cast).
# --------------------------------------------------------------------------------
def prepare_params(params, *, n_head, compute_dtype=jnp.bfloat16):
    in_w, in_b, out_w, out_b, pos_w, pbu, pbv = params
    E3, E = in_w.shape
    assert E3 == 3 * E and E % n_head == 0
    H, d = n_head, E // n_head

    def per_head_in(w):        # torch Linear weight (E_out, E_in) -> (H, E_in, d)
        return jnp.transpose(w.reshape(H, d, E), (0, 2, 1)).astype(compute_dtype)

    return dict(
        wq=per_head_in(in_w[0:E]),
        wk=per_head_in(in_w[E:2 * E]),
        wv=per_head_in(in_w[2 * E:3 * E]),
        wp=per_head_in(pos_w),
        wo=jnp.transpose(out_w.reshape(E, H, d), (1, 2, 0)).astype(compute_dtype),
        bq=in_b[0:E].reshape(H, 1, d).astype(jnp.float32),
        bk=in_b[E:2 * E].reshape(H, 1, d).astype(jnp.float32),
        bv=in_b[2 * E:3 * E].reshape(H, 1, d).astype(jnp.float32),
        bo=out_b.reshape(1, E).astype(jnp.float32),
        pbu=pbu.reshape(H, 1, d).astype(jnp.float32),
        pbv=pbv.reshape(H, 1, d).astype(jnp.float32),
        n_head=H, d_k=d, embed_dim=E, compute_dtype=compute_dtype,
    )


# --------------------------------------------------------------------------------
# Forward wrapper (eval-mode semantics of the module).
# --------------------------------------------------------------------------------
def rel_position_multi_head_attention(query, key, value, pos_emb, prep, *,
                                      key_padding_mask=None, attn_mask=None,
                                      need_weights=True):
    H, d_k, E = prep['n_head'], prep['d_k'], prep['embed_dim']
    cdt = prep['compute_dtype']

    L, B, E_ = query.shape
    S = key.shape[0]
    assert E_ == E and key.shape == (S, B, E) and value.shape == (S, B, E)
    assert S == L, "rel-position attention requires src_len == tgt_len"
    P = 2 * L - 1
    pos_b = pos_emb.shape[0]
    assert pos_emb.shape == (pos_b, P, E) and pos_b in (1, B)
    W = max(_round_up(P, _LANE), _LANE)

    # Batch-major activations (E on the lane axis), compute dtype; pad pos rows to W.
    q_bm = jnp.transpose(query, (1, 0, 2)).astype(cdt)
    k_bm = jnp.transpose(key, (1, 0, 2)).astype(cdt)
    v_bm = jnp.transpose(value, (1, 0, 2)).astype(cdt)
    pos = jnp.pad(pos_emb.astype(cdt), ((0, 0), (0, W - P), (0, 0)))

    has_kp = key_padding_mask is not None
    has_am = attn_mask is not None

    inputs = [q_bm, k_bm, v_bm, pos]
    in_specs = [
        pl.BlockSpec((1, L, E), lambda b: (b, 0, 0)),
        pl.BlockSpec((1, S, E), lambda b: (b, 0, 0)),
        pl.BlockSpec((1, S, E), lambda b: (b, 0, 0)),
        pl.BlockSpec((1, W, E),
                     (lambda b: (b, 0, 0)) if pos_b == B else (lambda b: (0, 0, 0))),
    ]

    if has_kp:
        kp_bias = jnp.where(key_padding_mask.astype(jnp.bool_), NEG_INF,
                            jnp.float32(0.0)).reshape(B, 1, S)
        inputs.append(kp_bias)
        in_specs.append(pl.BlockSpec((1, 1, S), lambda b: (b, 0, 0)))
    if has_am:
        if attn_mask.ndim != 2:
            raise NotImplementedError("3-D attn_mask not supported")  # TODO(synk)
        if attn_mask.dtype == jnp.bool_:
            am_bias = jnp.where(attn_mask, NEG_INF, jnp.float32(0.0))
        else:
            am_bias = attn_mask.astype(jnp.float32)
        assert am_bias.shape == (L, S)
        inputs.append(am_bias)
        in_specs.append(pl.BlockSpec((L, S), lambda b: (0, 0)))

    def full(shape):
        return pl.BlockSpec(shape, lambda b: tuple(0 for _ in shape))

    # TODO(synk): mark these grid-invariant specs pipeline_mode=pl.Buffered(1).
    weight_inputs = [prep['wq'], prep['wk'], prep['wv'], prep['wp'], prep['wo'],
                     prep['bq'], prep['bk'], prep['bv'], prep['bo'],
                     prep['pbu'], prep['pbv']]
    inputs += weight_inputs
    in_specs += [full(x.shape) for x in weight_inputs]

    if need_weights:
        out_shape = (jax.ShapeDtypeStruct((B, L, E), jnp.float32),
                     jax.ShapeDtypeStruct((B, L, S), jnp.float32))
        out_specs = (pl.BlockSpec((1, L, E), lambda b: (b, 0, 0)),
                     pl.BlockSpec((1, L, S), lambda b: (b, 0, 0)))
    else:
        out_shape = jax.ShapeDtypeStruct((B, L, E), jnp.float32)
        out_specs = pl.BlockSpec((1, L, E), lambda b: (b, 0, 0))

    kernel = functools.partial(
        _rel_mha_kernel, n_head=H, d_k=d_k, has_kp=has_kp, has_am=has_am,
        with_weights=need_weights, use_roll=_strided_roll_ok())

    res = pl.pallas_call(
        kernel,
        out_shape=out_shape,
        grid_spec=pltpu.PrefetchScalarGridSpec(
            num_scalar_prefetch=0,
            grid=(B,),
            in_specs=in_specs,
            out_specs=out_specs,
        ),
        compiler_params=pltpu.CompilerParams(
            dimension_semantics=("parallel",),
            vmem_limit_bytes=48 * 1024 * 1024,
        ),
    )(*inputs)

    if need_weights:
        out, attn_w = res
    else:
        out, attn_w = res, None

    attn_output = jnp.transpose(out, (1, 0, 2))            # back to (L, B, E)
    return attn_output, attn_w


# --------------------------------------------------------------------------------
# Pure-JAX f32 reference mirroring the PyTorch module (eval mode).
# --------------------------------------------------------------------------------
def _reference(query, key, value, pos_emb, params, *, n_head,
               key_padding_mask=None, attn_mask=None):
    in_w, in_b, out_w, out_b, pos_w, pbu, pbv = params
    L, B, E = query.shape
    S = key.shape[0]
    d = E // n_head
    P = pos_emb.shape[1]
    scaling = 1.0 / math.sqrt(d)

    q = query @ in_w[0:E].T + in_b[0:E]
    k = key @ in_w[E:2 * E].T + in_b[E:2 * E]
    v = value @ in_w[2 * E:].T + in_b[2 * E:]

    q4 = q.reshape(L, B, n_head, d).transpose(1, 0, 2, 3)        # (B, L, H, d)
    k4 = k.reshape(S, B, n_head, d).transpose(1, 2, 0, 3)        # (B, H, S, d)
    v4 = v.reshape(S, B, n_head, d).transpose(1, 2, 0, 3)        # (B, H, S, d)

    p = pos_emb @ pos_w.T
    p4 = p.reshape(-1, P, n_head, d).transpose(0, 2, 1, 3)       # (pb, H, P, d)
    p4 = jnp.broadcast_to(p4, (B, n_head, P, d))

    q_u = (q4 + pbu).transpose(0, 2, 1, 3)                       # (B, H, L, d)
    q_v = (q4 + pbv).transpose(0, 2, 1, 3)

    ac = jnp.einsum('bhld,bhsd->bhls', q_u, k4)
    bd_full = jnp.einsum('bhld,bhpd->bhlp', q_v, p4)             # (B, H, L, P)

    idx = (L - 1) - jnp.arange(L)[:, None] + jnp.arange(S)[None, :]
    idx = jnp.broadcast_to(idx[None, None], (B, n_head, L, S))
    bd = jnp.take_along_axis(bd_full, idx, axis=-1)              # rel_shift

    scores = (ac + bd) * scaling
    if attn_mask is not None:
        if attn_mask.dtype == jnp.bool_:
            scores = scores + jnp.where(attn_mask, NEG_INF, 0.0)[None, None]
        else:
            scores = scores + attn_mask[None, None]
    if key_padding_mask is not None:
        scores = scores + jnp.where(key_padding_mask.astype(jnp.bool_),
                                    NEG_INF, 0.0)[:, None, None, :]
    attn = jax.nn.softmax(scores, axis=-1)
    ctx = jnp.einsum('bhls,bhsd->bhld', attn, v4)
    ctx = ctx.transpose(2, 0, 1, 3).reshape(L, B, E)
    out = ctx @ out_w.T + out_b
    return out, attn.mean(axis=1)


if __name__ == "__main__":
    # Small shapes consistent with the module: seq=8, batch=2, embed_dim=32, heads=4.
    B, L, E, H = 2, 8, 32, 4
    S, P, D = L, 2 * L - 1, E // H

    key0 = jax.random.PRNGKey(0)
    ks = jax.random.split(key0, 12)

    def xavier(k, shape):
        fan_out, fan_in = shape[0], shape[-1]
        a = math.sqrt(6.0 / (fan_in + fan_out))
        return jax.random.uniform(k, shape, jnp.float32, -a, a)

    in_w = xavier(ks[0], (3 * E, E))
    in_b = jax.random.uniform(ks[1], (3 * E,), jnp.float32, -0.1, 0.1)
    out_w = xavier(ks[2], (E, E))
    out_b = jax.random.uniform(ks[3], (E,), jnp.float32, -0.1, 0.1)
    pos_w = xavier(ks[4], (E, E))
    pbu = xavier(ks[5], (H, D))
    pbv = xavier(ks[6], (H, D))
    params = (in_w, in_b, out_w, out_b, pos_w, pbu, pbv)

    x = jax.random.normal(ks[7], (L, B, E), jnp.float32)
    query = key_in = value = x                                   # self-attention usage
    pos_emb = jax.random.normal(ks[8], (1, P, E), jnp.float32)
    key_padding_mask = jnp.zeros((B, S), jnp.bool_).at[1, -2:].set(True)

    prep = prepare_params(params, n_head=H)                      # bf16 MXU operands

    # 1) key-padding mask present, weights requested.
    out, attn_w = rel_position_multi_head_attention(
        query, key_in, value, pos_emb, prep,
        key_padding_mask=key_padding_mask, attn_mask=None, need_weights=True)
    out = jax.block_until_ready(out)
    attn_w = jax.block_until_ready(attn_w)

    ref_out, ref_w = _reference(query, key_in, value, pos_emb, params, n_head=H,
                                key_padding_mask=key_padding_mask, attn_mask=None)
    # bf16 MXU operands (f32 accumulation) -> looser tolerances than the f32 reference.
    np.testing.assert_allclose(np.asarray(out), np.asarray(ref_out),
                               rtol=5e-2, atol=7e-2)
    np.testing.assert_allclose(np.asarray(attn_w), np.asarray(ref_w),
                               rtol=5e-2, atol=3e-2)

    # 2) specialized variant: no masks, no attention-weights output.
    out2, none_w = rel_position_multi_head_attention(
        query, key_in, value, pos_emb, prep, need_weights=False)
    out2 = jax.block_until_ready(out2)
    assert none_w is None
    ref_out2, _ = _reference(query, key_in, value, pos_emb, params, n_head=H)
    np.testing.assert_allclose(np.asarray(out2), np.asarray(ref_out2),
                               rtol=5e-2, atol=7e-2)

    print("KERNEL_OK")
</pallas_src>

<mosaic_0001>
module attributes {stable_mosaic.version = 11 : i64} {
  func.func @probe_kernel(%arg0: memref<4x8x128xf32, #tpu.memory_space<vmem>>, %arg1: memref<4x8x128xf32, #tpu.memory_space<vmem>>) attributes {dimension_semantics = [], scalar_prefetch = 0 : i64, scratch_operands = 0 : i64, tpu.core_type = #tpu.core_type<tc>} {
    %c0 = arith.constant 0 : index
    %c0_0 = arith.constant 0 : index
    %c0_1 = arith.constant 0 : index
    %0 = vector.load %arg0[%c0, %c0_0, %c0_1] : memref<4x8x128xf32, #tpu.memory_space<vmem>>, vector<4x8x128xf32>
    %c0_i32 = arith.constant 0 : i32
    %1 = tpu.dynamic_rotate %0 by %c0_i32 dim 2 {stride = 1 : si32, stride_dimension = 1 : si32} : vector<4x8x128xf32>, i32 -> vector<4x8x128xf32>
    %c0_2 = arith.constant 0 : index
    %c0_3 = arith.constant 0 : index
    %c0_4 = arith.constant 0 : index
    %2 = vector.load %arg1[%c0_2, %c0_3, %c0_4] : memref<4x8x128xf32, #tpu.memory_space<vmem>>, vector<4x8x128xf32>
    tpu.vector_store %arg1[%c0_2, %c0_3, %c0_4], %1 {strides = array<i32>} : memref<4x8x128xf32, #tpu.memory_space<vmem>>, vector<4x8x128xf32>,
    return
  }
}

module attributes {stable_mosaic.version = 11 : i64} {
  func.func @_rel_mha_kernel(%arg0: i32, %arg1: memref<1x8x32xbf16, #tpu.memory_space<vmem>>, %arg2: memref<1x8x32xbf16, #tpu.memory_space<vmem>>, %arg3: memref<1x8x32xbf16, #tpu.memory_space<vmem>>, %arg4: memref<1x128x32xbf16, #tpu.memory_space<vmem>>, %arg5: memref<1x1x8xf32, #tpu.memory_space<vmem>>, %arg6: memref<4x32x8xbf16, #tpu.memory_space<vmem>>, %arg7: memref<4x32x8xbf16, #tpu.memory_space<vmem>>, %arg8: memref<4x32x8xbf16, #tpu.memory_space<vmem>>, %arg9: memref<4x32x8xbf16, #tpu.memory_space<vmem>>, %arg10: memref<4x8x32xbf16, #tpu.memory_space<vmem>>, %arg11: memref<4x1x8xf32, #tpu.memory_space<vmem>>, %arg12: memref<4x1x8xf32, #tpu.memory_space<vmem>>, %arg13: memref<4x1x8xf32, #tpu.memory_space<vmem>>, %arg14: memref<1x32xf32, #tpu.memory_space<vmem>>, %arg15: memref<4x1x8xf32, #tpu.memory_space<vmem>>, %arg16: memref<4x1x8xf32, #tpu.memory_space<vmem>>, %arg17: memref<1x8x32xf32, #tpu.memory_space<vmem>>, %arg18: memref<1x8x8xf32, #tpu.memory_space<vmem>>) attributes {dimension_semantics = [#tpu.dimension_semantics<parallel>], iteration_bounds = array<i64: 2>, scalar_prefetch = 0 : i64, scratch_operands = 0 : i64, tpu.core_type = #tpu.core_type<tc>, window_params = [{transform_indices = @transform_0, window_bounds = array<i64: 1, 8, 32>}, {transform_indices = @transform_1, window_bounds = array<i64: 1, 8, 32>}, {transform_indices = @transform_2, window_bounds = array<i64: 1, 8, 32>}, {pipeline_mode = #tpu.pipeline_mode<synchronous>, transform_indices = @transform_3, window_bounds = array<i64: 1, 128, 32>}, {transform_indices = @transform_4, window_bounds = array<i64: 1, 1, 8>}, {pipeline_mode = #tpu.pipeline_mode<synchronous>, transform_indices = @transform_5, window_bounds = array<i64: 4, 32, 8>}, {pipeline_mode = #tpu.pipeline_mode<synchronous>, transform_indices = @transform_6, window_bounds = array<i64: 4, 32, 8>}, {pipeline_mode = #tpu.pipeline_mode<synchronous>, transform_indices = @transform_7, window_bounds = array<i64: 4, 32, 8>}, {pipeline_mode = #tpu.pipeline_mode<synchronous>, transform_indices = @transform_8, window_bounds = array<i64: 4, 32, 8>}, {pipeline_mode = #tpu.pipeline_mode<synchronous>, transform_indices = @transform_9, window_bounds = array<i64: 4, 8, 32>}, {pipeline_mode = #tpu.pipeline_mode<synchronous>, transform_indices = @transform_10, window_bounds = array<i64: 4, 1, 8>}, {pipeline_mode = #tpu.pipeline_mode<synchronous>, transform_indices = @transform_11, window_bounds = array<i64: 4, 1, 8>}, {pipeline_mode = #tpu.pipeline_mode<synchronous>, transform_indices = @transform_12, window_bounds = array<i64: 4, 1, 8>}, {pipeline_mode = #tpu.pipeline_mode<synchronous>, transform_indices = @transform_13, window_bounds = array<i64: 1, 32>}, {pipeline_mode = #tpu.pipeline_mode<synchronous>, transform_indices = @transform_14, window_bounds = array<i64: 4, 1, 8>}, {pipeline_mode = #tpu.pipeline_mode<synchronous>, transform_indices = @transform_15, window_bounds = array<i64: 4, 1, 8>}, {transform_indices = @transform_16, window_bounds = array<i64: 1, 8, 32>}, {transform_indices = @transform_17, window_bounds = array<i64: 1, 8, 8>}]} {
    %c0 = arith.constant 0 : index
    %c0_0 = arith.constant 0 : index
    %c0_1 = arith.constant 0 : index
    %0 = vector.load %arg1[%c0, %c0_0, %c0_1] : memref<1x8x32xbf16, #tpu.memory_space<vmem>>, vector<1x8x32xbf16>
    %1 = vector.shape_cast %0 : vector<1x8x32xbf16> to vector<8x32xbf16>
    %c0_2 = arith.constant 0 : index
    %c0_3 = arith.constant 0 : index
    %c0_4 = arith.constant 0 : index
    %2 = vector.load %arg2[%c0_2, %c0_3, %c0_4] : memref<1x8x32xbf16, #tpu.memory_space<vmem>>, vector<1x8x32xbf16>
    %3 = vector.shape_cast %2 : vector<1x8x32xbf16> to vector<8x32xbf16>
    %c0_5 = arith.constant 0 : index
    %c0_6 = arith.constant 0 : index
    %c0_7 = arith.constant 0 : index
    %4 = vector.load %arg3[%c0_5, %c0_6, %c0_7] : memref<1x8x32xbf16, #tpu.memory_space<vmem>>, vector<1x8x32xbf16>
    %5 = vector.shape_cast %4 : vector<1x8x32xbf16> to vector<8x32xbf16>
    %c0_8 = arith.constant 0 : index
    %c0_9 = arith.constant 0 : index
    %c0_10 = arith.constant 0 : index
    %6 = vector.load %arg4[%c0_8, %c0_9, %c0_10] : memref<1x128x32xbf16, #tpu.memory_space<vmem>>, vector<1x128x32xbf16>
    %7 = vector.shape_cast %6 : vector<1x128x32xbf16> to vector<128x32xbf16>
    %c0_11 = arith.constant 0 : index
    %c0_12 = arith.constant 0 : index
    %c0_13 = arith.constant 0 : index
    %8 = vector.load %arg6[%c0_11, %c0_12, %c0_13] : memref<4x32x8xbf16, #tpu.memory_space<vmem>>, vector<1x32x8xbf16>
    %9 = vector.shape_cast %8 : vector<1x32x8xbf16> to vector<32x8xbf16>
    %cst = arith.constant dense<0.000000e+00> : vector<8x8xf32>
    %10 = tpu.matmul %1, %9, %cst {dimension_numbers = #tpu.dot_dimension_numbers<[1], [0], [0], [1], [0, 0, 1, 1], [], []>} : vector<8x32xbf16>, vector<32x8xbf16>, vector<8x8xf32> -> vector<8x8xf32>
    %c1 = arith.constant 1 : index
    %c0_14 = arith.constant 0 : index
    %c0_15 = arith.constant 0 : index
    %11 = vector.load %arg6[%c1, %c0_14, %c0_15] : memref<4x32x8xbf16, #tpu.memory_space<vmem>>, vector<1x32x8xbf16>
    %12 = vector.shape_cast %11 : vector<1x32x8xbf16> to vector<32x8xbf16>
    %cst_16 = arith.constant dense<0.000000e+00> : vector<8x8xf32>
    %13 = tpu.matmul %1, %12, %cst_16 {dimension_numbers = #tpu.dot_dimension_numbers<[1], [0], [0], [1], [0, 0, 1, 1], [], []>} : vector<8x32xbf16>, vector<32x8xbf16>, vector<8x8xf32> -> vector<8x8xf32>
    %c2 = arith.constant 2 : index
    %c0_17 = arith.constant 0 : index
    %c0_18 = arith.constant 0 : index
    %14 = vector.load %arg6[%c2, %c0_17, %c0_18] : memref<4x32x8xbf16, #tpu.memory_space<vmem>>, vector<1x32x8xbf16>
    %15 = vector.shape_cast %14 : vector<1x32x8xbf16> to vector<32x8xbf16>
    %cst_19 = arith.constant dense<0.000000e+00> : vector<8x8xf32>
    %16 = tpu.matmul %1, %15, %cst_19 {dimension_numbers = #tpu.dot_dimension_numbers<[1], [0], [0], [1], [0, 0, 1, 1], [], []>} : vector<8x32xbf16>, vector<32x8xbf16>, vector<8x8xf32> -> vector<8x8xf32>
    %c3 = arith.constant 3 : index
    %c0_20 = arith.constant 0 : index
    %c0_21 = arith.constant 0 : index
    %17 = vector.load %arg6[%c3, %c0_20, %c0_21] : memref<4x32x8xbf16, #tpu.memory_space<vmem>>, vector<1x32x8xbf16>
    %18 = vector.shape_cast %17 : vector<1x32x8xbf16> to vector<32x8xbf16>
    %cst_22 = arith.constant dense<0.000000e+00> : vector<8x8xf32>
    %19 = tpu.matmul %1, %18, %cst_22 {dimension_numbers = #tpu.dot_dimension_numbers<[1], [0], [0], [1], [0, 0, 1, 1], [], []>} : vector<8x32xbf16>, vector<32x8xbf16>, vector<8x8xf32> -> vector<8x8xf32>
    %20 = vector.shape_cast %10 : vector<8x8xf32> to vector<1x8x8xf32>
    %21 = vector.shape_cast %13 : vector<8x8xf32> to vector<1x8x8xf32>
    %22 = vector.shape_cast %16 : vector<8x8xf32> to vector<1x8x8xf32>
    %23 = vector.shape_cast %19 : vector<8x8xf32> to vector<1x8x8xf32>
    %24 = tpu.concatenate %20, %21, %22, %23 in 0 : vector<1x8x8xf32>, vector<1x8x8xf32>, vector<1x8x8xf32>, vector<1x8x8xf32> -> vector<4x8x8xf32>
    %c0_23 = arith.constant 0 : index
    %c0_24 = arith.constant 0 : index
    %c0_25 = arith.constant 0 : index
    %25 = vector.load %arg11[%c0_23, %c0_24, %c0_25] : memref<4x1x8xf32, #tpu.memory_space<vmem>>, vector<4x1x8xf32>
    %26 = vector.broadcast %25 : vector<4x1x8xf32> to vector<4x8x8xf32>
    %27 = arith.addf %24, %26 : vector<4x8x8xf32>
    %c0_26 = arith.constant 0 : index
    %c0_27 = arith.constant 0 : index
    %c0_28 = arith.constant 0 : index
    %28 = vector.load %arg7[%c0_26, %c0_27, %c0_28] : memref<4x32x8xbf16, #tpu.memory_space<vmem>>, vector<1x32x8xbf16>
    %29 = vector.shape_cast %28 : vector<1x32x8xbf16> to vector<32x8xbf16>
    %cst_29 = arith.constant dense<0.000000e+00> : vector<8x8xf32>
    %30 = tpu.matmul %3, %29, %cst_29 {dimension_numbers = #tpu.dot_dimension_numbers<[1], [0], [0], [1], [0, 0, 1, 1], [], []>} : vector<8x32xbf16>, vector<32x8xbf16>, vector<8x8xf32> -> vector<8x8xf32>
    %c1_30 = arith.constant 1 : index
    %c0_31 = arith.constant 0 : index
    %c0_32 = arith.constant 0 : index
    %31 = vector.load %arg7[%c1_30, %c0_31, %c0_32] : memref<4x32x8xbf16, #tpu.memory_space<vmem>>, vector<1x32x8xbf16>
    %32 = vector.shape_cast %31 : vector<1x32x8xbf16> to vector<32x8xbf16>
    %cst_33 = arith.constant dense<0.000000e+00> : vector<8x8xf32>
    %33 = tpu.matmul %3, %32, %cst_33 {dimension_numbers = #tpu.dot_dimension_numbers<[1], [0], [0], [1], [0, 0, 1, 1], [], []>} : vector<8x32xbf16>, vector<32x8xbf16>, vector<8x8xf32> -> vector<8x8xf32>
    %c2_34 = arith.constant 2 : index
    %c0_35 = arith.constant 0 : index
    %c0_36 = arith.constant 0 : index
    %34 = vector.load %arg7[%c2_34, %c0_35, %c0_36] : memref<4x32x8xbf16, #tpu.memory_space<vmem>>, vector<1x32x8xbf16>
    %35 = vector.shape_cast %34 : vector<1x32x8xbf16> to vector<32x8xbf16>
    %cst_37 = arith.constant dense<0.000000e+00> : vector<8x8xf32>
    %36 = tpu.matmul %3, %35, %cst_37 {dimension_numbers = #tpu.dot_dimension_numbers<[1], [0], [0], [1], [0, 0, 1, 1], [], []>} : vector<8x32xbf16>, vector<32x8xbf16>, vector<8x8xf32> -> vector<8x8xf32>
    %c3_38 = arith.constant 3 : index
    %c0_39 = arith.constant 0 : index
    %c0_40 = arith.constant 0 : index
    %37 = vector.load %arg7[%c3_38, %c0_39, %c0_40] : memref<4x32x8xbf16, #tpu.memory_space<vmem>>, vector<1x32x8xbf16>
    %38 = vector.shape_cast %37 : vector<1x32x8xbf16> to vector<32x8xbf16>
    %cst_41 = arith.constant dense<0.000000e+00> : vector<8x8xf32>
    %39 = tpu.matmul %3, %38, %cst_41 {dimension_numbers = #tpu.dot_dimension_numbers<[1], [0], [0], [1], [0, 0, 1, 1], [], []>} : vector<8x32xbf16>, vector<32x8xbf16>, vector<8x8xf32> -> vector<8x8xf32>
    %40 = vector.shape_cast %30 : vector<8x8xf32> to vector<1x8x8xf32>
    %41 = vector.shape_cast %33 : vector<8x8xf32> to vector<1x8x8xf32>
    %42 = vector.shape_cast %36 : vector<8x8xf32> to vector<1x8x8xf32>
    %43 = vector.shape_cast %39 : vector<8x8xf32> to vector<1x8x8xf32>
    %44 = tpu.concatenate %40, %41, %42, %43 in 0 : vector<1x8x8xf32>, vector<1x8x8xf32>, vector<1x8x8xf32>, vector<1x8x8xf32> -> vector<4x8x8xf32>
    %c0_42 = arith.constant 0 : index
    %c0_43 = arith.constant 0 : index
    %c0_44 = arith.constant 0 : index
    %45 = vector.load %arg12[%c0_42, %c0_43, %c0_44] : memref<4x1x8xf32, #tpu.memory_space<vmem>>, vector<4x1x8xf32>
    %46 = vector.broadcast %45 : vector<4x1x8xf32> to vector<4x8x8xf32>
    %47 = arith.addf %44, %46 : vector<4x8x8xf32>
    %c0_45 = arith.constant 0 : index
    %c0_46 = arith.constant 0 : index
    %c0_47 = arith.constant 0 : index
    %48 = vector.load %arg8[%c0_45, %c0_46, %c0_47] : memref<4x32x8xbf16, #tpu.memory_space<vmem>>, vector<1x32x8xbf16>
    %49 = vector.shape_cast %48 : vector<1x32x8xbf16> to vector<32x8xbf16>
    %cst_48 = arith.constant dense<0.000000e+00> : vector<8x8xf32>
    %50 = tpu.matmul %5, %49, %cst_48 {dimension_numbers = #tpu.dot_dimension_numbers<[1], [0], [0], [1], [0, 0, 1, 1], [], []>} : vector<8x32xbf16>, vector<32x8xbf16>, vector<8x8xf32> -> vector<8x8xf32>
    %c1_49 = arith.constant 1 : index
    %c0_50 = arith.constant 0 : index
    %c0_51 = arith.constant 0 : index
    %51 = vector.load %arg8[%c1_49, %c0_50, %c0_51] : memref<4x32x8xbf16, #tpu.memory_space<vmem>>, vector<1x32x8xbf16>
    %52 = vector.shape_cast %51 : vector<1x32x8xbf16> to vector<32x8xbf16>
    %cst_52 = arith.constant dense<0.000000e+00> : vector<8x8xf32>
    %53 = tpu.matmul %5, %52, %cst_52 {dimension_numbers = #tpu.dot_dimension_numbers<[1], [0], [0], [1], [0, 0, 1, 1], [], []>} : vector<8x32xbf16>, vector<32x8xbf16>, vector<8x8xf32> -> vector<8x8xf32>
    %c2_53 = arith.constant 2 : index
    %c0_54 = arith.constant 0 : index
    %c0_55 = arith.constant 0 : index
    %54 = vector.load %arg8[%c2_53, %c0_54, %c0_55] : memref<4x32x8xbf16, #tpu.memory_space<vmem>>, vector<1x32x8xbf16>
    %55 = vector.shape_cast %54 : vector<1x32x8xbf16> to vector<32x8xbf16>
    %cst_56 = arith.constant dense<0.000000e+00> : vector<8x8xf32>
    %56 = tpu.matmul %5, %55, %cst_56 {dimension_numbers = #tpu.dot_dimension_numbers<[1], [0], [0], [1], [0, 0, 1, 1], [], []>} : vector<8x32xbf16>, vector<32x8xbf16>, vector<8x8xf32> -> vector<8x8xf32>
    %c3_57 = arith.constant 3 : index
    %c0_58 = arith.constant 0 : index
    %c0_59 = arith.constant 0 : index
    %57 = vector.load %arg8[%c3_57, %c0_58, %c0_59] : memref<4x32x8xbf16, #tpu.memory_space<vmem>>, vector<1x32x8xbf16>
    %58 = vector.shape_cast %57 : vector<1x32x8xbf16> to vector<32x8xbf16>
    %cst_60 = arith.constant dense<0.000000e+00> : vector<8x8xf32>
    %59 = tpu.matmul %5, %58, %cst_60 {dimension_numbers = #tpu.dot_dimension_numbers<[1], [0], [0], [1], [0, 0, 1, 1], [], []>} : vector<8x32xbf16>, vector<32x8xbf16>, vector<8x8xf32> -> vector<8x8xf32>
    %60 = vector.shape_cast %50 : vector<8x8xf32> to vector<1x8x8xf32>
    %61 = vector.shape_cast %53 : vector<8x8xf32> to vector<1x8x8xf32>
    %62 = vector.shape_cast %56 : vector<8x8xf32> to vector<1x8x8xf32>
    %63 = vector.shape_cast %59 : vector<8x8xf32> to vector<1x8x8xf32>
    %64 = tpu.concatenate %60, %61, %62, %63 in 0 : vector<1x8x8xf32>, vector<1x8x8xf32>, vector<1x8x8xf32>, vector<1x8x8xf32> -> vector<4x8x8xf32>
    %c0_61 = arith.constant 0 : index
    %c0_62 = arith.constant 0 : index
    %c0_63 = arith.constant 0 : index
    %65 = vector.load %arg13[%c0_61, %c0_62, %c0_63] : memref<4x1x8xf32, #tpu.memory_space<vmem>>, vector<4x1x8xf32>
    %66 = vector.broadcast %65 : vector<4x1x8xf32> to vector<4x8x8xf32>
    %67 = arith.addf %64, %66 : vector<4x8x8xf32>
    %c0_64 = arith.constant 0 : index
    %c0_65 = arith.constant 0 : index
    %c0_66 = arith.constant 0 : index
    %68 = vector.load %arg9[%c0_64, %c0_65, %c0_66] : memref<4x32x8xbf16, #tpu.memory_space<vmem>>, vector<1x32x8xbf16>
    %69 = vector.shape_cast %68 : vector<1x32x8xbf16> to vector<32x8xbf16>
    %cst_67 = arith.constant dense<0.000000e+00> : vector<128x8xf32>
    %70 = tpu.matmul %7, %69, %cst_67 {dimension_numbers = #tpu.dot_dimension_numbers<[1], [0], [0], [1], [0, 0, 1, 1], [], []>} : vector<128x32xbf16>, vector<32x8xbf16>, vector<128x8xf32> -> vector<128x8xf32>
    %c1_68 = arith.constant 1 : index
    %c0_69 = arith.constant 0 : index
    %c0_70 = arith.constant 0 : index
    %71 = vector.load %arg9[%c1_68, %c0_69, %c0_70] : memref<4x32x8xbf16, #tpu.memory_space<vmem>>, vector<1x32x8xbf16>
    %72 = vector.shape_cast %71 : vector<1x32x8xbf16> to vector<32x8xbf16>
    %cst_71 = arith.constant dense<0.000000e+00> : vector<128x8xf32>
    %73 = tpu.matmul %7, %72, %cst_71 {dimension_numbers = #tpu.dot_dimension_numbers<[1], [0], [0], [1], [0, 0, 1, 1], [], []>} : vector<128x32xbf16>, vector<32x8xbf16>, vector<128x8xf32> -> vector<128x8xf32>
    %c2_72 = arith.constant 2 : index
    %c0_73 = arith.constant 0 : index
    %c0_74 = arith.constant 0 : index
    %74 = vector.load %arg9[%c2_72, %c0_73, %c0_74] : memref<4x32x8xbf16, #tpu.memory_space<vmem>>, vector<1x32x8xbf16>
    %75 = vector.shape_cast %74 : vector<1x32x8xbf16> to vector<32x8xbf16>
    %cst_75 = arith.constant dense<0.000000e+00> : vector<128x8xf32>
    %76 = tpu.matmul %7, %75, %cst_75 {dimension_numbers = #tpu.dot_dimension_numbers<[1], [0], [0], [1], [0, 0, 1, 1], [], []>} : vector<128x32xbf16>, vector<32x8xbf16>, vector<128x8xf32> -> vector<128x8xf32>
    %c3_76 = arith.constant 3 : index
    %c0_77 = arith.constant 0 : index
    %c0_78 = arith.constant 0 : index
    %77 = vector.load %arg9[%c3_76, %c0_77, %c0_78] : memref<4x32x8xbf16, #tpu.memory_space<vmem>>, vector<1x32x8xbf16>
    %78 = vector.shape_cast %77 : vector<1x32x8xbf16> to vector<32x8xbf16>
    %cst_79 = arith.constant dense<0.000000e+00> : vector<128x8xf32>
    %79 = tpu.matmul %7, %78, %cst_79 {dimension_numbers = #tpu.dot_dimension_numbers<[1], [0], [0], [1], [0, 0, 1, 1], [], []>} : vector<128x32xbf16>, vector<32x8xbf16>, vector<128x8xf32> -> vector<128x8xf32>
    %80 = vector.shape_cast %70 : vector<128x8xf32> to vector<1x128x8xf32>
    %81 = vector.shape_cast %73 : vector<128x8xf32> to vector<1x128x8xf32>
    %82 = vector.shape_cast %76 : vector<128x8xf32> to vector<1x128x8xf32>
    %83 = vector.shape_cast %79 : vector<128x8xf32> to vector<1x128x8xf32>
    %84 = tpu.concatenate %80, %81, %82, %83 in 0 : vector<1x128x8xf32>, vector<1x128x8xf32>, vector<1x128x8xf32>, vector<1x128x8xf32> -> vector<4x128x8xf32>
    %c0_80 = arith.constant 0 : index
    %c0_81 = arith.constant 0 : index
    %c0_82 = arith.constant 0 : index
    %85 = vector.load %arg15[%c0_80, %c0_81, %c0_82] : memref<4x1x8xf32, #tpu.memory_space<vmem>>, vector<4x1x8xf32>
    %86 = vector.broadcast %85 : vector<4x1x8xf32> to vector<4x8x8xf32>
    %87 = arith.addf %27, %86 : vector<4x8x8xf32>
    %cst_83 = arith.constant 0.353553385 : f32
    %88 = vector.broadcast %cst_83 : f32 to vector<4x8x8xf32>
    %89 = arith.mulf %87, %88 : vector<4x8x8xf32>
    %90 = arith.truncf %89 : vector<4x8x8xf32> to vector<4x8x8xbf16>
    %c0_84 = arith.constant 0 : index
    %c0_85 = arith.constant 0 : index
    %c0_86 = arith.constant 0 : index
    %91 = vector.load %arg16[%c0_84, %c0_85, %c0_86] : memref<4x1x8xf32, #tpu.memory_space<vmem>>, vector<4x1x8xf32>
    %92 = vector.broadcast %91 : vector<4x1x8xf32> to vector<4x8x8xf32>
    %93 = arith.addf %27, %92 : vector<4x8x8xf32>
    %cst_87 = arith.constant 0.353553385 : f32
    %94 = vector.broadcast %cst_87 : f32 to vector<4x8x8xf32>
    %95 = arith.mulf %93, %94 : vector<4x8x8xf32>
    %96 = arith.truncf %95 : vector<4x8x8xf32> to vector<4x8x8xbf16>
    %97 = arith.truncf %47 : vector<4x8x8xf32> to vector<4x8x8xbf16>
    %98 = arith.truncf %67 : vector<4x8x8xf32> to vector<4x8x8xbf16>
    %99 = arith.truncf %84 : vector<4x128x8xf32> to vector<4x128x8xbf16>
    "tpu.trace_start"() <{level = 10 : i32, message = "hld,hsd->hls"}> : () -> ()
    %cst_88 = arith.constant dense<0.000000e+00> : vector<4x8x8xf32>
    %100 = tpu.matmul %90, %97, %cst_88 {dimension_numbers = #tpu.dot_dimension_numbers<[2], [2], [1], [1], [0, 0, 0, 1, 1, 1], [0], [0]>} : vector<4x8x8xbf16>, vector<4x8x8xbf16>, vector<4x8x8xf32> -> vector<4x8x8xf32>
    "tpu.trace_stop"() : () -> ()
    "tpu.trace_start"() <{level = 10 : i32, message = "hld,hwd->hlw"}> : () -> ()
    %cst_89 = arith.constant dense<0.000000e+00> : vector<4x8x128xf32>
    %101 = tpu.matmul %96, %99, %cst_89 {dimension_numbers = #tpu.dot_dimension_numbers<[2], [2], [1], [1], [0, 0, 0, 1, 1, 1], [0], [0]>} : vector<4x8x8xbf16>, vector<4x128x8xbf16>, vector<4x8x128xf32> -> vector<4x8x128xf32>
    "tpu.trace_stop"() : () -> ()
    %102 = vector.extract_strided_slice %101 {offsets = [0, 0, 7], sizes = [4, 1, 8], strides = [1, 1, 1]} : vector<4x8x128xf32> to vector<4x1x8xf32>
    %103 = vector.extract_strided_slice %101 {offsets = [0, 1, 6], sizes = [4, 1, 8], strides = [1, 1, 1]} : vector<4x8x128xf32> to vector<4x1x8xf32>
    %104 = vector.extract_strided_slice %101 {offsets = [0, 2, 5], sizes = [4, 1, 8], strides = [1, 1, 1]} : vector<4x8x128xf32> to vector<4x1x8xf32>
    %105 = vector.extract_strided_slice %101 {offsets = [0, 3, 4], sizes = [4, 1, 8], strides = [1, 1, 1]} : vector<4x8x128xf32> to vector<4x1x8xf32>
    %106 = vector.extract_strided_slice %101 {offsets = [0, 4, 3], sizes = [4, 1, 8], strides = [1, 1, 1]} : vector<4x8x128xf32> to vector<4x1x8xf32>
    %107 = vector.extract_strided_slice %101 {offsets = [0, 5, 2], sizes = [4, 1, 8], strides = [1, 1, 1]} : vector<4x8x128xf32> to vector<4x1x8xf32>
    %108 = vector.extract_strided_slice %101 {offsets = [0, 6, 1], sizes = [4, 1, 8], strides = [1, 1, 1]} : vector<4x8x128xf32> to vector<4x1x8xf32>
    %109 = vector.extract_strided_slice %101 {offsets = [0, 7, 0], sizes = [4, 1, 8], strides = [1, 1, 1]} : vector<4x8x128xf32> to vector<4x1x8xf32>
    %110 = tpu.concatenate %102, %103, %104, %105, %106, %107, %108, %109 in 1 : vector<4x1x8xf32>, vector<4x1x8xf32>, vector<4x1x8xf32>, vector<4x1x8xf32>, vector<4x1x8xf32>, vector<4x1x8xf32>, vector<4x1x8xf32>, vector<4x1x8xf32> -> vector<4x8x8xf32>
    %111 = arith.addf %100, %110 : vector<4x8x8xf32>
    %c0_90 = arith.constant 0 : index
    %c0_91 = arith.constant 0 : index
    %c0_92 = arith.constant 0 : index
    %112 = vector.load %arg5[%c0_90, %c0_91, %c0_92] : memref<1x1x8xf32, #tpu.memory_space<vmem>>, vector<1x1x8xf32>
    %113 = vector.broadcast %112 : vector<1x1x8xf32> to vector<4x8x8xf32>
    %114 = arith.addf %111, %113 : vector<4x8x8xf32>
    %cst_93 = arith.constant dense<0xFF800000> : vector<4x8xf32>
    %115 = vector.multi_reduction <maximumf>, %114, %cst_93 [2] : vector<4x8x8xf32> to vector<4x8xf32>
    %116 = vector.shape_cast %115 : vector<4x8xf32> to vector<4x8x1xf32>
    %117 = vector.broadcast %116 : vector<4x8x1xf32> to vector<4x8x8xf32>
    %118 = arith.subf %114, %117 : vector<4x8x8xf32>
    %119 = math.exp %118 : vector<4x8x8xf32>
    %cst_94 = arith.constant dense<0.000000e+00> : vector<4x8xf32>
    %120 = vector.multi_reduction <add>, %119, %cst_94 [2] : vector<4x8x8xf32> to vector<4x8xf32>
    %121 = vector.shape_cast %120 : vector<4x8xf32> to vector<4x8x1xf32>
    %122 = tpu.reciprocal %121 {approx = true} : vector<4x8x1xf32> -> vector<4x8x1xf32>
    %123 = vector.broadcast %122 : vector<4x8x1xf32> to vector<4x8x8xf32>
    %124 = arith.mulf %119, %123 : vector<4x8x8xf32>
    %125 = arith.truncf %124 : vector<4x8x8xf32> to vector<4x8x8xbf16>
    "tpu.trace_start"() <{level = 10 : i32, message = "hls,hsd->hld"}> : () -> ()
    %cst_95 = arith.constant dense<0.000000e+00> : vector<4x8x8xf32>
    %126 = tpu.matmul %125, %98, %cst_95 {dimension_numbers = #tpu.dot_dimension_numbers<[2], [1], [1], [2], [0, 0, 0, 1, 1, 2], [0], [0]>} : vector<4x8x8xbf16>, vector<4x8x8xbf16>, vector<4x8x8xf32> -> vector<4x8x8xf32>
    "tpu.trace_stop"() : () -> ()
    %127 = arith.truncf %126 : vector<4x8x8xf32> to vector<4x8x8xbf16>
    %c0_96 = arith.constant 0 : index
    %c0_97 = arith.constant 0 : index
    %c0_98 = arith.constant 0 : index
    %128 = vector.load %arg10[%c0_96, %c0_97, %c0_98] : memref<4x8x32xbf16, #tpu.memory_space<vmem>>, vector<4x8x32xbf16>
    "tpu.trace_start"() <{level = 10 : i32, message = "hld,hde->hle"}> : () -> ()
    %cst_99 = arith.constant dense<0.000000e+00> : vector<4x8x32xf32>
    %129 = tpu.matmul %127, %128, %cst_99 {dimension_numbers = #tpu.dot_dimension_numbers<[2], [1], [1], [2], [0, 0, 0, 1, 1, 2], [0], [0]>} : vector<4x8x8xbf16>, vector<4x8x32xbf16>, vector<4x8x32xf32> -> vector<4x8x32xf32>
    "tpu.trace_stop"() : () -> ()
    %cst_100 = arith.constant dense<0.000000e+00> : vector<8x32xf32>
    %130 = vector.multi_reduction <add>, %129, %cst_100 [0] : vector<4x8x32xf32> to vector<8x32xf32>
    %c0_101 = arith.constant 0 : index
    %c0_102 = arith.constant 0 : index
    %131 = vector.load %arg14[%c0_101, %c0_102] : memref<1x32xf32, #tpu.memory_space<vmem>>, vector<1x32xf32>
    %132 = vector.broadcast %131 : vector<1x32xf32> to vector<8x32xf32>
    %133 = arith.addf %130, %132 : vector<8x32xf32>
    %c0_103 = arith.constant 0 : index
    %c0_104 = arith.constant 0 : index
    %c0_105 = arith.constant 0 : index
    %134 = vector.load %arg17[%c0_103, %c0_104, %c0_105] : memref<1x8x32xf32, #tpu.memory_space<vmem>>, vector<1x8x32xf32>
    %135 = vector.shape_cast %134 : vector<1x8x32xf32> to vector<8x32xf32>
    %136 = vector.shape_cast %133 : vector<8x32xf32> to vector<1x8x32xf32>
    tpu.vector_store %arg17[%c0_103, %c0_104, %c0_105], %136 {strides = array<i32>} : memref<1x8x32xf32, #tpu.memory_space<vmem>>, vector<1x8x32xf32>,
    %cst_106 = arith.constant dense<0.000000e+00> : vector<8x8xf32>
    %137 = vector.multi_reduction <add>, %124, %cst_106 [0] : vector<4x8x8xf32> to vector<8x8xf32>
    %cst_107 = arith.constant 4.000000e+00 : f32
    %138 = vector.broadcast %cst_107 : f32 to vector<8x8xf32>
    %139 = arith.divf %137, %138 : vector<8x8xf32>
    %c0_108 = arith.constant 0 : index
    %c0_109 = arith.constant 0 : index
    %c0_110 = arith.constant 0 : index
    %140 = vector.load %arg18[%c0_108, %c0_109, %c0_110] : memref<1x8x8xf32, #tpu.memory_space<vmem>>, vector<1x8x8xf32>
    %141 = vector.shape_cast %140 : vector<1x8x8xf32> to vector<8x8xf32>
    %142 = vector.shape_cast %139 : vector<8x8xf32> to vector<1x8x8xf32>
    tpu.vector_store %arg18[%c0_108, %c0_109, %c0_110], %142 {strides = array<i32>} : memref<1x8x8xf32, #tpu.memory_space<vmem>>, vector<1x8x8xf32>,
    return
  }
  func.func @transform_0(%arg0: i32) -> (i32, i32, i32) {
    %c0_i32 = arith.constant 0 : i32
    %c0_i32_0 = arith.constant 0 : i32
    %c0_i32_1 = arith.constant 0 : i32
    return %arg0, %c0_i32, %c0_i32_0 : i32, i32, i32
  }
  func.func @transform_1(%arg0: i32) -> (i32, i32, i32) {
    %c0_i32 = arith.constant 0 : i32
    %c0_i32_0 = arith.constant 0 : i32
    %c0_i32_1 = arith.constant 0 : i32
    return %arg0, %c0_i32, %c0_i32_0 : i32, i32, i32
  }
  func.func @transform_2(%arg0: i32) -> (i32, i32, i32) {
    %c0_i32 = arith.constant 0 : i32
    %c0_i32_0 = arith.constant 0 : i32
    %c0_i32_1 = arith.constant 0 : i32
    return %arg0, %c0_i32, %c0_i32_0 : i32, i32, i32
  }
  func.func @transform_3(%arg0: i32) -> (i32, i32, i32) {
    %c0_i32 = arith.constant 0 : i32
    %c0_i32_0 = arith.constant 0 : i32
    %c0_i32_1 = arith.constant 0 : i32
    %c0_i32_2 = arith.constant 0 : i32
    return %c0_i32, %c0_i32_0, %c0_i32_1 : i32, i32, i32
  }
  func.func @transform_4(%arg0: i32) -> (i32, i32, i32) {
    %c0_i32 = arith.constant 0 : i32
    %c0_i32_0 = arith.constant 0 : i32
    %c0_i32_1 = arith.constant 0 : i32
    return %arg0, %c0_i32, %c0_i32_0 : i32, i32, i32
  }
  func.func @transform_5(%arg0: i32) -> (i32, i32, i32) {
    %c0_i32 = arith.constant 0 : i32
    %c0_i32_0 = arith.constant 0 : i32
    %c0_i32_1 = arith.constant 0 : i32
    %c0_i32_2 = arith.constant 0 : i32
    return %c0_i32, %c0_i32_0, %c0_i32_1 : i32, i32, i32
  }
  func.func @transform_6(%arg0: i32) -> (i32, i32, i32) {
    %c0_i32 = arith.constant 0 : i32
    %c0_i32_0 = arith.constant 0 : i32
    %c0_i32_1 = arith.constant 0 : i32
    %c0_i32_2 = arith.constant 0 : i32
    return %c0_i32, %c0_i32_0, %c0_i32_1 : i32, i32, i32
  }
  func.func @transform_7(%arg0: i32) -> (i32, i32, i32) {
    %c0_i32 = arith.constant 0 : i32
    %c0_i32_0 = arith.constant 0 : i32
    %c0_i32_1 = arith.constant 0 : i32
    %c0_i32_2 = arith.constant 0 : i32
    return %c0_i32, %c0_i32_0, %c0_i32_1 : i32, i32, i32
  }
  func.func @transform_8(%arg0: i32) -> (i32, i32, i32) {
    %c0_i32 = arith.constant 0 : i32
    %c0_i32_0 = arith.constant 0 : i32
    %c0_i32_1 = arith.constant 0 : i32
    %c0_i32_2 = arith.constant 0 : i32
    return %c0_i32, %c0_i32_0, %c0_i32_1 : i32, i32, i32
  }
  func.func @transform_9(%arg0: i32) -> (i32, i32, i32) {
    %c0_i32 = arith.constant 0 : i32
    %c0_i32_0 = arith.constant 0 : i32
    %c0_i32_1 = arith.constant 0 : i32
    %c0_i32_2 = arith.constant 0 : i32
    return %c0_i32, %c0_i32_0, %c0_i32_1 : i32, i32, i32
  }
  func.func @transform_10(%arg0: i32) -> (i32, i32, i32) {
    %c0_i32 = arith.constant 0 : i32
    %c0_i32_0 = arith.constant 0 : i32
    %c0_i32_1 = arith.constant 0 : i32
    %c0_i32_2 = arith.constant 0 : i32
    return %c0_i32, %c0_i32_0, %c0_i32_1 : i32, i32, i32
  }
  func.func @transform_11(%arg0: i32) -> (i32, i32, i32) {
    %c0_i32 = arith.constant 0 : i32
    %c0_i32_0 = arith.constant 0 : i32
    %c0_i32_1 = arith.constant 0 : i32
    %c0_i32_2 = arith.constant 0 : i32
    return %c0_i32, %c0_i32_0, %c0_i32_1 : i32, i32, i32
  }
  func.func @transform_12(%arg0: i32) -> (i32, i32, i32) {
    %c0_i32 = arith.constant 0 : i32
    %c0_i32_0 = arith.constant 0 : i32
    %c0_i32_1 = arith.constant 0 : i32
    %c0_i32_2 = arith.constant 0 : i32
    return %c0_i32, %c0_i32_0, %c0_i32_1 : i32, i32, i32
  }
  func.func @transform_13(%arg0: i32) -> (i32, i32) {
    %c0_i32 = arith.constant 0 : i32
    %c0_i32_0 = arith.constant 0 : i32
    %c0_i32_1 = arith.constant 0 : i32
    return %c0_i32, %c0_i32_0 : i32, i32
  }
  func.func @transform_14(%arg0: i32) -> (i32, i32, i32) {
    %c0_i32 = arith.constant 0 : i32
    %c0_i32_0 = arith.constant 0 : i32
    %c0_i32_1 = arith.constant 0 : i32
    %c0_i32_2 = arith.constant 0 : i32
    return %c0_i32, %c0_i32_0, %c0_i32_1 : i32, i32, i32
  }
  func.func @transform_15(%arg0: i32) -> (i32, i32, i32) {
    %c0_i32 = arith.constant 0 : i32
    %c0_i32_0 = arith.constant 0 : i32
    %c0_i32_1 = arith.constant 0 : i32
    %c0_i32_2 = arith.constant 0 : i32
    return %c0_i32, %c0_i32_0, %c0_i32_1 : i32, i32, i32
  }
  func.func @transform_16(%arg0: i32) -> (i32, i32, i32) {
    %c0_i32 = arith.constant 0 : i32
    %c0_i32_0 = arith.constant 0 : i32
    %c0_i32_1 = arith.constant 0 : i32
    return %arg0, %c0_i32, %c0_i32_0 : i32, i32, i32
  }
  func.func @transform_17(%arg0: i32) -> (i32, i32, i32) {
    %c0_i32 = arith.constant 0 : i32
    %c0_i32_0 = arith.constant 0 : i32
    %c0_i32_1 = arith.constant 0 : i32
    return %arg0, %c0_i32, %c0_i32_0 : i32, i32, i32
  }
}

</mosaic_0001>

<llo_original>
// kernel: tpu_custom_call.1
$region0: #{tpu_custom_call.1}
  #allocation0 [shape = 'u32[]', space=smem, size = 0x4, offset = 0x4, fixed_abs, tag = 'smem constant byte address 0x4 - core index']
  #allocation1 [shape = 'u32[144,128]{1,0:T(1,128)}', space=vmem, size = 0x12000, scoped, tag = 'internal scratch']
  %s0 = inlined_call_operand.hbm [shape: f32[4,8,128], index: 0, kind: input, shape index: {}]
  %s1 = inlined_call_operand.hbm [shape: f32[4,8,128], index: 1, kind: output, shape index: {}]
  %s2 = sld [smem:[#allocation0]]
  $region18: #{tpu_custom_call.1} parent=0
    _
  %s4 = ssub.s32 1, %s2
  %s5 = scalar_select 0, %s4, %s2
  $region1: #{tpu_custom_call.1} parent=0
    #allocation2 [shape = 'u8[16384]{0}', space=vmem, size = 0x4000, scoped, tag = 'input window, operand 0, single buffered']
    #allocation3 [shape = 's32[1]{0}', space=sflag, size = 0x4, scoped, tag = 'scoped memory for tpu_custom_call.1']
    #allocation4 [shape = 's32[1]{0}', space=sflag, size = 0x4, scoped, tag = 'scoped memory for tpu_custom_call.1']
    #allocation5 [shape = 'u8[16384]{0}', space=vmem, size = 0x4000, scoped, tag = 'output window, operand 0, single buffered']
    %6 = vsyncpa [#allocation3], 0
    %7 = vsyncpa [#allocation4], 0
    // Predicated region
    $region2: #{tpu_custom_call.1} parent=1 // pred_check
      _
    $region3: #{tpu_custom_call.1} parent=1 // pred_check_branch
      %9 = sbr.rel (0) target = $region5
    $region4: #{tpu_custom_call.1} parent=1 // pred_region
      %s11 = ssub.s32 512, 512
      %12 = vsyncadd [#allocation3], %s11
      %s13 = sshll.u32 [#allocation2], 4
      %s14 = int_to_ptr.vmem [resolvable:$true] %s13
      %19 = dma.hbm_to_vmem [thread:$0]  %s0, 512, %s14, [#allocation3], 128, 128, 8
    $region5: #{tpu_custom_call.1} parent=1 // pred_fallthru
      _
    // Predicated region
    $region6: #{tpu_custom_call.1} parent=1 // pred_check
      _
    $region7: #{tpu_custom_call.1} parent=1 // pred_check_branch
      %21 = sbr.rel (0) target = $region9
    $region8: #{tpu_custom_call.1} parent=1 // pred_region
      %22 = dma.done [#allocation3], 512
    $region9: #{tpu_custom_call.1} parent=1 // pred_fallthru
      _
    %v23 = vld [vmem:[#allocation2] sm:$0xff]
    %v24 = vld [vmem:[#allocation2 + $0x8] sm:$0xff]
    %v25 = vld [vmem:[#allocation2 + $0x10] sm:$0xff]
    %v26 = vld [vmem:[#allocation2 + $0x18] sm:$0xff]
    %28 = vrot.lane.b32.xlu0 %v23, 256
    %v29 = vpop.permute.xlu0 %28
    %31 = vrot.lane.b32.xlu0 %v24, 256
    %v32 = vpop.permute.xlu0 %31
    %34 = vrot.lane.b32.xlu0 %v25, 256
    %v35 = vpop.permute.xlu0 %34
    %37 = vrot.lane.b32.xlu0 %v26, 256
    %v38 = vpop.permute.xlu0 %37
    %39 = vst [vmem:[#allocation5] sm:$0xff] %v29
    %40 = vst [vmem:[#allocation5 + $0x8] sm:$0xff] %v32
    %41 = vst [vmem:[#allocation5 + $0x10] sm:$0xff] %v35
    %42 = vst [vmem:[#allocation5 + $0x18] sm:$0xff] %v38
    // Predicated region
    $region10: #{tpu_custom_call.1} parent=1 // pred_check
      _
    $region11: #{tpu_custom_call.1} parent=1 // pred_check_branch
      %44 = sbr.rel (0) target = $region13
    $region12: #{tpu_custom_call.1} parent=1 // pred_region
      %s46 = ssub.s32 512, 512
      %47 = vsyncadd [#allocation4], %s46
      %s48 = sshll.u32 [#allocation5], 4
      %s49 = int_to_ptr.vmem [resolvable:$true] %s48
      %54 = dma.vmem_to_hbm [thread:$0]  %s49, 512, %s1, [#allocation4], 128, 128, 8
    $region13: #{tpu_custom_call.1} parent=1 // pred_fallthru
      _
    // Predicated region
    $region14: #{tpu_custom_call.1} parent=1 // pred_check
      _
    $region15: #{tpu_custom_call.1} parent=1 // pred_check_branch
      %56 = sbr.rel (0) target = $region17
    $region16: #{tpu_custom_call.1} parent=1 // pred_region
      %57 = dma.done [#allocation4], 512
    $region17: #{tpu_custom_call.1} parent=1 // pred_fallthru
      _
    %58 = vsyncpa [#allocation3], 1
    %59 = vsyncpa [#allocation4], 1

// kernel: tpu_custom_call.1
$region0: #{tpu_custom_call.1}
  #allocation0 [shape = 'u32[]', space=smem, size = 0x4, offset = 0x4, fixed_abs, tag = 'smem constant byte address 0x4 - core index']
  #allocation1 [shape = 'u32[144,128]{1,0:T(1,128)}', space=vmem, size = 0x12000, scoped, tag = 'internal scratch']
  %s0 = inlined_call_operand.vmem [shape: bf16[2,8,32], index: 0, kind: input, shape index: {}]
  %s1 = inlined_call_operand.vmem [shape: bf16[2,8,32], index: 1, kind: input, shape index: {}]
  %s2 = inlined_call_operand.vmem [shape: bf16[2,8,32], index: 2, kind: input, shape index: {}]
  %s3 = inlined_call_operand.vmem [shape: bf16[1,128,32], index: 3, kind: input, shape index: {}]
  %s4 = inlined_call_operand.vmem [shape: f32[2,1,8], index: 4, kind: input, shape index: {}]
  %s5 = inlined_call_operand.vmem [shape: bf16[4,32,8], index: 5, kind: input, shape index: {}]
  %s6 = inlined_call_operand.vmem [shape: bf16[4,32,8], index: 6, kind: input, shape index: {}]
  %s7 = inlined_call_operand.vmem [shape: bf16[4,32,8], index: 7, kind: input, shape index: {}]
  %s8 = inlined_call_operand.vmem [shape: bf16[4,32,8], index: 8, kind: input, shape index: {}]
  %s9 = inlined_call_operand.vmem [shape: bf16[4,8,32], index: 9, kind: input, shape index: {}]
  %s10 = inlined_call_operand.vmem [shape: f32[4,1,8], index: 10, kind: input, shape index: {}]
  %s11 = inlined_call_operand.vmem [shape: f32[4,1,8], index: 11, kind: input, shape index: {}]
  %s12 = inlined_call_operand.vmem [shape: f32[4,1,8], index: 12, kind: input, shape index: {}]
  %s13 = inlined_call_operand.vmem [shape: f32[1,32], index: 13, kind: input, shape index: {}]
  %s14 = inlined_call_operand.vmem [shape: f32[4,1,8], index: 14, kind: input, shape index: {}]
  %s15 = inlined_call_operand.vmem [shape: f32[4,1,8], index: 15, kind: input, shape index: {}]
  %s16 = inlined_call_operand.hbm [shape: f32[2,8,32], index: 16, kind: output, shape index: {0}]
  %s17 = inlined_call_operand.hbm [shape: f32[2,8,8], index: 17, kind: output, shape index: {1}]
  %18 = xla_tuple %s16, %s17
  %s19 = sld [smem:[#allocation0]]
  $region105: #{tpu_custom_call.1} parent=0
    _
  %s21 = ssub.s32 1, %s19
  %s22 = scalar_select 0, %s21, %s19
  $region1: #{tpu_custom_call.1} parent=0
    #allocation2 [shape = 'u8[8192]{0}', space=vmem, size = 0x2000, scoped, tag = 'output window, operand 0']
    #allocation3 [shape = 's32[2]{0}', space=sflag, size = 0x8, scoped, tag = 'scoped memory for tpu_custom_call.1']
    #allocation4 [shape = 'u8[8192]{0}', space=vmem, size = 0x2000, scoped, tag = 'output window, operand 1']
    #allocation5 [shape = 's32[2]{0}', space=sflag, size = 0x8, scoped, tag = 'scoped memory for tpu_custom_call.1']
    %23 = vsyncpa [#allocation3], 0
    %s24 = scalar_lea.sflag [#allocation3], 1
    %25 = vsyncpa %s24, 0
    %26 = vsyncpa [#allocation5], 0
    %s27 = scalar_lea.sflag [#allocation5], 1
    %28 = vsyncpa %s27, 0
    loop: start=0, step=1, limit=4
    $region2: #{tpu_custom_call.1} parent=1 // loop_pre_header
      _
    $region3: #{tpu_custom_call.1} parent=1 // loop_header
      %s30 = sphi 0, %s34
      %p31 = scmp.ge.s32.totalorder %s30, 4
      %s40 = sphi 0, %s42
      %s43 = sphi 0, %s40
      %s44 = sphi 0, %s43
      %s60 = sphi 0, %s44
      %s66 = sphi 0, %s68
      %s69 = sphi 0, %s66
      %s70 = sphi 0, %s69
      %s86 = sphi 0, %s70
      %s92 = sphi 0, %s94
      %s95 = sphi 0, %s92
      %s96 = sphi 0, %s95
      %s112 = sphi 0, %s96
      %s116 = sphi 0, %s116
      %s118 = sphi 0, %s116
      %s119 = sphi 0, %s118
      %s133 = sphi 0, %s119
      %s139 = sphi 0, %s141
      %s142 = sphi 0, %s139
      %s143 = sphi 0, %s142
      %s159 = sphi 0, %s143
      %s163 = sphi 0, %s163
      %s165 = sphi 0, %s163
      %s166 = sphi 0, %s165
      %s180 = sphi 0, %s166
      %s184 = sphi 0, %s184
      %s186 = sphi 0, %s184
      %s187 = sphi 0, %s186
      %s201 = sphi 0, %s187
      %s205 = sphi 0, %s205
      %s207 = sphi 0, %s205
      %s208 = sphi 0, %s207
      %s222 = sphi 0, %s208
      %s226 = sphi 0, %s226
      %s228 = sphi 0, %s226
      %s229 = sphi 0, %s228
      %s243 = sphi 0, %s229
      %s247 = sphi 0, %s247
      %s249 = sphi 0, %s247
      %s250 = sphi 0, %s249
      %s264 = sphi 0, %s250
      %s268 = sphi 0, %s268
      %s270 = sphi 0, %s268
      %s271 = sphi 0, %s270
      %s285 = sphi 0, %s271
      %s289 = sphi 0, %s289
      %s291 = sphi 0, %s289
      %s292 = sphi 0, %s291
      %s306 = sphi 0, %s292
      %s310 = sphi 0, %s310
      %s312 = sphi 0, %s310
      %s313 = sphi 0, %s312
      %s327 = sphi 0, %s313
      %s331 = sphi 0, %s331
      %s333 = sphi 0, %s331
      %s334 = sphi 0, %s333
      %s348 = sphi 0, %s334
      %s352 = sphi 0, %s352
      %s354 = sphi 0, %s352
      %s355 = sphi 0, %s354
      %s369 = sphi 0, %s355
      %s373 = sphi 0, %s373
      %s375 = sphi 0, %s373
      %s376 = sphi 0, %s375
      %s390 = sphi 0, %s376
      %s396 = sphi 0, %s398
      %s399 = sphi 0, %s396
      %s400 = sphi 0, %s399
      %s416 = sphi 0, %s400
      %s422 = sphi 0, %s424
      %s425 = sphi 0, %s422
      %s426 = sphi 0, %s425
      %s442 = sphi 0, %s426
    $region4: #{tpu_custom_call.1} parent=1 // loop_header_branch
      %33 = sbr.rel (%p31) target = $region8
    $region5: #{tpu_custom_call.1} parent=1 // loop_body
      %s35 = ssub.s32 %s30, 1
      %s36 = ssub.s32 %s30, 2
      %s37 = sadd.s32 %s30, 1
      %s38 = ssub.s32 %s30, %s37
      %p39 = scmp.eq.s32.totalorder %s38, 0
      %s41 = sadd.s32 %s40, 1
      %s42 = scalar_select %p39, %s40, %s41
      %p45 = pneg %p39
      %p46 = scmp.eq.s32.totalorder %s30, 1
      %p47 = por %p45, %p46
      %p48 = scmp.ne.s32.totalorder %s40, %s43
      %p49 = scmp.eq.s32.totalorder %s30, 0
      %p50 = por %p48, %p49
      %p51 = scmp.ne.s32.totalorder %s40, %s43
      %p52 = scmp.eq.s32.totalorder %s35, 1
      %p53 = por %p51, %p52
      %p54 = scmp.ne.s32.totalorder %s43, %s44
      %p55 = scmp.eq.s32.totalorder %s35, 0
      %p56 = por %p54, %p55
      %p57 = scmp.ne.s32.totalorder %s43, %s44
      %p58 = scmp.eq.s32.totalorder %s36, 1
      %p59 = por %p57, %p58
      %p61 = scmp.ne.s32.totalorder %s44, %s60
      %p62 = scmp.eq.s32.totalorder %s36, 0
      %p63 = por %p61, %p62
      %s64 = ssub.s32 %s30, %s37
      %p65 = scmp.eq.s32.totalorder %s64, 0
      %s67 = sadd.s32 %s66, 1
      %s68 = scalar_select %p65, %s66, %s67
      %p71 = pneg %p65
      %p72 = scmp.eq.s32.totalorder %s30, 1
      %p73 = por %p71, %p72
      %p74 = scmp.ne.s32.totalorder %s66, %s69
      %p75 = scmp.eq.s32.totalorder %s30, 0
      %p76 = por %p74, %p75
      %p77 = scmp.ne.s32.totalorder %s66, %s69
      %p78 = scmp.eq.s32.totalorder %s35, 1
      %p79 = por %p77, %p78
      %p80 = scmp.ne.s32.totalorder %s69, %s70
      %p81 = scmp.eq.s32.totalorder %s35, 0
      %p82 = por %p80, %p81
      %p83 = scmp.ne.s32.totalorder %s69, %s70
      %p84 = scmp.eq.s32.totalorder %s36, 1
      %p85 = por %p83, %p84
      %p87 = scmp.ne.s32.totalorder %s70, %s86
      %p88 = scmp.eq.s32.totalorder %s36, 0
      %p89 = por %p87, %p88
      %s90 = ssub.s32 %s30, %s37
      %p91 = scmp.eq.s32.totalorder %s90, 0
      %s93 = sadd.s32 %s92, 1
      %s94 = scalar_select %p91, %s92, %s93
      %p97 = pneg %p91
      %p98 = scmp.eq.s32.totalorder %s30, 1
      %p99 = por %p97, %p98
      %p100 = scmp.ne.s32.totalorder %s92, %s95
      %p101 = scmp.eq.s32.totalorder %s30, 0
      %p102 = por %p100, %p101
      %p103 = scmp.ne.s32.totalorder %s92, %s95
      %p104 = scmp.eq.s32.totalorder %s35, 1
      %p105 = por %p103, %p104
      %p106 = scmp.ne.s32.totalorder %s95, %s96
      %p107 = scmp.eq.s32.totalorder %s35, 0
      %p108 = por %p106, %p107
      %p109 = scmp.ne.s32.totalorder %s95, %s96
      %p110 = scmp.eq.s32.totalorder %s36, 1
      %p111 = por %p109, %p110
      %p113 = scmp.ne.s32.totalorder %s96, %s112
      %p114 = scmp.eq.s32.totalorder %s36, 0
      %p115 = por %p113, %p114
      %s117 = sadd.s32 %s116, 1
      %p120 = scmp.eq.s32.totalorder %s30, 1
      %p121 = scmp.ne.s32.totalorder %s116, %s118
      %p122 = scmp.eq.s32.totalorder %s30, 0
      %p123 = por %p121, %p122
      %p124 = scmp.ne.s32.totalorder %s116, %s118
      %p125 = scmp.eq.s32.totalorder %s35, 1
      %p126 = por %p124, %p125
      %p127 = scmp.ne.s32.totalorder %s118, %s119
      %p128 = scmp.eq.s32.totalorder %s35, 0
      %p129 = por %p127, %p128
      %p130 = scmp.ne.s32.totalorder %s118, %s119
      %p131 = scmp.eq.s32.totalorder %s36, 1
      %p132 = por %p130, %p131
      %p134 = scmp.ne.s32.totalorder %s119, %s133
      %p135 = scmp.eq.s32.totalorder %s36, 0
      %p136 = por %p134, %p135
      %s137 = ssub.s32 %s30, %s37
      %p138 = scmp.eq.s32.totalorder %s137, 0
      %s140 = sadd.s32 %s139, 1
      %s141 = scalar_select %p138, %s139, %s140
      %p144 = pneg %p138
      %p145 = scmp.eq.s32.totalorder %s30, 1
      %p146 = por %p144, %p145
      %p147 = scmp.ne.s32.totalorder %s139, %s142
      %p148 = scmp.eq.s32.totalorder %s30, 0
      %p149 = por %p147, %p148
      %p150 = scmp.ne.s32.totalorder %s139, %s142
      %p151 = scmp.eq.s32.totalorder %s35, 1
      %p152 = por %p150, %p151
      %p153 = scmp.ne.s32.totalorder %s142, %s143
      %p154 = scmp.eq.s32.totalorder %s35, 0
      %p155 = por %p153, %p154
      %p156 = scmp.ne.s32.totalorder %s142, %s143
      %p157 = scmp.eq.s32.totalorder %s36, 1
      %p158 = por %p156, %p157
      %p160 = scmp.ne.s32.totalorder %s143, %s159
      %p161 = scmp.eq.s32.totalorder %s36, 0
      %p162 = por %p160, %p161
      %s164 = sadd.s32 %s163, 1
      %p167 = scmp.eq.s32.totalorder %s30, 1
      %p168 = scmp.ne.s32.totalorder %s163, %s165
      %p169 = scmp.eq.s32.totalorder %s30, 0
      %p170 = por %p168, %p169
      %p171 = scmp.ne.s32.totalorder %s163, %s165
      %p172 = scmp.eq.s32.totalorder %s35, 1
      %p173 = por %p171, %p172
      %p174 = scmp.ne.s32.totalorder %s165, %s166
      %p175 = scmp.eq.s32.totalorder %s35, 0
      %p176 = por %p174, %p175
      %p177 = scmp.ne.s32.totalorder %s165, %s166
      %p178 = scmp.eq.s32.totalorder %s36, 1
      %p179 = por %p177, %p178
      %p181 = scmp.ne.s32.totalorder %s166, %s180
      %p182 = scmp.eq.s32.totalorder %s36, 0
      %p183 = por %p181, %p182
      %s185 = sadd.s32 %s184, 1
      %p188 = scmp.eq.s32.totalorder %s30, 1
      %p189 = scmp.ne.s32.totalorder %s184, %s186
      %p190 = scmp.eq.s32.totalorder %s30, 0
      %p191 = por %p189, %p190
      %p192 = scmp.ne.s32.totalorder %s184, %s186
      %p193 = scmp.eq.s32.totalorder %s35, 1
      %p194 = por %p192, %p193
      %p195 = scmp.ne.s32.totalorder %s186, %s187
      %p196 = scmp.eq.s32.totalorder %s35, 0
      %p197 = por %p195, %p196
      %p198 = scmp.ne.s32.totalorder %s186, %s187
      %p199 = scmp.eq.s32.totalorder %s36, 1
      %p200 = por %p198, %p199
      %p202 = scmp.ne.s32.totalorder %s187, %s201
      %p203 = scmp.eq.s32.totalorder %s36, 0
      %p204 = por %p202, %p203
      %s206 = sadd.s32 %s205, 1
      %p209 = scmp.eq.s32.totalorder %s30, 1
      %p210 = scmp.ne.s32.totalorder %s205, %s207
      %p211 = scmp.eq.s32.totalorder %s30, 0
      %p212 = por %p210, %p211
      %p213 = scmp.ne.s32.totalorder %s205, %s207
      %p214 = scmp.eq.s32.totalorder %s35, 1
      %p215 = por %p213, %p214
      %p216 = scmp.ne.s32.totalorder %s207, %s208
      %p217 = scmp.eq.s32.totalorder %s35, 0
      %p218 = por %p216, %p217
      %p219 = scmp.ne.s32.totalorder %s207, %s208
      %p220 = scmp.eq.s32.totalorder %s36, 1
      %p221 = por %p219, %p220
      %p223 = scmp.ne.s32.totalorder %s208, %s222
      %p224 = scmp.eq.s32.totalorder %s36, 0
      %p225 = por %p223, %p224
      %s227 = sadd.s32 %s226, 1
      %p230 = scmp.eq.s32.totalorder %s30, 1
      %p231 = scmp.ne.s32.totalorder %s226, %s228
      %p232 = scmp.eq.s32.totalorder %s30, 0
      %p233 = por %p231, %p232
      %p234 = scmp.ne.s32.totalorder %s226, %s228
      %p235 = scmp.eq.s32.totalorder %s35, 1
      %p236 = por %p234, %p235
      %p237 = scmp.ne.s32.totalorder %s228, %s229
      %p238 = scmp.eq.s32.totalorder %s35, 0
      %p239 = por %p237, %p238
      %p240 = scmp.ne.s32.totalorder %s228, %s229
      %p241 = scmp.eq.s32.totalorder %s36, 1
      %p242 = por %p240, %p241
      %p244 = scmp.ne.s32.totalorder %s229, %s243
      %p245 = scmp.eq.s32.totalorder %s36, 0
      %p246 = por %p244, %p245
      %s248 = sadd.s32 %s247, 1
      %p251 = scmp.eq.s32.totalorder %s30, 1
      %p252 = scmp.ne.s32.totalorder %s247, %s249
      %p253 = scmp.eq.s32.totalorder %s30, 0
      %p254 = por %p252, %p253
      %p255 = scmp.ne.s32.totalorder %s247, %s249
      %p256 = scmp.eq.s32.totalorder %s35, 1
      %p257 = por %p255, %p256
      %p258 = scmp.ne.s32.totalorder %s249, %s250
      %p259 = scmp.eq.s32.totalorder %s35, 0
      %p260 = por %p258, %p259
      %p261 = scmp.ne.s32.totalorder %s249, %s250
      %p262 = scmp.eq.s32.totalorder %s36, 1
      %p263 = por %p261, %p262
      %p265 = scmp.ne.s32.totalorder %s250, %s264
      %p266 = scmp.eq.s32.totalorder %s36, 0
      %p267 = por %p265, %p266
      %s269 = sadd.s32 %s268, 1
      %p272 = scmp.eq.s32.totalorder %s30, 1
      %p273 = scmp.ne.s32.totalorder %s268, %s270
      %p274 = scmp.eq.s32.totalorder %s30, 0
      %p275 = por %p273, %p274
      %p276 = scmp.ne.s32.totalorder %s268, %s270
      %p277 = scmp.eq.s32.totalorder %s35, 1
      %p278 = por %p276, %p277
      %p279 = scmp.ne.s32.totalorder %s270, %s271
      %p280 = scmp.eq.s32.totalorder %s35, 0
      %p281 = por %p279, %p280
      %p282 = scmp.ne.s32.totalorder %s270, %s271
      %p283 = scmp.eq.s32.totalorder %s36, 1
      %p284 = por %p282, %p283
      %p286 = scmp.ne.s32.totalorder %s271, %s285
      %p287 = scmp.eq.s32.totalorder %s36, 0
      %p288 = por %p286, %p287
      %s290 = sadd.s32 %s289, 1
      %p293 = scmp.eq.s32.totalorder %s30, 1
      %p294 = scmp.ne.s32.totalorder %s289, %s291
      %p295 = scmp.eq.s32.totalorder %s30, 0
      %p296 = por %p294, %p295
      %p297 = scmp.ne.s32.totalorder %s289, %s291
      %p298 = scmp.eq.s32.totalorder %s35, 1
      %p299 = por %p297, %p298
      %p300 = scmp.ne.s32.totalorder %s291, %s292
      %p301 = scmp.eq.s32.totalorder %s35, 0
      %p302 = por %p300, %p301
      %p303 = scmp.ne.s32.totalorder %s291, %s292
      %p304 = scmp.eq.s32.totalorder %s36, 1
      %p305 = por %p303, %p304
      %p307 = scmp.ne.s32.totalorder %s292, %s306
      %p308 = scmp.eq.s32.totalorder %s36, 0
      %p309 = por %p307, %p308
      %s311 = sadd.s32 %s310, 1
      %p314 = scmp.eq.s32.totalorder %s30, 1
      %p315 = scmp.ne.s32.totalorder %s310, %s312
      %p316 = scmp.eq.s32.totalorder %s30, 0
      %p317 = por %p315, %p316
      %p318 = scmp.ne.s32.totalorder %s310, %s312
      %p319 = scmp.eq.s32.totalorder %s35, 1
      %p320 = por %p318, %p319
      %p321 = scmp.ne.s32.totalorder %s312, %s313
      %p322 = scmp.eq.s32.totalorder %s35, 0
      %p323 = por %p321, %p322
      %p324 = scmp.ne.s32.totalorder %s312, %s313
      %p325 = scmp.eq.s32.totalorder %s36, 1
      %p326 = por %p324, %p325
      %p328 = scmp.ne.s32.totalorder %s313, %s327
      %p329 = scmp.eq.s32.totalorder %s36, 0
      %p330 = por %p328, %p329
      %s332 = sadd.s32 %s331, 1
      %p335 = scmp.eq.s32.totalorder %s30, 1
      %p336 = scmp.ne.s32.totalorder %s331, %s333
      %p337 = scmp.eq.s32.totalorder %s30, 0
      %p338 = por %p336, %p337
      %p339 = scmp.ne.s32.totalorder %s331, %s333
      %p340 = scmp.eq.s32.totalorder %s35, 1
      %p341 = por %p339, %p340
      %p342 = scmp.ne.s32.totalorder %s333, %s334
      %p343 = scmp.eq.s32.totalorder %s35, 0
      %p344 = por %p342, %p343
      %p345 = scmp.ne.s32.totalorder %s333, %s334
      %p346 = scmp.eq.s32.totalorder %s36, 1
      %p347 = por %p345, %p346
      %p349 = scmp.ne.s32.totalorder %s334, %s348
      %p350 = scmp.eq.s32.totalorder %s36, 0
      %p351 = por %p349, %p350
      %s353 = sadd.s32 %s352, 1
      %p356 = scmp.eq.s32.totalorder %s30, 1
      %p357 = scmp.ne.s32.totalorder %s352, %s354
      %p358 = scmp.eq.s32.totalorder %s30, 0
      %p359 = por %p357, %p358
      %p360 = scmp.ne.s32.totalorder %s352, %s354
      %p361 = scmp.eq.s32.totalorder %s35, 1
      %p362 = por %p360, %p361
      %p363 = scmp.ne.s32.totalorder %s354, %s355
      %p364 = scmp.eq.s32.totalorder %s35, 0
      %p365 = por %p363, %p364
      %p366 = scmp.ne.s32.totalorder %s354, %s355
      %p367 = scmp.eq.s32.totalorder %s36, 1
      %p368 = por %p366, %p367
      %p370 = scmp.ne.s32.totalorder %s355, %s369
      %p371 = scmp.eq.s32.totalorder %s36, 0
      %p372 = por %p370, %p371
      %s374 = sadd.s32 %s373, 1
      %p377 = scmp.eq.s32.totalorder %s30, 1
      %p378 = scmp.ne.s32.totalorder %s373, %s375
      %p379 = scmp.eq.s32.totalorder %s30, 0
      %p380 = por %p378, %p379
      %p381 = scmp.ne.s32.totalorder %s373, %s375
      %p382 = scmp.eq.s32.totalorder %s35, 1
      %p383 = por %p381, %p382
      %p384 = scmp.ne.s32.totalorder %s375, %s376
      %p385 = scmp.eq.s32.totalorder %s35, 0
      %p386 = por %p384, %p385
      %p387 = scmp.ne.s32.totalorder %s375, %s376
      %p388 = scmp.eq.s32.totalorder %s36, 1
      %p389 = por %p387, %p388
      %p391 = scmp.ne.s32.totalorder %s376, %s390
      %p392 = scmp.eq.s32.totalorder %s36, 0
      %p393 = por %p391, %p392
      %s394 = ssub.s32 %s30, %s37
      %p395 = scmp.eq.s32.totalorder %s394, 0
      %s397 = sadd.s32 %s396, 1
      %s398 = scalar_select %p395, %s396, %s397
      %p401 = pneg %p395
      %p402 = scmp.eq.s32.totalorder %s30, 1
      %p403 = por %p401, %p402
      %p404 = scmp.ne.s32.totalorder %s396, %s399
      %p405 = scmp.eq.s32.totalorder %s30, 0
      %p406 = por %p404, %p405
      %p407 = scmp.ne.s32.totalorder %s396, %s399
      %p408 = scmp.eq.s32.totalorder %s35, 1
      %p409 = por %p407, %p408
      %p410 = scmp.ne.s32.totalorder %s399, %s400
      %p411 = scmp.eq.s32.totalorder %s35, 0
      %p412 = por %p410, %p411
      %p413 = scmp.ne.s32.totalorder %s399, %s400
      %p414 = scmp.eq.s32.totalorder %s36, 1
      %p415 = por %p413, %p414
      %p417 = scmp.ne.s32.totalorder %s400, %s416
      %p418 = scmp.eq.s32.totalorder %s36, 0
      %p419 = por %p417, %p418
      %s420 = ssub.s32 %s30, %s37
      %p421 = scmp.eq.s32.totalorder %s420, 0
      %s423 = sadd.s32 %s422, 1
      %s424 = scalar_select %p421, %s422, %s423
      %p427 = pneg %p421
      %p428 = scmp.eq.s32.totalorder %s30, 1
      %p429 = por %p427, %p428
      %p430 = scmp.ne.s32.totalorder %s422, %s425
      %p431 = scmp.eq.s32.totalorder %s30, 0
      %p432 = por %p430, %p431
      %p433 = scmp.ne.s32.totalorder %s422, %s425
      %p434 = scmp.eq.s32.totalorder %s35, 1
      %p435 = por %p433, %p434
      %p436 = scmp.ne.s32.totalorder %s425, %s426
      %p437 = scmp.eq.s32.totalorder %s35, 0
      %p438 = por %p436, %p437
      %p439 = scmp.ne.s32.totalorder %s425, %s426
      %p440 = scmp.eq.s32.totalorder %s36, 1
      %p441 = por %p439, %p440
      %p443 = scmp.ne.s32.totalorder %s426, %s442
      %p444 = scmp.eq.s32.totalorder %s36, 0
      %p445 = por %p443, %p444
      %p446 = scmp.le.s32.totalorder 1, %s30
      %p447 = scmp.lt.s32.totalorder %s30, 3
      %p448 = pnand %p446, %p447
      %p449 = pneg %p448
      // Predicated region
      $region9: #{tpu_custom_call.1} parent=5 // pred_check
        _
      $region10: #{tpu_custom_call.1} parent=5 // pred_check_branch
        %451 = sbr.rel (%p448) target = $region12
      $region11: #{tpu_custom_call.1} parent=5 // pred_region
        %s452 = ssub.s32 %s30, 1
        // Predicated region
        $region13: #{tpu_custom_call.1} parent=11 // pred_check
          %p453 = pneg %p129
        $region14: #{tpu_custom_call.1} parent=11 // pred_check_branch
          %455 = sbr.rel (%p453) target = $region16
        $region15: #{tpu_custom_call.1} parent=11 // pred_region
          _
        $region16: #{tpu_custom_call.1} parent=11 // pred_fallthru
          _
        // Predicated region
        $region17: #{tpu_custom_call.1} parent=11 // pred_check
          %p456 = pneg %p176
        $region18: #{tpu_custom_call.1} parent=11 // pred_check_branch
          %458 = sbr.rel (%p456) target = $region20
        $region19: #{tpu_custom_call.1} parent=11 // pred_region
          _
        $region20: #{tpu_custom_call.1} parent=11 // pred_fallthru
          _
        // Predicated region
        $region21: #{tpu_custom_call.1} parent=11 // pred_check
          %p459 = pneg %p197
        $region22: #{tpu_custom_call.1} parent=11 // pred_check_branch
          %461 = sbr.rel (%p459) target = $region24
        $region23: #{tpu_custom_call.1} parent=11 // pred_region
          _
        $region24: #{tpu_custom_call.1} parent=11 // pred_fallthru
          _
        // Predicated region
        $region25: #{tpu_custom_call.1} parent=11 // pred_check
          %p462 = pneg %p218
        $region26: #{tpu_custom_call.1} parent=11 // pred_check_branch
          %464 = sbr.rel (%p462) target = $region28
        $region27: #{tpu_custom_call.1} parent=11 // pred_region
          _
        $region28: #{tpu_custom_call.1} parent=11 // pred_fallthru
          _
        // Predicated region
        $region29: #{tpu_custom_call.1} parent=11 // pred_check
          %p465 = pneg %p239
        $region30: #{tpu_custom_call.1} parent=11 // pred_check_branch
          %467 = sbr.rel (%p465) target = $region32
        $region31: #{tpu_custom_call.1} parent=11 // pred_region
          _
        $region32: #{tpu_custom_call.1} parent=11 // pred_fallthru
          _
        // Predicated region
        $region33: #{tpu_custom_call.1} parent=11 // pred_check
          %p468 = pneg %p260
        $region34: #{tpu_custom_call.1} parent=11 // pred_check_branch
          %470 = sbr.rel (%p468) target = $region36
        $region35: #{tpu_custom_call.1} parent=11 // pred_region
          _
        $region36: #{tpu_custom_call.1} parent=11 // pred_fallthru
          _
        // Predicated region
        $region37: #{tpu_custom_call.1} parent=11 // pred_check
          %p471 = pneg %p281
        $region38: #{tpu_custom_call.1} parent=11 // pred_check_branch
          %473 = sbr.rel (%p471) target = $region40
        $region39: #{tpu_custom_call.1} parent=11 // pred_region
          _
        $region40: #{tpu_custom_call.1} parent=11 // pred_fallthru
          _
        // Predicated region
        $region41: #{tpu_custom_call.1} parent=11 // pred_check
          %p474 = pneg %p302
        $region42: #{tpu_custom_call.1} parent=11 // pred_check_branch
          %476 = sbr.rel (%p474) target = $region44
        $region43: #{tpu_custom_call.1} parent=11 // pred_region
          _
        $region44: #{tpu_custom_call.1} parent=11 // pred_fallthru
          _
        // Predicated region
        $region45: #{tpu_custom_call.1} parent=11 // pred_check
          %p477 = pneg %p323
        $region46: #{tpu_custom_call.1} parent=11 // pred_check_branch
          %479 = sbr.rel (%p477) target = $region48
        $region47: #{tpu_custom_call.1} parent=11 // pred_region
          _
        $region48: #{tpu_custom_call.1} parent=11 // pred_fallthru
          _
        // Predicated region
        $region49: #{tpu_custom_call.1} parent=11 // pred_check
          %p480 = pneg %p344
        $region50: #{tpu_custom_call.1} parent=11 // pred_check_branch
          %482 = sbr.rel (%p480) target = $region52
        $region51: #{tpu_custom_call.1} parent=11 // pred_region
          _
        $region52: #{tpu_custom_call.1} parent=11 // pred_fallthru
          _
        // Predicated region
        $region53: #{tpu_custom_call.1} parent=11 // pred_check
          %p483 = pneg %p365
        $region54: #{tpu_custom_call.1} parent=11 // pred_check_branch
          %485 = sbr.rel (%p483) target = $region56
        $region55: #{tpu_custom_call.1} parent=11 // pred_region
          _
        $region56: #{tpu_custom_call.1} parent=11 // pred_fallthru
          _
        // Predicated region
        $region57: #{tpu_custom_call.1} parent=11 // pred_check
          %p486 = pneg %p386
        $region58: #{tpu_custom_call.1} parent=11 // pred_check_branch
          %488 = sbr.rel (%p486) target = $region60
        $region59: #{tpu_custom_call.1} parent=11 // pred_region
          _
        $region60: #{tpu_custom_call.1} parent=11 // pred_fallthru
          _
      $region12: #{tpu_custom_call.1} parent=5 // pred_fallthru
        _
      %p489 = scmp.lt.s32.totalorder %s30, 2
      // Predicated region
      $region61: #{tpu_custom_call.1} parent=5 // pred_check
        %p490 = pneg %p489
      $region62: #{tpu_custom_call.1} parent=5 // pred_check_branch
        %492 = sbr.rel (%p490) target = $region64
      $region63: #{tpu_custom_call.1} parent=5 // pred_region
        // Predicated region
        $region65: #{tpu_custom_call.1} parent=63 // pred_check
          %p493 = pneg %p50
        $region66: #{tpu_custom_call.1} parent=63 // pred_check_branch
          %495 = sbr.rel (%p493) target = $region68
        $region67: #{tpu_custom_call.1} parent=63 // pred_region
          %p496 = scmp.lt.s32.totalorder %s30, 1
          %s497 = scalar_select %p496, %s30, 1
          %s498 = smul.addr %s497, 4
          %s499 = scalar_lea.vmem %s0, %s498
        $region68: #{tpu_custom_call.1} parent=63 // pred_fallthru
          _
        // Predicated region
        $region69: #{tpu_custom_call.1} parent=63 // pred_check
          %p500 = pneg %p76
        $region70: #{tpu_custom_call.1} parent=63 // pred_check_branch
          %502 = sbr.rel (%p500) target = $region72
        $region71: #{tpu_custom_call.1} parent=63 // pred_region
          %p503 = scmp.lt.s32.totalorder %s30, 1
          %s504 = scalar_select %p503, %s30, 1
          %s505 = smul.addr %s504, 4
          %s506 = scalar_lea.vmem %s1, %s505
        $region72: #{tpu_custom_call.1} parent=63 // pred_fallthru
          _
        // Predicated region
        $region73: #{tpu_custom_call.1} parent=63 // pred_check
          %p507 = pneg %p102
        $region74: #{tpu_custom_call.1} parent=63 // pred_check_branch
          %509 = sbr.rel (%p507) target = $region76
        $region75: #{tpu_custom_call.1} parent=63 // pred_region
          %p510 = scmp.lt.s32.totalorder %s30, 1
          %s511 = scalar_select %p510, %s30, 1
          %s512 = smul.addr %s511, 4
          %s513 = scalar_lea.vmem %s2, %s512
        $region76: #{tpu_custom_call.1} parent=63 // pred_fallthru
          _
        // Predicated region
        $region77: #{tpu_custom_call.1} parent=63 // pred_check
          %p514 = pneg %p149
        $region78: #{tpu_custom_call.1} parent=63 // pred_check_branch
          %516 = sbr.rel (%p514) target = $region80
        $region79: #{tpu_custom_call.1} parent=63 // pred_region
          %p517 = scmp.lt.s32.totalorder %s30, 1
          %s518 = scalar_select %p517, %s30, 1
          %s519 = scalar_lea.vmem %s4, %s518
        $region80: #{tpu_custom_call.1} parent=63 // pred_fallthru
          _
      $region64: #{tpu_custom_call.1} parent=5 // pred_fallthru
        _
      %p520 = scmp.le.s32.totalorder 1, %s30
      %p521 = scmp.lt.s32.totalorder %s30, 3
      %p522 = pnand %p520, %p521
      %p523 = pneg %p522
      // Predicated region
      $region81: #{tpu_custom_call.1} parent=5 // pred_check
        _
      $region82: #{tpu_custom_call.1} parent=5 // pred_check_branch
        %525 = sbr.rel (%p522) target = $region84
      $region83: #{tpu_custom_call.1} parent=5 // pred_region
        %s526 = ssub.s32 %s30, 1
        %p527 = scmp.lt.s32.totalorder %s35, 1
        %s528 = scalar_select %p527, %s35, 1
        %s529 = smul.addr %s528, 4
        %s530 = scalar_lea.vmem %s0, %s529
        %p531 = pneg %p56
        %p532 = pneg %p53
        %p533 = scmp.lt.s32.totalorder %s35, 1
        %s534 = scalar_select %p533, %s35, 1
        %s535 = smul.addr %s534, 4
        %s536 = scalar_lea.vmem %s1, %s535
        %p537 = pneg %p82
        %p538 = pneg %p79
        %p539 = scmp.lt.s32.totalorder %s35, 1
        %s540 = scalar_select %p539, %s35, 1
        %s541 = smul.addr %s540, 4
        %s542 = scalar_lea.vmem %s2, %s541
        %p543 = pneg %p108
        %p544 = pneg %p105
        %p545 = pneg %p129
        %p546 = pneg %p126
        %p547 = scmp.lt.s32.totalorder %s35, 1
        %s548 = scalar_select %p547, %s35, 1
        %s549 = scalar_lea.vmem %s4, %s548
        %p550 = pneg %p155
        %p551 = pneg %p152
        %p552 = pneg %p176
        %p553 = pneg %p173
        %p554 = pneg %p197
        %p555 = pneg %p194
        %p556 = pneg %p218
        %p557 = pneg %p215
        %p558 = pneg %p239
        %p559 = pneg %p236
        %p560 = pneg %p260
        %p561 = pneg %p257
        %p562 = pneg %p281
        %p563 = pneg %p278
        %p564 = pneg %p302
        %p565 = pneg %p299
        %p566 = pneg %p323
        %p567 = pneg %p320
        %p568 = pneg %p344
        %p569 = pneg %p341
        %p570 = pneg %p365
        %p571 = pneg %p362
        %p572 = pneg %p386
        %p573 = pneg %p383
        %p574 = pneg %p412
        %p575 = pneg %p409
        %s576 = sand.u32 %s399, 1
        %s577 = scalar_lea.sflag [#allocation3], %s576
        %s578 = sand.u32 %s399, 1
        %s579 = smul.addr %s578, 8
        %s580 = scalar_lea.vmem [#allocation2], %s579
        %p581 = pneg %p438
        %p582 = pneg %p435
        %s583 = sand.u32 %s425, 1
        %s584 = scalar_lea.sflag [#allocation5], %s583
        %s585 = sand.u32 %s425, 1
        %s586 = smul.addr %s585, 8
        %s587 = scalar_lea.vmem [#allocation4], %s586
        %p588 = scmp.lt.s32.totalorder %s35, 1
        %s589 = scalar_select %p588, %s35, 1
        %s590 = smul.addr %s589, 4
        %s591 = scalar_lea.vmem %s0, %s590
        %p592 = scmp.lt.s32.totalorder %s35, 1
        %s593 = scalar_select %p592, %s35, 1
        %s594 = smul.addr %s593, 4
        %s595 = scalar_lea.vmem %s1, %s594
        %p596 = scmp.lt.s32.totalorder %s35, 1
        %s597 = scalar_select %p596, %s35, 1
        %s598 = smul.addr %s597, 4
        %s599 = scalar_lea.vmem %s2, %s598
        %p600 = scmp.lt.s32.totalorder %s35, 1
        %s601 = scalar_select %p600, %s35, 1
        %s602 = scalar_lea.vmem %s4, %s601
        %v604 = vld [vmem:[%s591] sm:$0xf]
        %v605 = vld [vmem:[%s595] sm:$0xf]
        %v606 = vld [vmem:[%s599] sm:$0xf]
        %v607 = vld [vmem:[%s3] sm:$0xf]
        %v608 = vld [vmem:[%s3 + $0x4] sm:$0xf]
        %v609 = vld [vmem:[%s3 + $0x8] sm:$0xf]
        %v610 = vld [vmem:[%s3 + $0xc] sm:$0xf]
        %v611 = vld [vmem:[%s3 + $0x10] sm:$0xf]
        %v612 = vld [vmem:[%s3 + $0x14] sm:$0xf]
        %v613 = vld [vmem:[%s3 + $0x18] sm:$0xf]
        %v614 = vld [vmem:[%s3 + $0x1c] sm:$0xf]
        %v615 = vld [vmem:[%s3 + $0x20] sm:$0xf]
        %v616 = vld [vmem:[%s3 + $0x24] sm:$0xf]
        %v617 = vld [vmem:[%s3 + $0x28] sm:$0xf]
        %v618 = vld [vmem:[%s3 + $0x2c] sm:$0xf]
        %v619 = vld [vmem:[%s3 + $0x30] sm:$0xf]
        %v620 = vld [vmem:[%s3 + $0x34] sm:$0xf]
        %v621 = vld [vmem:[%s3 + $0x38] sm:$0xf]
        %v622 = vld [vmem:[%s3 + $0x3c] sm:$0xf]
        %v623 = vld [vmem:[%s5] sm:$0xf]
        %v624 = vld [vmem:[%s5 + $0x4] sm:$0xf]
        %v625 = vld [vmem:[%s5 + $0x8] sm:$0xf]
        %v626 = vld [vmem:[%s5 + $0xc] sm:$0xf]
        %v631 = vunpack.c.l.b16 %v623
        %v632 = vunpack.c.l.b16 %v624
        %v633 = vunpack.c.l.b16 %v625
        %v634 = vunpack.c.l.b16 %v626
        %v635 = vpack.c.b16 %v632, %v631
        %v636 = vpack.c.b16 %v634, %v633
        %vm639 = vcmask 261120
        %v641 = vsel %vm639, %v604, 0
        %643 = vmatprep.subr.bf16.mxu0 0
        %644 = vmatpush1.bf16.msra.mxu0 %v635
        %645 = vmatprep.subr.bf16.mxu0 0
        %646 = vmatpush1.bf16.msra.mxu0 %v636
        %647 = vmatprep.subr.bf16.mxu0 0
        %648 = vmatpush1.bf16.msra.mxu0 0
        %649 = vmatprep.subr.bf16.mxu0 0
        %650 = vmatpush1.bf16.msra.mxu0 0
        %651 = vmatprep.subr.bf16.mxu0 0
        %652 = vmatpush1.bf16.msra.mxu0 0
        %653 = vmatprep.subr.bf16.mxu0 0
        %654 = vmatpush1.bf16.msra.mxu0 0
        %655 = vmatprep.subr.bf16.mxu0 0
        %656 = vmatpush1.bf16.msra.mxu0 0
        %657 = vmatprep.subr.bf16.mxu0 0
        %658 = vmatpush1.bf16.msra.mxu0 0
        %659 = vmatprep.subr.bf16.mxu0 0
        %660 = vmatpush1.bf16.msra.mxu0 0
        %661 = vmatprep.subr.bf16.mxu0 0
        %662 = vmatpush1.bf16.msra.mxu0 0
        %663 = vmatprep.subr.bf16.mxu0 0
        %664 = vmatpush1.bf16.msra.mxu0 0
        %665 = vmatprep.subr.bf16.mxu0 0
        %666 = vmatpush1.bf16.msra.mxu0 0
        %667 = vmatprep.subr.bf16.mxu0 0
        %668 = vmatpush1.bf16.msra.mxu0 0
        %669 = vmatprep.subr.bf16.mxu0 0
        %670 = vmatpush1.bf16.msra.mxu0 0
        %671 = vmatprep.subr.bf16.mxu0 0
        %672 = vmatpush1.bf16.msra.mxu0 0
        %673 = vmatprep.subr.bf16.mxu0 0
        %674 = vmatpush1.bf16.msra.mxu0 0
        %675 = vmatprep.mubr.bf16.mxu0 0
        %676 = vmatmul.mubr.bf16.gmra.mrb[0].mxu0 %v641
        %v677 = vpop.f32.mrb[0].mxu0
        %v678 = vadd.f32 0.0, %v677
        %v679 = vpop.f32.mrb[0].mxu0
        %v680 = vpop.f32.mrb[0].mxu0
        %v681 = vpop.f32.mrb[0].mxu0
        %682 = vdwg.mxu0
        %s683 = scalar_lea.vmem %s5, 16
        %v684 = vld [vmem:[%s683] sm:$0xf]
        %v685 = vld [vmem:[%s683 + $0x4] sm:$0xf]
        %v686 = vld [vmem:[%s683 + $0x8] sm:$0xf]
        %v687 = vld [vmem:[%s683 + $0xc] sm:$0xf]
        %v692 = vunpack.c.l.b16 %v684
        %v693 = vunpack.c.l.b16 %v685
        %v694 = vunpack.c.l.b16 %v686
        %v695 = vunpack.c.l.b16 %v687
        %v696 = vpack.c.b16 %v693, %v692
        %v697 = vpack.c.b16 %v695, %v694
        %700 = vmatprep.subr.bf16.mxu0 0
        %701 = vmatpush1.bf16.msra.mxu0 %v696
        %702 = vmatprep.subr.bf16.mxu0 0
        %703 = vmatpush1.bf16.msra.mxu0 %v697
        %704 = vmatprep.subr.bf16.mxu0 0
        %705 = vmatpush1.bf16.msra.mxu0 0
        %706 = vmatprep.subr.bf16.mxu0 0
        %707 = vmatpush1.bf16.msra.mxu0 0
        %708 = vmatprep.subr.bf16.mxu0 0
        %709 = vmatpush1.bf16.msra.mxu0 0
        %710 = vmatprep.subr.bf16.mxu0 0
        %711 = vmatpush1.bf16.msra.mxu0 0
        %712 = vmatprep.subr.bf16.mxu0 0
        %713 = vmatpush1.bf16.msra.mxu0 0
        %714 = vmatprep.subr.bf16.mxu0 0
        %715 = vmatpush1.bf16.msra.mxu0 0
        %716 = vmatprep.subr.bf16.mxu0 0
        %717 = vmatpush1.bf16.msra.mxu0 0
        %718 = vmatprep.subr.bf16.mxu0 0
        %719 = vmatpush1.bf16.msra.mxu0 0
        %720 = vmatprep.subr.bf16.mxu0 0
        %721 = vmatpush1.bf16.msra.mxu0 0
        %722 = vmatprep.subr.bf16.mxu0 0
        %723 = vmatpush1.bf16.msra.mxu0 0
        %724 = vmatprep.subr.bf16.mxu0 0
        %725 = vmatpush1.bf16.msra.mxu0 0
        %726 = vmatprep.subr.bf16.mxu0 0
        %727 = vmatpush1.bf16.msra.mxu0 0
        %728 = vmatprep.subr.bf16.mxu0 0
        %729 = vmatpush1.bf16.msra.mxu0 0
        %730 = vmatprep.subr.bf16.mxu0 0
        %731 = vmatpush1.bf16.msra.mxu0 0
        %732 = vmatprep.mubr.bf16.mxu0 0
        %733 = vmatmul.mubr.bf16.gmra.mrb[0].mxu0 %v641
        %v734 = vpop.f32.mrb[0].mxu0
        %v735 = vadd.f32 0.0, %v734
        %v736 = vpop.f32.mrb[0].mxu0
        %v737 = vpop.f32.mrb[0].mxu0
        %v738 = vpop.f32.mrb[0].mxu0
        %739 = vdwg.mxu0
        %s740 = scalar_lea.vmem %s5, 32
        %v741 = vld [vmem:[%s740] sm:$0xf]
        %v742 = vld [vmem:[%s740 + $0x4] sm:$0xf]
        %v743 = vld [vmem:[%s740 + $0x8] sm:$0xf]
        %v744 = vld [vmem:[%s740 + $0xc] sm:$0xf]
        %v749 = vunpack.c.l.b16 %v741
        %v750 = vunpack.c.l.b16 %v742
        %v751 = vunpack.c.l.b16 %v743
        %v752 = vunpack.c.l.b16 %v744
        %v753 = vpack.c.b16 %v750, %v749
        %v754 = vpack.c.b16 %v752, %v751
        %757 = vmatprep.subr.bf16.mxu0 0
        %758 = vmatpush1.bf16.msra.mxu0 %v753
        %759 = vmatprep.subr.bf16.mxu0 0
        %760 = vmatpush1.bf16.msra.mxu0 %v754
        %761 = vmatprep.subr.bf16.mxu0 0
        %762 = vmatpush1.bf16.msra.mxu0 0
        %763 = vmatprep.subr.bf16.mxu0 0
        %764 = vmatpush1.bf16.msra.mxu0 0
        %765 = vmatprep.subr.bf16.mxu0 0
        %766 = vmatpush1.bf16.msra.mxu0 0
        %767 = vmatprep.subr.bf16.mxu0 0
        %768 = vmatpush1.bf16.msra.mxu0 0
        %769 = vmatprep.subr.bf16.mxu0 0
        %770 = vmatpush1.bf16.msra.mxu0 0
        %771 = vmatprep.subr.bf16.mxu0 0
        %772 = vmatpush1.bf16.msra.mxu0 0
        %773 = vmatprep.subr.bf16.mxu0 0
        %774 = vmatpush1.bf16.msra.mxu0 0
        %775 = vmatprep.subr.bf16.mxu0 0
        %776 = vmatpush1.bf16.msra.mxu0 0
        %777 = vmatprep.subr.bf16.mxu0 0
        %778 = vmatpush1.bf16.msra.mxu0 0
        %779 = vmatprep.subr.bf16.mxu0 0
        %780 = vmatpush1.bf16.msra.mxu0 0
        %781 = vmatprep.subr.bf16.mxu0 0
        %782 = vmatpush1.bf16.msra.mxu0 0
        %783 = vmatprep.subr.bf16.mxu0 0
        %784 = vmatpush1.bf16.msra.mxu0 0
        %785 = vmatprep.subr.bf16.mxu0 0
        %786 = vmatpush1.bf16.msra.mxu0 0
        %787 = vmatprep.subr.bf16.mxu0 0
        %788 = vmatpush1.bf16.msra.mxu0 0
        %789 = vmatprep.mubr.bf16.mxu0 0
        %790 = vmatmul.mubr.bf16.gmra.mrb[0].mxu0 %v641
        %v791 = vpop.f32.mrb[0].mxu0
        %v792 = vadd.f32 0.0, %v791
        %v793 = vpop.f32.mrb[0].mxu0
        %v794 = vpop.f32.mrb[0].mxu0
        %v795 = vpop.f32.mrb[0].mxu0
        %796 = vdwg.mxu0
        %s797 = scalar_lea.vmem %s5, 48
        %v798 = vld [vmem:[%s797] sm:$0xf]
        %v799 = vld [vmem:[%s797 + $0x4] sm:$0xf]
        %v800 = vld [vmem:[%s797 + $0x8] sm:$0xf]
        %v801 = vld [vmem:[%s797 + $0xc] sm:$0xf]
        %v806 = vunpack.c.l.b16 %v798
        %v807 = vunpack.c.l.b16 %v799
        %v808 = vunpack.c.l.b16 %v800
        %v809 = vunpack.c.l.b16 %v801
        %v810 = vpack.c.b16 %v807, %v806
        %v811 = vpack.c.b16 %v809, %v808
        %814 = vmatprep.subr.bf16.mxu0 0
        %815 = vmatpush1.bf16.msra.mxu0 %v810
        %816 = vmatprep.subr.bf16.mxu0 0
        %817 = vmatpush1.bf16.msra.mxu0 %v811
        %818 = vmatprep.subr.bf16.mxu0 0
        %819 = vmatpush1.bf16.msra.mxu0 0
        %820 = vmatprep.subr.bf16.mxu0 0
        %821 = vmatpush1.bf16.msra.mxu0 0
        %822 = vmatprep.subr.bf16.mxu0 0
        %823 = vmatpush1.bf16.msra.mxu0 0
        %824 = vmatprep.subr.bf16.mxu0 0
        %825 = vmatpush1.bf16.msra.mxu0 0
        %826 = vmatprep.subr.bf16.mxu0 0
        %827 = vmatpush1.bf16.msra.mxu0 0
        %828 = vmatprep.subr.bf16.mxu0 0
        %829 = vmatpush1.bf16.msra.mxu0 0
        %830 = vmatprep.subr.bf16.mxu0 0
        %831 = vmatpush1.bf16.msra.mxu0 0
        %832 = vmatprep.subr.bf16.mxu0 0
        %833 = vmatpush1.bf16.msra.mxu0 0
        %834 = vmatprep.subr.bf16.mxu0 0
        %835 = vmatpush1.bf16.msra.mxu0 0
        %836 = vmatprep.subr.bf16.mxu0 0
        %837 = vmatpush1.bf16.msra.mxu0 0
        %838 = vmatprep.subr.bf16.mxu0 0
        %839 = vmatpush1.bf16.msra.mxu0 0
        %840 = vmatprep.subr.bf16.mxu0 0
        %841 = vmatpush1.bf16.msra.mxu0 0
        %842 = vmatprep.subr.bf16.mxu0 0
        %843 = vmatpush1.bf16.msra.mxu0 0
        %844 = vmatprep.subr.bf16.mxu0 0
        %845 = vmatpush1.bf16.msra.mxu0 0
        %846 = vmatprep.mubr.bf16.mxu0 0
        %847 = vmatmul.mubr.bf16.gmra.mrb[0].mxu0 %v641
        %v848 = vpop.f32.mrb[0].mxu0
        %v849 = vadd.f32 0.0, %v848
        %v850 = vpop.f32.mrb[0].mxu0
        %v851 = vpop.f32.mrb[0].mxu0
        %v852 = vpop.f32.mrb[0].mxu0
        %853 = vdwg.mxu0
        %v854 = vld [vmem:[%s10] sm:$0x1]
        %v855 = vld [vmem:[%s10 + $0x1] sm:$0x1]
        %v856 = vld [vmem:[%s10 + $0x2] sm:$0x1]
        %v857 = vld [vmem:[%s10 + $0x3] sm:$0x1]
        %v862 = vlaneseq
        %v863 = vshrl.u32 %v862, 7
        %v864 = vsub.s32 0, %v863
        %v865 = vrot.slane %v854, %v864
        %v866 = vlaneseq
        %v867 = vshrl.u32 %v866, 7
        %v868 = vsub.s32 0, %v867
        %v869 = vrot.slane %v855, %v868
        %v870 = vlaneseq
        %v871 = vshrl.u32 %v870, 7
        %v872 = vsub.s32 0, %v871
        %v873 = vrot.slane %v856, %v872
        %v874 = vlaneseq
        %v875 = vshrl.u32 %v874, 7
        %v876 = vsub.s32 0, %v875
        %v877 = vrot.slane %v857, %v876
        %v882 = vadd.f32 %v678, %v865
        %v883 = vadd.f32 %v735, %v869
        %v884 = vadd.f32 %v792, %v873
        %v885 = vadd.f32 %v849, %v877
        %v886 = vld [vmem:[%s6] sm:$0xf]
        %v887 = vld [vmem:[%s6 + $0x4] sm:$0xf]
        %v888 = vld [vmem:[%s6 + $0x8] sm:$0xf]
        %v889 = vld [vmem:[%s6 + $0xc] sm:$0xf]
        %v894 = vunpack.c.l.b16 %v886
        %v895 = vunpack.c.l.b16 %v887
        %v896 = vunpack.c.l.b16 %v888
        %v897 = vunpack.c.l.b16 %v889
        %v898 = vpack.c.b16 %v895, %v894
        %v899 = vpack.c.b16 %v897, %v896
        %v903 = vsel %vm639, %v605, 0
        %905 = vmatprep.subr.bf16.mxu0 0
        %906 = vmatpush1.bf16.msra.mxu0 %v898
        %907 = vmatprep.subr.bf16.mxu0 0
        %908 = vmatpush1.bf16.msra.mxu0 %v899
        %909 = vmatprep.subr.bf16.mxu0 0
        %910 = vmatpush1.bf16.msra.mxu0 0
        %911 = vmatprep.subr.bf16.mxu0 0
        %912 = vmatpush1.bf16.msra.mxu0 0
        %913 = vmatprep.subr.bf16.mxu0 0
        %914 = vmatpush1.bf16.msra.mxu0 0
        %915 = vmatprep.subr.bf16.mxu0 0
        %916 = vmatpush1.bf16.msra.mxu0 0
        %917 = vmatprep.subr.bf16.mxu0 0
        %918 = vmatpush1.bf16.msra.mxu0 0
        %919 = vmatprep.subr.bf16.mxu0 0
        %920 = vmatpush1.bf16.msra.mxu0 0
        %921 = vmatprep.subr.bf16.mxu0 0
        %922 = vmatpush1.bf16.msra.mxu0 0
        %923 = vmatprep.subr.bf16.mxu0 0
        %924 = vmatpush1.bf16.msra.mxu0 0
        %925 = vmatprep.subr.bf16.mxu0 0
        %926 = vmatpush1.bf16.msra.mxu0 0
        %927 = vmatprep.subr.bf16.mxu0 0
        %928 = vmatpush1.bf16.msra.mxu0 0
        %929 = vmatprep.subr.bf16.mxu0 0
        %930 = vmatpush1.bf16.msra.mxu0 0
        %931 = vmatprep.subr.bf16.mxu0 0
        %932 = vmatpush1.bf16.msra.mxu0 0
        %933 = vmatprep.subr.bf16.mxu0 0
        %934 = vmatpush1.bf16.msra.mxu0 0
        %935 = vmatprep.subr.bf16.mxu0 0
        %936 = vmatpush1.bf16.msra.mxu0 0
        %937 = vmatprep.mubr.bf16.mxu0 0
        %938 = vmatmul.mubr.bf16.gmra.mrb[0].mxu0 %v903
        %v939 = vpop.f32.mrb[0].mxu0
        %v940 = vadd.f32 0.0, %v939
        %v941 = vpop.f32.mrb[0].mxu0
        %v942 = vpop.f32.mrb[0].mxu0
        %v943 = vpop.f32.mrb[0].mxu0
        %944 = vdwg.mxu0
        %s945 = scalar_lea.vmem %s6, 16
        %v946 = vld [vmem:[%s945] sm:$0xf]
        %v947 = vld [vmem:[%s945 + $0x4] sm:$0xf]
        %v948 = vld [vmem:[%s945 + $0x8] sm:$0xf]
        %v949 = vld [vmem:[%s945 + $0xc] sm:$0xf]
        %v954 = vunpack.c.l.b16 %v946
        %v955 = vunpack.c.l.b16 %v947
        %v956 = vunpack.c.l.b16 %v948
        %v957 = vunpack.c.l.b16 %v949
        %v958 = vpack.c.b16 %v955, %v954
        %v959 = vpack.c.b16 %v957, %v956
        %962 = vmatprep.subr.bf16.mxu0 0
        %963 = vmatpush1.bf16.msra.mxu0 %v958
        %964 = vmatprep.subr.bf16.mxu0 0
        %965 = vmatpush1.bf16.msra.mxu0 %v959
        %966 = vmatprep.subr.bf16.mxu0 0
        %967 = vmatpush1.bf16.msra.mxu0 0
        %968 = vmatprep.subr.bf16.mxu0 0
        %969 = vmatpush1.bf16.msra.mxu0 0
        %970 = vmatprep.subr.bf16.mxu0 0
        %971 = vmatpush1.bf16.msra.mxu0 0
        %972 = vmatprep.subr.bf16.mxu0 0
        %973 = vmatpush1.bf16.msra.mxu0 0
        %974 = vmatprep.subr.bf16.mxu0 0
        %975 = vmatpush1.bf16.msra.mxu0 0
        %976 = vmatprep.subr.bf16.mxu0 0
        %977 = vmatpush1.bf16.msra.mxu0 0
        %978 = vmatprep.subr.bf16.mxu0 0
        %979 = vmatpush1.bf16.msra.mxu0 0
        %980 = vmatprep.subr.bf16.mxu0 0
        %981 = vmatpush1.bf16.msra.mxu0 0
        %982 = vmatprep.subr.bf16.mxu0 0
        %983 = vmatpush1.bf16.msra.mxu0 0
        %984 = vmatprep.subr.bf16.mxu0 0
        %985 = vmatpush1.bf16.msra.mxu0 0
        %986 = vmatprep.subr.bf16.mxu0 0
        %987 = vmatpush1.bf16.msra.mxu0 0
        %988 = vmatprep.subr.bf16.mxu0 0
        %989 = vmatpush1.bf16.msra.mxu0 0
        %990 = vmatprep.subr.bf16.mxu0 0
        %991 = vmatpush1.bf16.msra.mxu0 0
        %992 = vmatprep.subr.bf16.mxu0 0
        %993 = vmatpush1.bf16.msra.mxu0 0
        %994 = vmatprep.mubr.bf16.mxu0 0
        %995 = vmatmul.mubr.bf16.gmra.mrb[0].mxu0 %v903
        %v996 = vpop.f32.mrb[0].mxu0
        %v997 = vadd.f32 0.0, %v996
        %v998 = vpop.f32.mrb[0].mxu0
        %v999 = vpop.f32.mrb[0].mxu0
        %v1000 = vpop.f32.mrb[0].mxu0
        %1001 = vdwg.mxu0
        %s1002 = scalar_lea.vmem %s6, 32
        %v1003 = vld [vmem:[%s1002] sm:$0xf]
        %v1004 = vld [vmem:[%s1002 + $0x4] sm:$0xf]
        %v1005 = vld [vmem:[%s1002 + $0x8] sm:$0xf]
        %v1006 = vld [vmem:[%s1002 + $0xc] sm:$0xf]
        %v1011 = vunpack.c.l.b16 %v1003
        %v1012 = vunpack.c.l.b16 %v1004
        %v1013 = vunpack.c.l.b16 %v1005
        %v1014 = vunpack.c.l.b16 %v1006
        %v1015 = vpack.c.b16 %v1012, %v1011
        %v1016 = vpack.c.b16 %v1014, %v1013
        %1019 = vmatprep.subr.bf16.mxu0 0
        %1020 = vmatpush1.bf16.msra.mxu0 %v1015
        %1021 = vmatprep.subr.bf16.mxu0 0
        %1022 = vmatpush1.bf16.msra.mxu0 %v1016
        %1023 = vmatprep.subr.bf16.mxu0 0
        %1024 = vmatpush1.bf16.msra.mxu0 0
        %1025 = vmatprep.subr.bf16.mxu0 0
        %1026 = vmatpush1.bf16.msra.mxu0 0
        %1027 = vmatprep.subr.bf16.mxu0 0
        %1028 = vmatpush1.bf16.msra.mxu0 0
        %1029 = vmatprep.subr.bf16.mxu0 0
        %1030 = vmatpush1.bf16.msra.mxu0 0
        %1031 = vmatprep.subr.bf16.mxu0 0
        %1032 = vmatpush1.bf16.msra.mxu0 0
        %1033 = vmatprep.subr.bf16.mxu0 0
        %1034 = vmatpush1.bf16.msra.mxu0 0
        %1035 = vmatprep.subr.bf16.mxu0 0
        %1036 = vmatpush1.bf16.msra.mxu0 0
        %1037 = vmatprep.subr.bf16.mxu0 0
        %1038 = vmatpush1.bf16.msra.mxu0 0
        %1039 = vmatprep.subr.bf16.mxu0 0
        %1040 = vmatpush1.bf16.msra.mxu0 0
        %1041 = vmatprep.subr.bf16.mxu0 0
        %1042 = vmatpush1.bf16.msra.mxu0 0
        %1043 = vmatprep.subr.bf16.mxu0 0
        %1044 = vmatpush1.bf16.msra.mxu0 0
        %1045 = vmatprep.subr.bf16.mxu0 0
        %1046 = vmatpush1.bf16.msra.mxu0 0
        %1047 = vmatprep.subr.bf16.mxu0 0
        %1048 = vmatpush1.bf16.msra.mxu0 0
        %1049 = vmatprep.subr.bf16.mxu0 0
        %1050 = vmatpush1.bf16.msra.mxu0 0
        %1051 = vmatprep.mubr.bf16.mxu0 0
        %1052 = vmatmul.mubr.bf16.gmra.mrb[0].mxu0 %v903
        %v1053 = vpop.f32.mrb[0].mxu0
        %v1054 = vadd.f32 0.0, %v1053
        %v1055 = vpop.f32.mrb[0].mxu0
        %v1056 = vpop.f32.mrb[0].mxu0
        %v1057 = vpop.f32.mrb[0].mxu0
        %1058 = vdwg.mxu0
        %s1059 = scalar_lea.vmem %s6, 48
        %v1060 = vld [vmem:[%s1059] sm:$0xf]
        %v1061 = vld [vmem:[%s1059 + $0x4] sm:$0xf]
        %v1062 = vld [vmem:[%s1059 + $0x8] sm:$0xf]
        %v1063 = vld [vmem:[%s1059 + $0xc] sm:$0xf]
        %v1068 = vunpack.c.l.b16 %v1060
        %v1069 = vunpack.c.l.b16 %v1061
        %v1070 = vunpack.c.l.b16 %v1062
        %v1071 = vunpack.c.l.b16 %v1063
        %v1072 = vpack.c.b16 %v1069, %v1068
        %v1073 = vpack.c.b16 %v1071, %v1070
        %1076 = vmatprep.subr.bf16.mxu0 0
        %1077 = vmatpush1.bf16.msra.mxu0 %v1072
        %1078 = vmatprep.subr.bf16.mxu0 0
        %1079 = vmatpush1.bf16.msra.mxu0 %v1073
        %1080 = vmatprep.subr.bf16.mxu0 0
        %1081 = vmatpush1.bf16.msra.mxu0 0
        %1082 = vmatprep.subr.bf16.mxu0 0
        %1083 = vmatpush1.bf16.msra.mxu0 0
        %1084 = vmatprep.subr.bf16.mxu0 0
        %1085 = vmatpush1.bf16.msra.mxu0 0
        %1086 = vmatprep.subr.bf16.mxu0 0
        %1087 = vmatpush1.bf16.msra.mxu0 0
        %1088 = vmatprep.subr.bf16.mxu0 0
        %1089 = vmatpush1.bf16.msra.mxu0 0
        %1090 = vmatprep.subr.bf16.mxu0 0
        %1091 = vmatpush1.bf16.msra.mxu0 0
        %1092 = vmatprep.subr.bf16.mxu0 0
        %1093 = vmatpush1.bf16.msra.mxu0 0
        %1094 = vmatprep.subr.bf16.mxu0 0
        %1095 = vmatpush1.bf16.msra.mxu0 0
        %1096 = vmatprep.subr.bf16.mxu0 0
        %1097 = vmatpush1.bf16.msra.mxu0 0
        %1098 = vmatprep.subr.bf16.mxu0 0
        %1099 = vmatpush1.bf16.msra.mxu0 0
        %1100 = vmatprep.subr.bf16.mxu0 0
        %1101 = vmatpush1.bf16.msra.mxu0 0
        %1102 = vmatprep.subr.bf16.mxu0 0
        %1103 = vmatpush1.bf16.msra.mxu0 0
        %1104 = vmatprep.subr.bf16.mxu0 0
        %1105 = vmatpush1.bf16.msra.mxu0 0
        %1106 = vmatprep.subr.bf16.mxu0 0
        %1107 = vmatpush1.bf16.msra.mxu0 0
        %1108 = vmatprep.mubr.bf16.mxu0 0
        %1109 = vmatmul.mubr.bf16.gmra.mrb[0].mxu0 %v903
        %v1110 = vpop.f32.mrb[0].mxu0
        %v1111 = vadd.f32 0.0, %v1110
        %v1112 = vpop.f32.mrb[0].mxu0
        %v1113 = vpop.f32.mrb[0].mxu0
        %v1114 = vpop.f32.mrb[0].mxu0
        %1115 = vdwg.mxu0
        %v1116 = vld [vmem:[%s11] sm:$0x1]
        %v1117 = vld [vmem:[%s11 + $0x1] sm:$0x1]
        %v1118 = vld [vmem:[%s11 + $0x2] sm:$0x1]
        %v1119 = vld [vmem:[%s11 + $0x3] sm:$0x1]
        %v1124 = vlaneseq
        %v1125 = vshrl.u32 %v1124, 7
        %v1126 = vsub.s32 0, %v1125
        %v1127 = vrot.slane %v1116, %v1126
        %v1128 = vlaneseq
        %v1129 = vshrl.u32 %v1128, 7
        %v1130 = vsub.s32 0, %v1129
        %v1131 = vrot.slane %v1117, %v1130
        %v1132 = vlaneseq
        %v1133 = vshrl.u32 %v1132, 7
        %v1134 = vsub.s32 0, %v1133
        %v1135 = vrot.slane %v1118, %v1134
        %v1136 = vlaneseq
        %v1137 = vshrl.u32 %v1136, 7
        %v1138 = vsub.s32 0, %v1137
        %v1139 = vrot.slane %v1119, %v1138
        %v1144 = vadd.f32 %v940, %v1127
        %v1145 = vadd.f32 %v997, %v1131
        %v1146 = vadd.f32 %v1054, %v1135
        %v1147 = vadd.f32 %v1111, %v1139
        %v1148 = vld [vmem:[%s7] sm:$0xf]
        %v1149 = vld [vmem:[%s7 + $0x4] sm:$0xf]
        %v1150 = vld [vmem:[%s7 + $0x8] sm:$0xf]
        %v1151 = vld [vmem:[%s7 + $0xc] sm:$0xf]
        %v1156 = vunpack.c.l.b16 %v1148
        %v1157 = vunpack.c.l.b16 %v1149
        %v1158 = vunpack.c.l.b16 %v1150
        %v1159 = vunpack.c.l.b16 %v1151
        %v1160 = vpack.c.b16 %v1157, %v1156
        %v1161 = vpack.c.b16 %v1159, %v1158
        %v1165 = vsel %vm639, %v606, 0
        %1167 = vmatprep.subr.bf16.mxu0 0
        %1168 = vmatpush1.bf16.msra.mxu0 %v1160
        %1169 = vmatprep.subr.bf16.mxu0 0
        %1170 = vmatpush1.bf16.msra.mxu0 %v1161
        %1171 = vmatprep.subr.bf16.mxu0 0
        %1172 = vmatpush1.bf16.msra.mxu0 0
        %1173 = vmatprep.subr.bf16.mxu0 0
        %1174 = vmatpush1.bf16.msra.mxu0 0
        %1175 = vmatprep.subr.bf16.mxu0 0
        %1176 = vmatpush1.bf16.msra.mxu0 0
        %1177 = vmatprep.subr.bf16.mxu0 0
        %1178 = vmatpush1.bf16.msra.mxu0 0
        %1179 = vmatprep.subr.bf16.mxu0 0
        %1180 = vmatpush1.bf16.msra.mxu0 0
        %1181 = vmatprep.subr.bf16.mxu0 0
        %1182 = vmatpush1.bf16.msra.mxu0 0
        %1183 = vmatprep.subr.bf16.mxu0 0
        %1184 = vmatpush1.bf16.msra.mxu0 0
        %1185 = vmatprep.subr.bf16.mxu0 0
        %1186 = vmatpush1.bf16.msra.mxu0 0
        %1187 = vmatprep.subr.bf16.mxu0 0
        %1188 = vmatpush1.bf16.msra.mxu0 0
        %1189 = vmatprep.subr.bf16.mxu0 0
        %1190 = vmatpush1.bf16.msra.mxu0 0
        %1191 = vmatprep.subr.bf16.mxu0 0
        %1192 = vmatpush1.bf16.msra.mxu0 0
        %1193 = vmatprep.subr.bf16.mxu0 0
        %1194 = vmatpush1.bf16.msra.mxu0 0
        %1195 = vmatprep.subr.bf16.mxu0 0
        %1196 = vmatpush1.bf16.msra.mxu0 0
        %1197 = vmatprep.subr.bf16.mxu0 0
        %1198 = vmatpush1.bf16.msra.mxu0 0
        %1199 = vmatprep.mubr.bf16.mxu0 0
        %1200 = vmatmul.mubr.bf16.gmra.mrb[0].mxu0 %v1165
        %v1201 = vpop.f32.mrb[0].mxu0
        %v1202 = vadd.f32 0.0, %v1201
        %v1203 = vpop.f32.mrb[0].mxu0
        %v1204 = vpop.f32.mrb[0].mxu0
        %v1205 = vpop.f32.mrb[0].mxu0
        %1206 = vdwg.mxu0
        %s1207 = scalar_lea.vmem %s7, 16
        %v1208 = vld [vmem:[%s1207] sm:$0xf]
        %v1209 = vld [vmem:[%s1207 + $0x4] sm:$0xf]
        %v1210 = vld [vmem:[%s1207 + $0x8] sm:$0xf]
        %v1211 = vld [vmem:[%s1207 + $0xc] sm:$0xf]
        %v1216 = vunpack.c.l.b16 %v1208
        %v1217 = vunpack.c.l.b16 %v1209
        %v1218 = vunpack.c.l.b16 %v1210
        %v1219 = vunpack.c.l.b16 %v1211
        %v1220 = vpack.c.b16 %v1217, %v1216
        %v1221 = vpack.c.b16 %v1219, %v1218
        %1224 = vmatprep.subr.bf16.mxu0 0
        %1225 = vmatpush1.bf16.msra.mxu0 %v1220
        %1226 = vmatprep.subr.bf16.mxu0 0
        %1227 = vmatpush1.bf16.msra.mxu0 %v1221
        %1228 = vmatprep.subr.bf16.mxu0 0
        %1229 = vmatpush1.bf16.msra.mxu0 0
        %1230 = vmatprep.subr.bf16.mxu0 0
        %1231 = vmatpush1.bf16.msra.mxu0 0
        %1232 = vmatprep.subr.bf16.mxu0 0
        %1233 = vmatpush1.bf16.msra.mxu0 0
        %1234 = vmatprep.subr.bf16.mxu0 0
        %1235 = vmatpush1.bf16.msra.mxu0 0
        %1236 = vmatprep.subr.bf16.mxu0 0
        %1237 = vmatpush1.bf16.msra.mxu0 0
        %1238 = vmatprep.subr.bf16.mxu0 0
        %1239 = vmatpush1.bf16.msra.mxu0 0
        %1240 = vmatprep.subr.bf16.mxu0 0
        %1241 = vmatpush1.bf16.msra.mxu0 0
        %1242 = vmatprep.subr.bf16.mxu0 0
        %1243 = vmatpush1.bf16.msra.mxu0 0
        %1244 = vmatprep.subr.bf16.mxu0 0
        %1245 = vmatpush1.bf16.msra.mxu0 0
        %1246 = vmatprep.subr.bf16.mxu0 0
        %1247 = vmatpush1.bf16.msra.mxu0 0
        %1248 = vmatprep.subr.bf16.mxu0 0
        %1249 = vmatpush1.bf16.msra.mxu0 0
        %1250 = vmatprep.subr.bf16.mxu0 0
        %1251 = vmatpush1.bf16.msra.mxu0 0
        %1252 = vmatprep.subr.bf16.mxu0 0
        %1253 = vmatpush1.bf16.msra.mxu0 0
        %1254 = vmatprep.subr.bf16.mxu0 0
        %1255 = vmatpush1.bf16.msra.mxu0 0
        %1256 = vmatprep.mubr.bf16.mxu0 0
        %1257 = vmatmul.mubr.bf16.gmra.mrb[0].mxu0 %v1165
        %v1258 = vpop.f32.mrb[0].mxu0
        %v1259 = vadd.f32 0.0, %v1258
        %v1260 = vpop.f32.mrb[0].mxu0
        %v1261 = vpop.f32.mrb[0].mxu0
        %v1262 = vpop.f32.mrb[0].mxu0
        %1263 = vdwg.mxu0
        %s1264 = scalar_lea.vmem %s7, 32
        %v1265 = vld [vmem:[%s1264] sm:$0xf]
        %v1266 = vld [vmem:[%s1264 + $0x4] sm:$0xf]
        %v1267 = vld [vmem:[%s1264 + $0x8] sm:$0xf]
        %v1268 = vld [vmem:[%s1264 + $0xc] sm:$0xf]
        %v1273 = vunpack.c.l.b16 %v1265
        %v1274 = vunpack.c.l.b16 %v1266
        %v1275 = vunpack.c.l.b16 %v1267
        %v1276 = vunpack.c.l.b16 %v1268
        %v1277 = vpack.c.b16 %v1274, %v1273
        %v1278 = vpack.c.b16 %v1276, %v1275
        %1281 = vmatprep.subr.bf16.mxu0 0
        %1282 = vmatpush1.bf16.msra.mxu0 %v1277
        %1283 = vmatprep.subr.bf16.mxu0 0
        %1284 = vmatpush1.bf16.msra.mxu0 %v1278
        %1285 = vmatprep.subr.bf16.mxu0 0
        %1286 = vmatpush1.bf16.msra.mxu0 0
        %1287 = vmatprep.subr.bf16.mxu0 0
        %1288 = vmatpush1.bf16.msra.mxu0 0
        %1289 = vmatprep.subr.bf16.mxu0 0
        %1290 = vmatpush1.bf16.msra.mxu0 0
        %1291 = vmatprep.subr.bf16.mxu0 0
        %1292 = vmatpush1.bf16.msra.mxu0 0
        %1293 = vmatprep.subr.bf16.mxu0 0
        %1294 = vmatpush1.bf16.msra.mxu0 0
        %1295 = vmatprep.subr.bf16.mxu0 0
        %1296 = vmatpush1.bf16.msra.mxu0 0
        %1297 = vmatprep.subr.bf16.mxu0 0
        %1298 = vmatpush1.bf16.msra.mxu0 0
        %1299 = vmatprep.subr.bf16.mxu0 0
        %1300 = vmatpush1.bf16.msra.mxu0 0
        %1301 = vmatprep.subr.bf16.mxu0 0
        %1302 = vmatpush1.bf16.msra.mxu0 0
        %1303 = vmatprep.subr.bf16.mxu0 0
        %1304 = vmatpush1.bf16.msra.mxu0 0
        %1305 = vmatprep.subr.bf16.mxu0 0
        %1306 = vmatpush1.bf16.msra.mxu0 0
        %1307 = vmatprep.subr.bf16.mxu0 0
        %1308 = vmatpush1.bf16.msra.mxu0 0
        %1309 = vmatprep.subr.bf16.mxu0 0
        %1310 = vmatpush1.bf16.msra.mxu0 0
        %1311 = vmatprep.subr.bf16.mxu0 0
        %1312 = vmatpush1.bf16.msra.mxu0 0
        %1313 = vmatprep.mubr.bf16.mxu0 0
        %1314 = vmatmul.mubr.bf16.gmra.mrb[0].mxu0 %v1165
        %v1315 = vpop.f32.mrb[0].mxu0
        %v1316 = vadd.f32 0.0, %v1315
        %v1317 = vpop.f32.mrb[0].mxu0
        %v1318 = vpop.f32.mrb[0].mxu0
        %v1319 = vpop.f32.mrb[0].mxu0
        %1320 = vdwg.mxu0
        %s1321 = scalar_lea.vmem %s7, 48
        %v1322 = vld [vmem:[%s1321] sm:$0xf]
        %v1323 = vld [vmem:[%s1321 + $0x4] sm:$0xf]
        %v1324 = vld [vmem:[%s1321 + $0x8] sm:$0xf]
        %v1325 = vld [vmem:[%s1321 + $0xc] sm:$0xf]
        %v1330 = vunpack.c.l.b16 %v1322
        %v1331 = vunpack.c.l.b16 %v1323
        %v1332 = vunpack.c.l.b16 %v1324
        %v1333 = vunpack.c.l.b16 %v1325
        %v1334 = vpack.c.b16 %v1331, %v1330
        %v1335 = vpack.c.b16 %v1333, %v1332
        %1338 = vmatprep.subr.bf16.mxu0 0
        %1339 = vmatpush1.bf16.msra.mxu0 %v1334
        %1340 = vmatprep.subr.bf16.mxu0 0
        %1341 = vmatpush1.bf16.msra.mxu0 %v1335
        %1342 = vmatprep.subr.bf16.mxu0 0
        %1343 = vmatpush1.bf16.msra.mxu0 0
        %1344 = vmatprep.subr.bf16.mxu0 0
        %1345 = vmatpush1.bf16.msra.mxu0 0
        %1346 = vmatprep.subr.bf16.mxu0 0
        %1347 = vmatpush1.bf16.msra.mxu0 0
        %1348 = vmatprep.subr.bf16.mxu0 0
        %1349 = vmatpush1.bf16.msra.mxu0 0
        %1350 = vmatprep.subr.bf16.mxu0 0
        %1351 = vmatpush1.bf16.msra.mxu0 0
        %1352 = vmatprep.subr.bf16.mxu0 0
        %1353 = vmatpush1.bf16.msra.mxu0 0
        %1354 = vmatprep.subr.bf16.mxu0 0
        %1355 = vmatpush1.bf16.msra.mxu0 0
        %1356 = vmatprep.subr.bf16.mxu0 0
        %1357 = vmatpush1.bf16.msra.mxu0 0
        %1358 = vmatprep.subr.bf16.mxu0 0
        %1359 = vmatpush1.bf16.msra.mxu0 0
        %1360 = vmatprep.subr.bf16.mxu0 0
        %1361 = vmatpush1.bf16.msra.mxu0 0
        %1362 = vmatprep.subr.bf16.mxu0 0
        %1363 = vmatpush1.bf16.msra.mxu0 0
        %1364 = vmatprep.subr.bf16.mxu0 0
        %1365 = vmatpush1.bf16.msra.mxu0 0
        %1366 = vmatprep.subr.bf16.mxu0 0
        %1367 = vmatpush1.bf16.msra.mxu0 0
        %1368 = vmatprep.subr.bf16.mxu0 0
        %1369 = vmatpush1.bf16.msra.mxu0 0
        %1370 = vmatprep.mubr.bf16.mxu0 0
        %1371 = vmatmul.mubr.bf16.gmra.mrb[0].mxu0 %v1165
        %v1372 = vpop.f32.mrb[0].mxu0
        %v1373 = vadd.f32 0.0, %v1372
        %v1374 = vpop.f32.mrb[0].mxu0
        %v1375 = vpop.f32.mrb[0].mxu0
        %v1376 = vpop.f32.mrb[0].mxu0
        %1377 = vdwg.mxu0
        %v1378 = vld [vmem:[%s12] sm:$0x1]
        %v1379 = vld [vmem:[%s12 + $0x1] sm:$0x1]
        %v1380 = vld [vmem:[%s12 + $0x2] sm:$0x1]
        %v1381 = vld [vmem:[%s12 + $0x3] sm:$0x1]
        %v1386 = vlaneseq
        %v1387 = vshrl.u32 %v1386, 7
        %v1388 = vsub.s32 0, %v1387
        %v1389 = vrot.slane %v1378, %v1388
        %v1390 = vlaneseq
        %v1391 = vshrl.u32 %v1390, 7
        %v1392 = vsub.s32 0, %v1391
        %v1393 = vrot.slane %v1379, %v1392
        %v1394 = vlaneseq
        %v1395 = vshrl.u32 %v1394, 7
        %v1396 = vsub.s32 0, %v1395
        %v1397 = vrot.slane %v1380, %v1396
        %v1398 = vlaneseq
        %v1399 = vshrl.u32 %v1398, 7
        %v1400 = vsub.s32 0, %v1399
        %v1401 = vrot.slane %v1381, %v1400
        %v1406 = vadd.f32 %v1202, %v1389
        %v1407 = vadd.f32 %v1259, %v1393
        %v1408 = vadd.f32 %v1316, %v1397
        %v1409 = vadd.f32 %v1373, %v1401
        %v1410 = vld [vmem:[%s8] sm:$0xf]
        %v1411 = vld [vmem:[%s8 + $0x4] sm:$0xf]
        %v1412 = vld [vmem:[%s8 + $0x8] sm:$0xf]
        %v1413 = vld [vmem:[%s8 + $0xc] sm:$0xf]
        %v1430 = vunpack.c.l.b16 %v607
        %v1431 = vunpack.c.l.b16 %v608
        %v1432 = vunpack.c.l.b16 %v609
        %v1433 = vunpack.c.l.b16 %v610
        %v1434 = vunpack.c.l.b16 %v611
        %v1435 = vunpack.c.l.b16 %v612
        %v1436 = vunpack.c.l.b16 %v613
        %v1437 = vunpack.c.l.b16 %v614
        %v1438 = vunpack.c.l.b16 %v615
        %v1439 = vunpack.c.l.b16 %v616
        %v1440 = vunpack.c.l.b16 %v617
        %v1441 = vunpack.c.l.b16 %v618
        %v1442 = vunpack.c.l.b16 %v619
        %v1443 = vunpack.c.l.b16 %v620
        %v1444 = vunpack.c.l.b16 %v621
        %v1445 = vunpack.c.l.b16 %v622
        %v1446 = vpack.c.b16 %v1431, %v1430
        %v1447 = vpack.c.b16 %v1433, %v1432
        %v1448 = vpack.c.b16 %v1435, %v1434
        %v1449 = vpack.c.b16 %v1437, %v1436
        %v1450 = vpack.c.b16 %v1439, %v1438
        %v1451 = vpack.c.b16 %v1441, %v1440
        %v1452 = vpack.c.b16 %v1443, %v1442
        %v1453 = vpack.c.b16 %v1445, %v1444
        %v1458 = vunpack.c.l.b16 %v1410
        %v1459 = vunpack.c.l.b16 %v1411
        %v1460 = vunpack.c.l.b16 %v1412
        %v1461 = vunpack.c.l.b16 %v1413
        %v1462 = vpack.c.b16 %v1459, %v1458
        %v1463 = vpack.c.b16 %v1461, %v1460
        %v1467 = vsel %vm639, %v1446, 0
        %v1470 = vsel %vm639, %v1447, 0
        %v1473 = vsel %vm639, %v1448, 0
        %v1476 = vsel %vm639, %v1449, 0
        %v1479 = vsel %vm639, %v1450, 0
        %v1482 = vsel %vm639, %v1451, 0
        %v1485 = vsel %vm639, %v1452, 0
        %v1488 = vsel %vm639, %v1453, 0
        %1490 = vmatprep.subr.bf16.mxu0 0
        %1491 = vmatpush1.bf16.msra.mxu0 %v1462
        %1492 = vmatprep.subr.bf16.mxu0 0
        %1493 = vmatpush1.bf16.msra.mxu0 %v1463
        %1494 = vmatprep.subr.bf16.mxu0 0
        %1495 = vmatpush1.bf16.msra.mxu0 0
        %1496 = vmatprep.subr.bf16.mxu0 0
        %1497 = vmatpush1.bf16.msra.mxu0 0
        %1498 = vmatprep.subr.bf16.mxu0 0
        %1499 = vmatpush1.bf16.msra.mxu0 0
        %1500 = vmatprep.subr.bf16.mxu0 0
        %1501 = vmatpush1.bf16.msra.mxu0 0
        %1502 = vmatprep.subr.bf16.mxu0 0
        %1503 = vmatpush1.bf16.msra.mxu0 0
        %1504 = vmatprep.subr.bf16.mxu0 0
        %1505 = vmatpush1.bf16.msra.mxu0 0
        %1506 = vmatprep.subr.bf16.mxu0 0
        %1507 = vmatpush1.bf16.msra.mxu0 0
        %1508 = vmatprep.subr.bf16.mxu0 0
        %1509 = vmatpush1.bf16.msra.mxu0 0
        %1510 = vmatprep.subr.bf16.mxu0 0
        %1511 = vmatpush1.bf16.msra.mxu0 0
        %1512 = vmatprep.subr.bf16.mxu0 0
        %1513 = vmatpush1.bf16.msra.mxu0 0
        %1514 = vmatprep.subr.bf16.mxu0 0
        %1515 = vmatpush1.bf16.msra.mxu0 0
        %1516 = vmatprep.subr.bf16.mxu0 0
        %1517 = vmatpush1.bf16.msra.mxu0 0
        %1518 = vmatprep.subr.bf16.mxu0 0
        %1519 = vmatpush1.bf16.msra.mxu0 0
        %1520 = vmatprep.subr.bf16.mxu0 0
        %1521 = vmatpush1.bf16.msra.mxu0 0
        %1522 = vmatprep.mubr.bf16.mxu0 0
        %1523 = vmatmul.mubr.bf16.gmra.mrb[0].mxu0 %v1467
        %v1524 = vpop.f32.mrb[0].mxu0
        %v1525 = vadd.f32 0.0, %v1524
        %v1526 = vpop.f32.mrb[0].mxu0
        %v1527 = vpop.f32.mrb[0].mxu0
        %v1528 = vadd.f32 0.0, %v1527
        %v1529 = vpop.f32.mrb[0].mxu0
        %1530 = vmatprep.mubr.bf16.mxu0 0
        %1531 = vmatmul.mubr.bf16.gmra.mrb[0].mxu0 %v1470
        %v1532 = vpop.f32.mrb[0].mxu0
        %v1533 = vadd.f32 0.0, %v1532
        %v1534 = vpop.f32.mrb[0].mxu0
        %v1535 = vpop.f32.mrb[0].mxu0
        %v1536 = vadd.f32 0.0, %v1535
        %v1537 = vpop.f32.mrb[0].mxu0
        %1538 = vmatprep.mubr.bf16.mxu0 0
        %1539 = vmatmul.mubr.bf16.gmra.mrb[0].mxu0 %v1473
        %v1540 = vpop.f32.mrb[0].mxu0
        %v1541 = vadd.f32 0.0, %v1540
        %v1542 = vpop.f32.mrb[0].mxu0
        %v1543 = vpop.f32.mrb[0].mxu0
        %v1544 = vadd.f32 0.0, %v1543
        %v1545 = vpop.f32.mrb[0].mxu0
        %1546 = vmatprep.mubr.bf16.mxu0 0
        %1547 = vmatmul.mubr.bf16.gmra.mrb[0].mxu0 %v1476
        %v1548 = vpop.f32.mrb[0].mxu0
        %v1549 = vadd.f32 0.0, %v1548
        %v1550 = vpop.f32.mrb[0].mxu0
        %v1551 = vpop.f32.mrb[0].mxu0
        %v1552 = vadd.f32 0.0, %v1551
        %v1553 = vpop.f32.mrb[0].mxu0
        %1554 = vmatprep.mubr.bf16.mxu0 0
        %1555 = vmatmul.mubr.bf16.gmra.mrb[0].mxu0 %v1479
        %v1556 = vpop.f32.mrb[0].mxu0
        %v1557 = vadd.f32 0.0, %v1556
        %v1558 = vpop.f32.mrb[0].mxu0
        %v1559 = vpop.f32.mrb[0].mxu0
        %v1560 = vadd.f32 0.0, %v1559
        %v1561 = vpop.f32.mrb[0].mxu0
        %1562 = vmatprep.mubr.bf16.mxu0 0
        %1563 = vmatmul.mubr.bf16.gmra.mrb[0].mxu0 %v1482
        %v1564 = vpop.f32.mrb[0].mxu0
        %v1565 = vadd.f32 0.0, %v1564
        %v1566 = vpop.f32.mrb[0].mxu0
        %v1567 = vpop.f32.mrb[0].mxu0
        %v1568 = vadd.f32 0.0, %v1567
        %v1569 = vpop.f32.mrb[0].mxu0
        %1570 = vmatprep.mubr.bf16.mxu0 0
        %1571 = vmatmul.mubr.bf16.gmra.mrb[0].mxu0 %v1485
        %v1572 = vpop.f32.mrb[0].mxu0
        %v1573 = vadd.f32 0.0, %v1572
        %v1574 = vpop.f32.mrb[0].mxu0
        %v1575 = vpop.f32.mrb[0].mxu0
        %v1576 = vadd.f32 0.0, %v1575
        %v1577 = vpop.f32.mrb[0].mxu0
        %1578 = vmatprep.mubr.bf16.mxu0 0
        %1579 = vmatmul.mubr.bf16.gmra.mrb[0].mxu0 %v1488
        %v1580 = vpop.f32.mrb[0].mxu0
        %v1581 = vadd.f32 0.0, %v1580
        %v1582 = vpop.f32.mrb[0].mxu0
        %v1583 = vpop.f32.mrb[0].mxu0
        %v1584 = vadd.f32 0.0, %v1583
        %v1585 = vpop.f32.mrb[0].mxu0
        %1586 = vdwg.mxu0
        %s1587 = scalar_lea.vmem %s8, 16
        %v1588 = vld [vmem:[%s1587] sm:$0xf]
        %v1589 = vld [vmem:[%s1587 + $0x4] sm:$0xf]
        %v1590 = vld [vmem:[%s1587 + $0x8] sm:$0xf]
        %v1591 = vld [vmem:[%s1587 + $0xc] sm:$0xf]
        %v1596 = vunpack.c.l.b16 %v1588
        %v1597 = vunpack.c.l.b16 %v1589
        %v1598 = vunpack.c.l.b16 %v1590
        %v1599 = vunpack.c.l.b16 %v1591
        %v1600 = vpack.c.b16 %v1597, %v1596
        %v1601 = vpack.c.b16 %v1599, %v1598
        %1604 = vmatprep.subr.bf16.mxu0 0
        %1605 = vmatpush1.bf16.msra.mxu0 %v1600
        %1606 = vmatprep.subr.bf16.mxu0 0
        %1607 = vmatpush1.bf16.msra.mxu0 %v1601
        %1608 = vmatprep.subr.bf16.mxu0 0
        %1609 = vmatpush1.bf16.msra.mxu0 0
        %1610 = vmatprep.subr.bf16.mxu0 0
        %1611 = vmatpush1.bf16.msra.mxu0 0
        %1612 = vmatprep.subr.bf16.mxu0 0
        %1613 = vmatpush1.bf16.msra.mxu0 0
        %1614 = vmatprep.subr.bf16.mxu0 0
        %1615 = vmatpush1.bf16.msra.mxu0 0
        %1616 = vmatprep.subr.bf16.mxu0 0
        %1617 = vmatpush1.bf16.msra.mxu0 0
        %1618 = vmatprep.subr.bf16.mxu0 0
        %1619 = vmatpush1.bf16.msra.mxu0 0
        %1620 = vmatprep.subr.bf16.mxu0 0
        %1621 = vmatpush1.bf16.msra.mxu0 0
        %1622 = vmatprep.subr.bf16.mxu0 0
        %1623 = vmatpush1.bf16.msra.mxu0 0
        %1624 = vmatprep.subr.bf16.mxu0 0
        %1625 = vmatpush1.bf16.msra.mxu0 0
        %1626 = vmatprep.subr.bf16.mxu0 0
        %1627 = vmatpush1.bf16.msra.mxu0 0
        %1628 = vmatprep.subr.bf16.mxu0 0
        %1629 = vmatpush1.bf16.msra.mxu0 0
        %1630 = vmatprep.subr.bf16.mxu0 0
        %1631 = vmatpush1.bf16.msra.mxu0 0
        %1632 = vmatprep.subr.bf16.mxu0 0
        %1633 = vmatpush1.bf16.msra.mxu0 0
        %1634 = vmatprep.subr.bf16.mxu0 0
        %1635 = vmatpush1.bf16.msra.mxu0 0
        %1636 = vmatprep.mubr.bf16.mxu0 0
        %1637 = vmatmul.mubr.bf16.gmra.mrb[0].mxu0 %v1467
        %v1638 = vpop.f32.mrb[0].mxu0
        %v1639 = vadd.f32 0.0, %v1638
        %v1640 = vpop.f32.mrb[0].mxu0
        %v1641 = vpop.f32.mrb[0].mxu0
        %v1642 = vadd.f32 0.0, %v1641
        %v1643 = vpop.f32.mrb[0].mxu0
        %1644 = vmatprep.mubr.bf16.mxu0 0
        %1645 = vmatmul.mubr.bf16.gmra.mrb[0].mxu0 %v1470
        %v1646 = vpop.f32.mrb[0].mxu0
        %v1647 = vadd.f32 0.0, %v1646
        %v1648 = vpop.f32.mrb[0].mxu0
        %v1649 = vpop.f32.mrb[0].mxu0
        %v1650 = vadd.f32 0.0, %v1649
        %v1651 = vpop.f32.mrb[0].mxu0
        %1652 = vmatprep.mubr.bf16.mxu0 0
        %1653 = vmatmul.mubr.bf16.gmra.mrb[0].mxu0 %v1473
        %v1654 = vpop.f32.mrb[0].mxu0
        %v1655 = vadd.f32 0.0, %v1654
        %v1656 = vpop.f32.mrb[0].mxu0
        %v1657 = vpop.f32.mrb[0].mxu0
        %v1658 = vadd.f32 0.0, %v1657
        %v1659 = vpop.f32.mrb[0].mxu0
        %1660 = vmatprep.mubr.bf16.mxu0 0
        %1661 = vmatmul.mubr.bf16.gmra.mrb[0].mxu0 %v1476
        %v1662 = vpop.f32.mrb[0].mxu0
        %v1663 = vadd.f32 0.0, %v1662
        %v1664 = vpop.f32.mrb[0].mxu0
        %v1665 = vpop.f32.mrb[0].mxu0
        %v1666 = vadd.f32 0.0, %v1665
        %v1667 = vpop.f32.mrb[0].mxu0
        %1668 = vmatprep.mubr.bf16.mxu0 0
        %1669 = vmatmul.mubr.bf16.gmra.mrb[0].mxu0 %v1479
        %v1670 = vpop.f32.mrb[0].mxu0
        %v1671 = vadd.f32 0.0, %v1670
        %v1672 = vpop.f32.mrb[0].mxu0
        %v1673 = vpop.f32.mrb[0].mxu0
        %v1674 = vadd.f32 0.0, %v1673
        %v1675 = vpop.f32.mrb[0].mxu0
        %1676 = vmatprep.mubr.bf16.mxu0 0
        %1677 = vmatmul.mubr.bf16.gmra.mrb[0].mxu0 %v1482
        %v1678 = vpop.f32.mrb[0].mxu0
        %v1679 = vadd.f32 0.0, %v1678
        %v1680 = vpop.f32.mrb[0].mxu0
        %v1681 = vpop.f32.mrb[0].mxu0
        %v1682 = vadd.f32 0.0, %v1681
        %v1683 = vpop.f32.mrb[0].mxu0
        %1684 = vmatprep.mubr.bf16.mxu0 0
        %1685 = vmatmul.mubr.bf16.gmra.mrb[0].mxu0 %v1485
        %v1686 = vpop.f32.mrb[0].mxu0
        %v1687 = vadd.f32 0.0, %v1686
        %v1688 = vpop.f32.mrb[0].mxu0
        %v1689 = vpop.f32.mrb[0].mxu0
        %v1690 = vadd.f32 0.0, %v1689
        %v1691 = vpop.f32.mrb[0].mxu0
        %1692 = vmatprep.mubr.bf16.mxu0 0
        %1693 = vmatmul.mubr.bf16.gmra.mrb[0].mxu0 %v1488
        %v1694 = vpop.f32.mrb[0].mxu0
        %v1695 = vadd.f32 0.0, %v1694
        %v1696 = vpop.f32.mrb[0].mxu0
        %v1697 = vpop.f32.mrb[0].mxu0
        %v1698 = vadd.f32 0.0, %v1697
        %v1699 = vpop.f32.mrb[0].mxu0
        %1700 = vdwg.mxu0
        %s1701 = scalar_lea.vmem %s8, 32
        %v1702 = vld [vmem:[%s1701] sm:$0xf]
        %v1703 = vld [vmem:[%s1701 + $0x4] sm:$0xf]
        %v1704 = vld [vmem:[%s1701 + $0x8] sm:$0xf]
        %v1705 = vld [vmem:[%s1701 + $0xc] sm:$0xf]
        %v1710 = vunpack.c.l.b16 %v1702
        %v1711 = vunpack.c.l.b16 %v1703
        %v1712 = vunpack.c.l.b16 %v1704
        %v1713 = vunpack.c.l.b16 %v1705
        %v1714 = vpack.c.b16 %v1711, %v1710
        %v1715 = vpack.c.b16 %v1713, %v1712
        %1718 = vmatprep.subr.bf16.mxu0 0
        %1719 = vmatpush1.bf16.msra.mxu0 %v1714
        %1720 = vmatprep.subr.bf16.mxu0 0
        %1721 = vmatpush1.bf16.msra.mxu0 %v1715
        %1722 = vmatprep.subr.bf16.mxu0 0
        %1723 = vmatpush1.bf16.msra.mxu0 0
        %1724 = vmatprep.subr.bf16.mxu0 0
        %1725 = vmatpush1.bf16.msra.mxu0 0
        %1726 = vmatprep.subr.bf16.mxu0 0
        %1727 = vmatpush1.bf16.msra.mxu0 0
        %1728 = vmatprep.subr.bf16.mxu0 0
        %1729 = vmatpush1.bf16.msra.mxu0 0
        %1730 = vmatprep.subr.bf16.mxu0 0
        %1731 = vmatpush1.bf16.msra.mxu0 0
        %1732 = vmatprep.subr.bf16.mxu0 0
        %1733 = vmatpush1.bf16.msra.mxu0 0
        %1734 = vmatprep.subr.bf16.mxu0 0
        %1735 = vmatpush1.bf16.msra.mxu0 0
        %1736 = vmatprep.subr.bf16.mxu0 0
        %1737 = vmatpush1.bf16.msra.mxu0 0
        %1738 = vmatprep.subr.bf16.mxu0 0
        %1739 = vmatpush1.bf16.msra.mxu0 0
        %1740 = vmatprep.subr.bf16.mxu0 0
        %1741 = vmatpush1.bf16.msra.mxu0 0
        %1742 = vmatprep.subr.bf16.mxu0 0
        %1743 = vmatpush1.bf16.msra.mxu0 0
        %1744 = vmatprep.subr.bf16.mxu0 0
        %1745 = vmatpush1.bf16.msra.mxu0 0
        %1746 = vmatprep.subr.bf16.mxu0 0
        %1747 = vmatpush1.bf16.msra.mxu0 0
        %1748 = vmatprep.subr.bf16.mxu0 0
        %1749 = vmatpush1.bf16.msra.mxu0 0
        %1750 = vmatprep.mubr.bf16.mxu0 0
        %1751 = vmatmul.mubr.bf16.gmra.mrb[0].mxu0 %v1467
        %v1752 = vpop.f32.mrb[0].mxu0
        %v1753 = vadd.f32 0.0, %v1752
        %v1754 = vpop.f32.mrb[0].mxu0
        %v1755 = vpop.f32.mrb[0].mxu0
        %v1756 = vadd.f32 0.0, %v1755
        %v1757 = vpop.f32.mrb[0].mxu0
        %1758 = vmatprep.mubr.bf16.mxu0 0
        %1759 = vmatmul.mubr.bf16.gmra.mrb[0].mxu0 %v1470
        %v1760 = vpop.f32.mrb[0].mxu0
        %v1761 = vadd.f32 0.0, %v1760
        %v1762 = vpop.f32.mrb[0].mxu0
        %v1763 = vpop.f32.mrb[0].mxu0
        %v1764 = vadd.f32 0.0, %v1763
        %v1765 = vpop.f32.mrb[0].mxu0
        %1766 = vmatprep.mubr.bf16.mxu0 0
        %1767 = vmatmul.mubr.bf16.gmra.mrb[0].mxu0 %v1473
        %v1768 = vpop.f32.mrb[0].mxu0
        %v1769 = vadd.f32 0.0, %v1768
        %v1770 = vpop.f32.mrb[0].mxu0
        %v1771 = vpop.f32.mrb[0].mxu0
        %v1772 = vadd.f32 0.0, %v1771
        %v1773 = vpop.f32.mrb[0].mxu0
        %1774 = vmatprep.mubr.bf16.mxu0 0
        %1775 = vmatmul.mubr.bf16.gmra.mrb[0].mxu0 %v1476
        %v1776 = vpop.f32.mrb[0].mxu0
        %v1777 = vadd.f32 0.0, %v1776
        %v1778 = vpop.f32.mrb[0].mxu0
        %v1779 = vpop.f32.mrb[0].mxu0
        %v1780 = vadd.f32 0.0, %v1779
        %v1781 = vpop.f32.mrb[0].mxu0
        %1782 = vmatprep.mubr.bf16.mxu0 0
        %1783 = vmatmul.mubr.bf16.gmra.mrb[0].mxu0 %v1479
        %v1784 = vpop.f32.mrb[0].mxu0
        %v1785 = vadd.f32 0.0, %v1784
        %v1786 = vpop.f32.mrb[0].mxu0
        %v1787 = vpop.f32.mrb[0].mxu0
        %v1788 = vadd.f32 0.0, %v1787
        %v1789 = vpop.f32.mrb[0].mxu0
        %1790 = vmatprep.mubr.bf16.mxu0 0
        %1791 = vmatmul.mubr.bf16.gmra.mrb[0].mxu0 %v1482
        %v1792 = vpop.f32.mrb[0].mxu0
        %v1793 = vadd.f32 0.0, %v1792
        %v1794 = vpop.f32.mrb[0].mxu0
        %v1795 = vpop.f32.mrb[0].mxu0
        %v1796 = vadd.f32 0.0, %v1795
        %v1797 = vpop.f32.mrb[0].mxu0
        %1798 = vmatprep.mubr.bf16.mxu0 0
        %1799 = vmatmul.mubr.bf16.gmra.mrb[0].mxu0 %v1485
        %v1800 = vpop.f32.mrb[0].mxu0
        %v1801 = vadd.f32 0.0, %v1800
        %v1802 = vpop.f32.mrb[0].mxu0
        %v1803 = vpop.f32.mrb[0].mxu0
        %v1804 = vadd.f32 0.0, %v1803
        %v1805 = vpop.f32.mrb[0].mxu0
        %1806 = vmatprep.mubr.bf16.mxu0 0
        %1807 = vmatmul.mubr.bf16.gmra.mrb[0].mxu0 %v1488
        %v1808 = vpop.f32.mrb[0].mxu0
        %v1809 = vadd.f32 0.0, %v1808
        %v1810 = vpop.f32.mrb[0].mxu0
        %v1811 = vpop.f32.mrb[0].mxu0
        %v1812 = vadd.f32 0.0, %v1811
        %v1813 = vpop.f32.mrb[0].mxu0
        %1814 = vdwg.mxu0
        %s1815 = scalar_lea.vmem %s8, 48
        %v1816 = vld [vmem:[%s1815] sm:$0xf]
        %v1817 = vld [vmem:[%s1815 + $0x4] sm:$0xf]
        %v1818 = vld [vmem:[%s1815 + $0x8] sm:$0xf]
        %v1819 = vld [vmem:[%s1815 + $0xc] sm:$0xf]
        %v1824 = vunpack.c.l.b16 %v1816
        %v1825 = vunpack.c.l.b16 %v1817
        %v1826 = vunpack.c.l.b16 %v1818
        %v1827 = vunpack.c.l.b16 %v1819
        %v1828 = vpack.c.b16 %v1825, %v1824
        %v1829 = vpack.c.b16 %v1827, %v1826
        %1832 = vmatprep.subr.bf16.mxu0 0
        %1833 = vmatpush1.bf16.msra.mxu0 %v1828
        %1834 = vmatprep.subr.bf16.mxu0 0
        %1835 = vmatpush1.bf16.msra.mxu0 %v1829
        %1836 = vmatprep.subr.bf16.mxu0 0
        %1837 = vmatpush1.bf16.msra.mxu0 0
        %1838 = vmatprep.subr.bf16.mxu0 0
        %1839 = vmatpush1.bf16.msra.mxu0 0
        %1840 = vmatprep.subr.bf16.mxu0 0
        %1841 = vmatpush1.bf16.msra.mxu0 0
        %1842 = vmatprep.subr.bf16.mxu0 0
        %1843 = vmatpush1.bf16.msra.mxu0 0
        %1844 = vmatprep.subr.bf16.mxu0 0
        %1845 = vmatpush1.bf16.msra.mxu0 0
        %1846 = vmatprep.subr.bf16.mxu0 0
        %1847 = vmatpush1.bf16.msra.mxu0 0
        %1848 = vmatprep.subr.bf16.mxu0 0
        %1849 = vmatpush1.bf16.msra.mxu0 0
        %1850 = vmatprep.subr.bf16.mxu0 0
        %1851 = vmatpush1.bf16.msra.mxu0 0
        %1852 = vmatprep.subr.bf16.mxu0 0
        %1853 = vmatpush1.bf16.msra.mxu0 0
        %1854 = vmatprep.subr.bf16.mxu0 0
        %1855 = vmatpush1.bf16.msra.mxu0 0
        %1856 = vmatprep.subr.bf16.mxu0 0
        %1857 = vmatpush1.bf16.msra.mxu0 0
        %1858 = vmatprep.subr.bf16.mxu0 0
        %1859 = vmatpush1.bf16.msra.mxu0 0
        %1860 = vmatprep.subr.bf16.mxu0 0
        %1861 = vmatpush1.bf16.msra.mxu0 0
        %1862 = vmatprep.subr.bf16.mxu0 0
        %1863 = vmatpush1.bf16.msra.mxu0 0
        %1864 = vmatprep.mubr.bf16.mxu0 0
        %1865 = vmatmul.mubr.bf16.gmra.mrb[0].mxu0 %v1467
        %v1866 = vpop.f32.mrb[0].mxu0
        %v1867 = vadd.f32 0.0, %v1866
        %v1868 = vpop.f32.mrb[0].mxu0
        %v1869 = vpop.f32.mrb[0].mxu0
        %v1870 = vadd.f32 0.0, %v1869
        %v1871 = vpop.f32.mrb[0].mxu0
        %1872 = vmatprep.mubr.bf16.mxu0 0
        %1873 = vmatmul.mubr.bf16.gmra.mrb[0].mxu0 %v1470
        %v1874 = vpop.f32.mrb[0].mxu0
        %v1875 = vadd.f32 0.0, %v1874
        %v1876 = vpop.f32.mrb[0].mxu0
        %v1877 = vpop.f32.mrb[0].mxu0
        %v1878 = vadd.f32 0.0, %v1877
        %v1879 = vpop.f32.mrb[0].mxu0
        %1880 = vmatprep.mubr.bf16.mxu0 0
        %1881 = vmatmul.mubr.bf16.gmra.mrb[0].mxu0 %v1473
        %v1882 = vpop.f32.mrb[0].mxu0
        %v1883 = vadd.f32 0.0, %v1882
        %v1884 = vpop.f32.mrb[0].mxu0
        %v1885 = vpop.f32.mrb[0].mxu0
        %v1886 = vadd.f32 0.0, %v1885
        %v1887 = vpop.f32.mrb[0].mxu0
        %1888 = vmatprep.mubr.bf16.mxu0 0
        %1889 = vmatmul.mubr.bf16.gmra.mrb[0].mxu0 %v1476
        %v1890 = vpop.f32.mrb[0].mxu0
        %v1891 = vadd.f32 0.0, %v1890
        %v1892 = vpop.f32.mrb[0].mxu0
        %v1893 = vpop.f32.mrb[0].mxu0
        %v1894 = vadd.f32 0.0, %v1893
        %v1895 = vpop.f32.mrb[0].mxu0
        %1896 = vmatprep.mubr.bf16.mxu0 0
        %1897 = vmatmul.mubr.bf16.gmra.mrb[0].mxu0 %v1479
        %v1898 = vpop.f32.mrb[0].mxu0
        %v1899 = vadd.f32 0.0, %v1898
        %v1900 = vpop.f32.mrb[0].mxu0
        %v1901 = vpop.f32.mrb[0].mxu0
        %v1902 = vadd.f32 0.0, %v1901
        %v1903 = vpop.f32.mrb[0].mxu0
        %1904 = vmatprep.mubr.bf16.mxu0 0
        %1905 = vmatmul.mubr.bf16.gmra.mrb[0].mxu0 %v1482
        %v1906 = vpop.f32.mrb[0].mxu0
        %v1907 = vadd.f32 0.0, %v1906
        %v1908 = vpop.f32.mrb[0].mxu0
        %v1909 = vpop.f32.mrb[0].mxu0
        %v1910 = vadd.f32 0.0, %v1909
        %v1911 = vpop.f32.mrb[0].mxu0
        %1912 = vmatprep.mubr.bf16.mxu0 0
        %1913 = vmatmul.mubr.bf16.gmra.mrb[0].mxu0 %v1485
        %v1914 = vpop.f32.mrb[0].mxu0
        %v1915 = vadd.f32 0.0, %v1914
        %v1916 = vpop.f32.mrb[0].mxu0
        %v1917 = vpop.f32.mrb[0].mxu0
        %v1918 = vadd.f32 0.0, %v1917
        %v1919 = vpop.f32.mrb[0].mxu0
        %1920 = vmatprep.mubr.bf16.mxu0 0
        %1921 = vmatmul.mubr.bf16.gmra.mrb[0].mxu0 %v1488
        %v1922 = vpop.f32.mrb[0].mxu0
        %v1923 = vadd.f32 0.0, %v1922
        %v1924 = vpop.f32.mrb[0].mxu0
        %v1925 = vpop.f32.mrb[0].mxu0
        %v1926 = vadd.f32 0.0, %v1925
        %v1927 = vpop.f32.mrb[0].mxu0
        %1928 = vdwg.mxu0
        %v1929 = vld [vmem:[%s14] sm:$0x1]
        %v1930 = vld [vmem:[%s14 + $0x1] sm:$0x1]
        %v1931 = vld [vmem:[%s14 + $0x2] sm:$0x1]
        %v1932 = vld [vmem:[%s14 + $0x3] sm:$0x1]
        %v1937 = vlaneseq
        %v1938 = vshrl.u32 %v1937, 7
        %v1939 = vsub.s32 0, %v1938
        %v1940 = vrot.slane %v1929, %v1939
        %v1941 = vlaneseq
        %v1942 = vshrl.u32 %v1941, 7
        %v1943 = vsub.s32 0, %v1942
        %v1944 = vrot.slane %v1930, %v1943
        %v1945 = vlaneseq
        %v1946 = vshrl.u32 %v1945, 7
        %v1947 = vsub.s32 0, %v1946
        %v1948 = vrot.slane %v1931, %v1947
        %v1949 = vlaneseq
        %v1950 = vshrl.u32 %v1949, 7
        %v1951 = vsub.s32 0, %v1950
        %v1952 = vrot.slane %v1932, %v1951
        %v1957 = vadd.f32 %v882, %v1940
        %v1958 = vadd.f32 %v883, %v1944
        %v1959 = vadd.f32 %v884, %v1948
        %v1960 = vadd.f32 %v885, %v1952
        %v1961 = vmul.f32 %v1957, 0.35355338
        %v1962 = vmul.f32 %v1958, 0.35355338
        %v1963 = vmul.f32 %v1959, 0.35355338
        %v1964 = vmul.f32 %v1960, 0.35355338
        %v1965 = vpack.c.bf16 %v1961, %v1961
        %v1966 = vpack.c.bf16 %v1962, %v1962
        %v1967 = vpack.c.bf16 %v1963, %v1963
        %v1968 = vpack.c.bf16 %v1964, %v1964
        %v1969 = vld [vmem:[%s15] sm:$0x1]
        %v1970 = vld [vmem:[%s15 + $0x1] sm:$0x1]
        %v1971 = vld [vmem:[%s15 + $0x2] sm:$0x1]
        %v1972 = vld [vmem:[%s15 + $0x3] sm:$0x1]
        %v1977 = vlaneseq
        %v1978 = vshrl.u32 %v1977, 7
        %v1979 = vsub.s32 0, %v1978
        %v1980 = vrot.slane %v1969, %v1979
        %v1981 = vlaneseq
        %v1982 = vshrl.u32 %v1981, 7
        %v1983 = vsub.s32 0, %v1982
        %v1984 = vrot.slane %v1970, %v1983
        %v1985 = vlaneseq
        %v1986 = vshrl.u32 %v1985, 7
        %v1987 = vsub.s32 0, %v1986
        %v1988 = vrot.slane %v1971, %v1987
        %v1989 = vlaneseq
        %v1990 = vshrl.u32 %v1989, 7
        %v1991 = vsub.s32 0, %v1990
        %v1992 = vrot.slane %v1972, %v1991
        %v1997 = vadd.f32 %v882, %v1980
        %v1998 = vadd.f32 %v883, %v1984
        %v1999 = vadd.f32 %v884, %v1988
        %v2000 = vadd.f32 %v885, %v1992
        %v2001 = vmul.f32 %v1997, 0.35355338
        %v2002 = vmul.f32 %v1998, 0.35355338
        %v2003 = vmul.f32 %v1999, 0.35355338
        %v2004 = vmul.f32 %v2000, 0.35355338
        %v2005 = vpack.c.bf16 %v2001, %v2001
        %v2006 = vpack.c.bf16 %v2002, %v2002
        %v2007 = vpack.c.bf16 %v2003, %v2003
        %v2008 = vpack.c.bf16 %v2004, %v2004
        %v2009 = vpack.c.bf16 %v1144, %v1144
        %v2010 = vpack.c.bf16 %v1145, %v1145
        %v2011 = vpack.c.bf16 %v1146, %v1146
        %v2012 = vpack.c.bf16 %v1147, %v1147
        %v2013 = vpack.c.bf16 %v1406, %v1406
        %v2014 = vpack.c.bf16 %v1407, %v1407
        %v2015 = vpack.c.bf16 %v1408, %v1408
        %v2016 = vpack.c.bf16 %v1409, %v1409
        %v2017 = vpack.c.bf16 %v1528, %v1525
        %v2018 = vpack.c.bf16 %v1536, %v1533
        %v2019 = vpack.c.bf16 %v1544, %v1541
        %v2020 = vpack.c.bf16 %v1552, %v1549
        %v2021 = vpack.c.bf16 %v1560, %v1557
        %v2022 = vpack.c.bf16 %v1568, %v1565
        %v2023 = vpack.c.bf16 %v1576, %v1573
        %v2024 = vpack.c.bf16 %v1584, %v1581
        %v2025 = vpack.c.bf16 %v1642, %v1639
        %v2026 = vpack.c.bf16 %v1650, %v1647
        %v2027 = vpack.c.bf16 %v1658, %v1655
        %v2028 = vpack.c.bf16 %v1666, %v1663
        %v2029 = vpack.c.bf16 %v1674, %v1671
        %v2030 = vpack.c.bf16 %v1682, %v1679
        %v2031 = vpack.c.bf16 %v1690, %v1687
        %v2032 = vpack.c.bf16 %v1698, %v1695
        %v2033 = vpack.c.bf16 %v1756, %v1753
        %v2034 = vpack.c.bf16 %v1764, %v1761
        %v2035 = vpack.c.bf16 %v1772, %v1769
        %v2036 = vpack.c.bf16 %v1780, %v1777
        %v2037 = vpack.c.bf16 %v1788, %v1785
        %v2038 = vpack.c.bf16 %v1796, %v1793
        %v2039 = vpack.c.bf16 %v1804, %v1801
        %v2040 = vpack.c.bf16 %v1812, %v1809
        %v2041 = vpack.c.bf16 %v1870, %v1867
        %v2042 = vpack.c.bf16 %v1878, %v1875
        %v2043 = vpack.c.bf16 %v1886, %v1883
        %v2044 = vpack.c.bf16 %v1894, %v1891
        %v2045 = vpack.c.bf16 %v1902, %v1899
        %v2046 = vpack.c.bf16 %v1910, %v1907
        %v2047 = vpack.c.bf16 %v1918, %v1915
        %v2048 = vpack.c.bf16 %v1926, %v1923
        %vm2049 = vcmask 64512
        %v2051 = vsel %vm2049, %v2005, 0
        %v2054 = vsel %vm2049, %v2017, 0
        %v2057 = vsel %vm2049, %v2018, 0
        %v2060 = vsel %vm2049, %v2019, 0
        %v2063 = vsel %vm2049, %v2020, 0
        %v2066 = vsel %vm2049, %v2021, 0
        %v2069 = vsel %vm2049, %v2022, 0
        %v2072 = vsel %vm2049, %v2023, 0
        %v2075 = vsel %vm2049, %v2024, 0
        %2077 = vmatprep.subr.bf16.mxu0 0
        %2078 = vmatpush1.bf16.xpose.msra.mxu0 %v2054
        %2079 = vmatprep.subr.bf16.mxu0 0
        %2080 = vmatpush1.bf16.xpose.msra.mxu0 %v2057
        %2081 = vmatprep.subr.bf16.mxu0 0
        %2082 = vmatpush1.bf16.xpose.msra.mxu0 %v2060
        %2083 = vmatprep.subr.bf16.mxu0 0
        %2084 = vmatpush1.bf16.xpose.msra.mxu0 %v2063
        %2085 = vmatprep.subr.bf16.mxu0 0
        %2086 = vmatpush1.bf16.xpose.msra.mxu0 %v2066
        %2087 = vmatprep.subr.bf16.mxu0 0
        %2088 = vmatpush1.bf16.xpose.msra.mxu0 %v2069
        %2089 = vmatprep.subr.bf16.mxu0 0
        %2090 = vmatpush1.bf16.xpose.msra.mxu0 %v2072
        %2091 = vmatprep.subr.bf16.mxu0 0
        %2092 = vmatpush1.bf16.xpose.msra.mxu0 %v2075
        %2093 = vmatprep.subr.bf16.mxu0 0
        %2094 = vmatpush1.bf16.xpose.msra.mxu0 0
        %2095 = vmatprep.subr.bf16.mxu0 0
        %2096 = vmatpush1.bf16.xpose.msra.mxu0 0
        %2097 = vmatprep.subr.bf16.mxu0 0
        %2098 = vmatpush1.bf16.xpose.msra.mxu0 0
        %2099 = vmatprep.subr.bf16.mxu0 0
        %2100 = vmatpush1.bf16.xpose.msra.mxu0 0
        %2101 = vmatprep.subr.bf16.mxu0 0
        %2102 = vmatpush1.bf16.xpose.msra.mxu0 0
        %2103 = vmatprep.subr.bf16.mxu0 0
        %2104 = vmatpush1.bf16.xpose.msra.mxu0 0
        %2105 = vmatprep.subr.bf16.mxu0 0
        %2106 = vmatpush1.bf16.xpose.msra.mxu0 0
        %2107 = vmatprep.subr.bf16.mxu0 0
        %2108 = vmatpush1.bf16.xpose.msra.mxu0 0
        %2109 = vmatprep.mubr.bf16.mxu0 0
        %2110 = vmatmul.mubr.bf16.gmra.mrb[0].mxu0 %v2051
        %v2111 = vpop.f32.mrb[0].mxu0
        %v2112 = vadd.f32 0.0, %v2111
        %v2113 = vpop.f32.mrb[0].mxu0
        %v2114 = vpop.f32.mrb[0].mxu0
        %v2115 = vpop.f32.mrb[0].mxu0
        %2116 = vdwg.mxu0
        %v2118 = vsel %vm2049, %v2006, 0
        %v2121 = vsel %vm2049, %v2025, 0
        %v2124 = vsel %vm2049, %v2026, 0
        %v2127 = vsel %vm2049, %v2027, 0
        %v2130 = vsel %vm2049, %v2028, 0
        %v2133 = vsel %vm2049, %v2029, 0
        %v2136 = vsel %vm2049, %v2030, 0
        %v2139 = vsel %vm2049, %v2031, 0
        %v2142 = vsel %vm2049, %v2032, 0
        %2144 = vmatprep.subr.bf16.mxu0 0
        %2145 = vmatpush1.bf16.xpose.msra.mxu0 %v2121
        %2146 = vmatprep.subr.bf16.mxu0 0
        %2147 = vmatpush1.bf16.xpose.msra.mxu0 %v2124
        %2148 = vmatprep.subr.bf16.mxu0 0
        %2149 = vmatpush1.bf16.xpose.msra.mxu0 %v2127
        %2150 = vmatprep.subr.bf16.mxu0 0
        %2151 = vmatpush1.bf16.xpose.msra.mxu0 %v2130
        %2152 = vmatprep.subr.bf16.mxu0 0
        %2153 = vmatpush1.bf16.xpose.msra.mxu0 %v2133
        %2154 = vmatprep.subr.bf16.mxu0 0
        %2155 = vmatpush1.bf16.xpose.msra.mxu0 %v2136
        %2156 = vmatprep.subr.bf16.mxu0 0
        %2157 = vmatpush1.bf16.xpose.msra.mxu0 %v2139
        %2158 = vmatprep.subr.bf16.mxu0 0
        %2159 = vmatpush1.bf16.xpose.msra.mxu0 %v2142
        %2160 = vmatprep.subr.bf16.mxu0 0
        %2161 = vmatpush1.bf16.xpose.msra.mxu0 0
        %2162 = vmatprep.subr.bf16.mxu0 0
        %2163 = vmatpush1.bf16.xpose.msra.mxu0 0
        %2164 = vmatprep.subr.bf16.mxu0 0
        %2165 = vmatpush1.bf16.xpose.msra.mxu0 0
        %2166 = vmatprep.subr.bf16.mxu0 0
        %2167 = vmatpush1.bf16.xpose.msra.mxu0 0
        %2168 = vmatprep.subr.bf16.mxu0 0
        %2169 = vmatpush1.bf16.xpose.msra.mxu0 0
        %2170 = vmatprep.subr.bf16.mxu0 0
        %2171 = vmatpush1.bf16.xpose.msra.mxu0 0
        %2172 = vmatprep.subr.bf16.mxu0 0
        %2173 = vmatpush1.bf16.xpose.msra.mxu0 0
        %2174 = vmatprep.subr.bf16.mxu0 0
        %2175 = vmatpush1.bf16.xpose.msra.mxu0 0
        %2176 = vmatprep.mubr.bf16.mxu0 0
        %2177 = vmatmul.mubr.bf16.gmra.mrb[0].mxu0 %v2118
        %v2178 = vpop.f32.mrb[0].mxu0
        %v2179 = vadd.f32 0.0, %v2178
        %v2180 = vpop.f32.mrb[0].mxu0
        %v2181 = vpop.f32.mrb[0].mxu0
        %v2182 = vpop.f32.mrb[0].mxu0
        %2183 = vdwg.mxu0
        %v2185 = vsel %vm2049, %v2007, 0
        %v2188 = vsel %vm2049, %v2033, 0
        %v2191 = vsel %vm2049, %v2034, 0
        %v2194 = vsel %vm2049, %v2035, 0
        %v2197 = vsel %vm2049, %v2036, 0
        %v2200 = vsel %vm2049, %v2037, 0
        %v2203 = vsel %vm2049, %v2038, 0
        %v2206 = vsel %vm2049, %v2039, 0
        %v2209 = vsel %vm2049, %v2040, 0
        %2211 = vmatprep.subr.bf16.mxu0 0
        %2212 = vmatpush1.bf16.xpose.msra.mxu0 %v2188
        %2213 = vmatprep.subr.bf16.mxu0 0
        %2214 = vmatpush1.bf16.xpose.msra.mxu0 %v2191
        %2215 = vmatprep.subr.bf16.mxu0 0
        %2216 = vmatpush1.bf16.xpose.msra.mxu0 %v2194
        %2217 = vmatprep.subr.bf16.mxu0 0
        %2218 = vmatpush1.bf16.xpose.msra.mxu0 %v2197
        %2219 = vmatprep.subr.bf16.mxu0 0
        %2220 = vmatpush1.bf16.xpose.msra.mxu0 %v2200
        %2221 = vmatprep.subr.bf16.mxu0 0
        %2222 = vmatpush1.bf16.xpose.msra.mxu0 %v2203
        %2223 = vmatprep.subr.bf16.mxu0 0
        %2224 = vmatpush1.bf16.xpose.msra.mxu0 %v2206
        %2225 = vmatprep.subr.bf16.mxu0 0
        %2226 = vmatpush1.bf16.xpose.msra.mxu0 %v2209
        %2227 = vmatprep.subr.bf16.mxu0 0
        %2228 = vmatpush1.bf16.xpose.msra.mxu0 0
        %2229 = vmatprep.subr.bf16.mxu0 0
        %2230 = vmatpush1.bf16.xpose.msra.mxu0 0
        %2231 = vmatprep.subr.bf16.mxu0 0
        %2232 = vmatpush1.bf16.xpose.msra.mxu0 0
        %2233 = vmatprep.subr.bf16.mxu0 0
        %2234 = vmatpush1.bf16.xpose.msra.mxu0 0
        %2235 = vmatprep.subr.bf16.mxu0 0
        %2236 = vmatpush1.bf16.xpose.msra.mxu0 0
        %2237 = vmatprep.subr.bf16.mxu0 0
        %2238 = vmatpush1.bf16.xpose.msra.mxu0 0
        %2239 = vmatprep.subr.bf16.mxu0 0
        %2240 = vmatpush1.bf16.xpose.msra.mxu0 0
        %2241 = vmatprep.subr.bf16.mxu0 0
        %2242 = vmatpush1.bf16.xpose.msra.mxu0 0
        %2243 = vmatprep.mubr.bf16.mxu0 0
        %2244 = vmatmul.mubr.bf16.gmra.mrb[0].mxu0 %v2185
        %v2245 = vpop.f32.mrb[0].mxu0
        %v2246 = vadd.f32 0.0, %v2245
        %v2247 = vpop.f32.mrb[0].mxu0
        %v2248 = vpop.f32.mrb[0].mxu0
        %v2249 = vpop.f32.mrb[0].mxu0
        %2250 = vdwg.mxu0
        %v2252 = vsel %vm2049, %v2008, 0
        %v2255 = vsel %vm2049, %v2041, 0
        %v2258 = vsel %vm2049, %v2042, 0
        %v2261 = vsel %vm2049, %v2043, 0
        %v2264 = vsel %vm2049, %v2044, 0
        %v2267 = vsel %vm2049, %v2045, 0
        %v2270 = vsel %vm2049, %v2046, 0
        %v2273 = vsel %vm2049, %v2047, 0
        %v2276 = vsel %vm2049, %v2048, 0
        %2278 = vmatprep.subr.bf16.mxu0 0
        %2279 = vmatpush1.bf16.xpose.msra.mxu0 %v2255
        %2280 = vmatprep.subr.bf16.mxu0 0
        %2281 = vmatpush1.bf16.xpose.msra.mxu0 %v2258
        %2282 = vmatprep.subr.bf16.mxu0 0
        %2283 = vmatpush1.bf16.xpose.msra.mxu0 %v2261
        %2284 = vmatprep.subr.bf16.mxu0 0
        %2285 = vmatpush1.bf16.xpose.msra.mxu0 %v2264
        %2286 = vmatprep.subr.bf16.mxu0 0
        %2287 = vmatpush1.bf16.xpose.msra.mxu0 %v2267
        %2288 = vmatprep.subr.bf16.mxu0 0
        %2289 = vmatpush1.bf16.xpose.msra.mxu0 %v2270
        %2290 = vmatprep.subr.bf16.mxu0 0
        %2291 = vmatpush1.bf16.xpose.msra.mxu0 %v2273
        %2292 = vmatprep.subr.bf16.mxu0 0
        %2293 = vmatpush1.bf16.xpose.msra.mxu0 %v2276
        %2294 = vmatprep.subr.bf16.mxu0 0
        %2295 = vmatpush1.bf16.xpose.msra.mxu0 0
        %2296 = vmatprep.subr.bf16.mxu0 0
        %2297 = vmatpush1.bf16.xpose.msra.mxu0 0
        %2298 = vmatprep.subr.bf16.mxu0 0
        %2299 = vmatpush1.bf16.xpose.msra.mxu0 0
        %2300 = vmatprep.subr.bf16.mxu0 0
        %2301 = vmatpush1.bf16.xpose.msra.mxu0 0
        %2302 = vmatprep.subr.bf16.mxu0 0
        %2303 = vmatpush1.bf16.xpose.msra.mxu0 0
        %2304 = vmatprep.subr.bf16.mxu0 0
        %2305 = vmatpush1.bf16.xpose.msra.mxu0 0
        %2306 = vmatprep.subr.bf16.mxu0 0
        %2307 = vmatpush1.bf16.xpose.msra.mxu0 0
        %2308 = vmatprep.subr.bf16.mxu0 0
        %2309 = vmatpush1.bf16.xpose.msra.mxu0 0
        %2310 = vmatprep.mubr.bf16.mxu0 0
        %2311 = vmatmul.mubr.bf16.gmra.mrb[0].mxu0 %v2252
        %v2312 = vpop.f32.mrb[0].mxu0
        %v2313 = vadd.f32 0.0, %v2312
        %v2314 = vpop.f32.mrb[0].mxu0
        %v2315 = vpop.f32.mrb[0].mxu0
        %v2316 = vpop.f32.mrb[0].mxu0
        %2317 = vdwg.mxu0
        %2322 = vrot.lane.b32.xlu0 %v2112, 1
        %v2323 = vpop.permute.xlu0 %2322
        %2324 = vrot.lane.b32.xlu0 %v2179, 1
        %v2325 = vpop.permute.xlu0 %2324
        %2326 = vrot.lane.b32.xlu0 %v2246, 1
        %v2327 = vpop.permute.xlu0 %2326
        %2328 = vrot.lane.b32.xlu0 %v2313, 1
        %v2329 = vpop.permute.xlu0 %2328
        %2334 = vrot.lane.b32.xlu0 %v2112, 2
        %v2335 = vpop.permute.xlu0 %2334
        %2336 = vrot.lane.b32.xlu0 %v2179, 2
        %v2337 = vpop.permute.xlu0 %2336
        %2338 = vrot.lane.b32.xlu0 %v2246, 2
        %v2339 = vpop.permute.xlu0 %2338
        %2340 = vrot.lane.b32.xlu0 %v2313, 2
        %v2341 = vpop.permute.xlu0 %2340
        %2346 = vrot.lane.b32.xlu0 %v2112, 3
        %v2347 = vpop.permute.xlu0 %2346
        %2348 = vrot.lane.b32.xlu0 %v2179, 3
        %v2349 = vpop.permute.xlu0 %2348
        %2350 = vrot.lane.b32.xlu0 %v2246, 3
        %v2351 = vpop.permute.xlu0 %2350
        %2352 = vrot.lane.b32.xlu0 %v2313, 3
        %v2353 = vpop.permute.xlu0 %2352
        %2358 = vrot.lane.b32.xlu0 %v2112, 4
        %v2359 = vpop.permute.xlu0 %2358
        %2360 = vrot.lane.b32.xlu0 %v2179, 4
        %v2361 = vpop.permute.xlu0 %2360
        %2362 = vrot.lane.b32.xlu0 %v2246, 4
        %v2363 = vpop.permute.xlu0 %2362
        %2364 = vrot.lane.b32.xlu0 %v2313, 4
        %v2365 = vpop.permute.xlu0 %2364
        %2370 = vrot.lane.b32.xlu0 %v2112, 5
        %v2371 = vpop.permute.xlu0 %2370
        %2372 = vrot.lane.b32.xlu0 %v2179, 5
        %v2373 = vpop.permute.xlu0 %2372
        %2374 = vrot.lane.b32.xlu0 %v2246, 5
        %v2375 = vpop.permute.xlu0 %2374
        %2376 = vrot.lane.b32.xlu0 %v2313, 5
        %v2377 = vpop.permute.xlu0 %2376
        %2382 = vrot.lane.b32.xlu0 %v2112, 6
        %v2383 = vpop.permute.xlu0 %2382
        %2384 = vrot.lane.b32.xlu0 %v2179, 6
        %v2385 = vpop.permute.xlu0 %2384
        %2386 = vrot.lane.b32.xlu0 %v2246, 6
        %v2387 = vpop.permute.xlu0 %2386
        %2388 = vrot.lane.b32.xlu0 %v2313, 6
        %v2389 = vpop.permute.xlu0 %2388
        %2394 = vrot.lane.b32.xlu0 %v2112, 7
        %v2395 = vpop.permute.xlu0 %2394
        %2396 = vrot.lane.b32.xlu0 %v2179, 7
        %v2397 = vpop.permute.xlu0 %2396
        %2398 = vrot.lane.b32.xlu0 %v2246, 7
        %v2399 = vpop.permute.xlu0 %2398
        %2400 = vrot.lane.b32.xlu0 %v2313, 7
        %v2401 = vpop.permute.xlu0 %2400
        %vm2406 = vcmask 1040384
        %v2407 = vsel %vm2406, %v2112, %v2323
        %v2408 = vsel %vm2406, %v2179, %v2325
        %v2409 = vsel %vm2406, %v2246, %v2327
        %v2410 = vsel %vm2406, %v2313, %v2329
        %vm2411 = vcmask 1041408
        %v2412 = vsel %vm2411, %v2407, %v2335
        %v2413 = vsel %vm2411, %v2408, %v2337
        %v2414 = vsel %vm2411, %v2409, %v2339
        %v2415 = vsel %vm2411, %v2410, %v2341
        %vm2416 = vcmask 1042432
        %v2417 = vsel %vm2416, %v2412, %v2347
        %v2418 = vsel %vm2416, %v2413, %v2349
        %v2419 = vsel %vm2416, %v2414, %v2351
        %v2420 = vsel %vm2416, %v2415, %v2353
        %vm2421 = vcmask 1043456
        %v2422 = vsel %vm2421, %v2417, %v2359
        %v2423 = vsel %vm2421, %v2418, %v2361
        %v2424 = vsel %vm2421, %v2419, %v2363
        %v2425 = vsel %vm2421, %v2420, %v2365
        %vm2426 = vcmask 1044480
        %v2427 = vsel %vm2426, %v2422, %v2371
        %v2428 = vsel %vm2426, %v2423, %v2373
        %v2429 = vsel %vm2426, %v2424, %v2375
        %v2430 = vsel %vm2426, %v2425, %v2377
        %vm2431 = vcmask 1045504
        %v2432 = vsel %vm2431, %v2427, %v2383
        %v2433 = vsel %vm2431, %v2428, %v2385
        %v2434 = vsel %vm2431, %v2429, %v2387
        %v2435 = vsel %vm2431, %v2430, %v2389
        %vm2436 = vcmask 1046528
        %v2437 = vsel %vm2436, %v2432, %v2395
        %v2438 = vsel %vm2436, %v2433, %v2397
        %v2439 = vsel %vm2436, %v2434, %v2399
        %v2440 = vsel %vm2436, %v2435, %v2401
        %2442 = vrot.lane.b32.xlu0 %v2437, 121
        %v2443 = vpop.permute.xlu0 %2442
        %v2446 = vsel %vm2049, %v1965, 0
        %v2449 = vsel %vm2049, %v2009, 0
        %2451 = vmatprep.subr.bf16.mxu0 0
        %2452 = vmatpush1.bf16.xpose.msra.mxu0 %v2449
        %2453 = vmatprep.subr.bf16.mxu0 0
        %2454 = vmatpush1.bf16.xpose.msra.mxu0 0
        %2455 = vmatprep.subr.bf16.mxu0 0
        %2456 = vmatpush1.bf16.xpose.msra.mxu0 0
        %2457 = vmatprep.subr.bf16.mxu0 0
        %2458 = vmatpush1.bf16.xpose.msra.mxu0 0
        %2459 = vmatprep.subr.bf16.mxu0 0
        %2460 = vmatpush1.bf16.xpose.msra.mxu0 0
        %2461 = vmatprep.subr.bf16.mxu0 0
        %2462 = vmatpush1.bf16.xpose.msra.mxu0 0
        %2463 = vmatprep.subr.bf16.mxu0 0
        %2464 = vmatpush1.bf16.xpose.msra.mxu0 0
        %2465 = vmatprep.subr.bf16.mxu0 0
        %2466 = vmatpush1.bf16.xpose.msra.mxu0 0
        %2467 = vmatprep.subr.bf16.mxu0 0
        %2468 = vmatpush1.bf16.xpose.msra.mxu0 0
        %2469 = vmatprep.subr.bf16.mxu0 0
        %2470 = vmatpush1.bf16.xpose.msra.mxu0 0
        %2471 = vmatprep.subr.bf16.mxu0 0
        %2472 = vmatpush1.bf16.xpose.msra.mxu0 0
        %2473 = vmatprep.subr.bf16.mxu0 0
        %2474 = vmatpush1.bf16.xpose.msra.mxu0 0
        %2475 = vmatprep.subr.bf16.mxu0 0
        %2476 = vmatpush1.bf16.xpose.msra.mxu0 0
        %2477 = vmatprep.subr.bf16.mxu0 0
        %2478 = vmatpush1.bf16.xpose.msra.mxu0 0
        %2479 = vmatprep.subr.bf16.mxu0 0
        %2480 = vmatpush1.bf16.xpose.msra.mxu0 0
        %2481 = vmatprep.subr.bf16.mxu0 0
        %2482 = vmatpush1.bf16.xpose.msra.mxu0 0
        %2483 = vmatprep.mubr.bf16.mxu0 0
        %2484 = vmatmul.mubr.bf16.gmra.mrb[0].mxu0 %v2446
        %v2485 = vpop.f32.mrb[0].mxu0
        %v2486 = vadd.f32 %v2443, %v2485
        %v2487 = vpop.f32.mrb[0].mxu0
        %v2488 = vpop.f32.mrb[0].mxu0
        %v2489 = vpop.f32.mrb[0].mxu0
        %2490 = vdwg.mxu0
        %2492 = vrot.lane.b32.xlu0 %v2438, 121
        %v2493 = vpop.permute.xlu0 %2492
        %v2496 = vsel %vm2049, %v1966, 0
        %v2499 = vsel %vm2049, %v2010, 0
        %2501 = vmatprep.subr.bf16.mxu0 0
        %2502 = vmatpush1.bf16.xpose.msra.mxu0 %v2499
        %2503 = vmatprep.subr.bf16.mxu0 0
        %2504 = vmatpush1.bf16.xpose.msra.mxu0 0
        %2505 = vmatprep.subr.bf16.mxu0 0
        %2506 = vmatpush1.bf16.xpose.msra.mxu0 0
        %2507 = vmatprep.subr.bf16.mxu0 0
        %2508 = vmatpush1.bf16.xpose.msra.mxu0 0
        %2509 = vmatprep.subr.bf16.mxu0 0
        %2510 = vmatpush1.bf16.xpose.msra.mxu0 0
        %2511 = vmatprep.subr.bf16.mxu0 0
        %2512 = vmatpush1.bf16.xpose.msra.mxu0 0
        %2513 = vmatprep.subr.bf16.mxu0 0
        %2514 = vmatpush1.bf16.xpose.msra.mxu0 0
        %2515 = vmatprep.subr.bf16.mxu0 0
        %2516 = vmatpush1.bf16.xpose.msra.mxu0 0
        %2517 = vmatprep.subr.bf16.mxu0 0
        %2518 = vmatpush1.bf16.xpose.msra.mxu0 0
        %2519 = vmatprep.subr.bf16.mxu0 0
        %2520 = vmatpush1.bf16.xpose.msra.mxu0 0
        %2521 = vmatprep.subr.bf16.mxu0 0
        %2522 = vmatpush1.bf16.xpose.msra.mxu0 0
        %2523 = vmatprep.subr.bf16.mxu0 0
        %2524 = vmatpush1.bf16.xpose.msra.mxu0 0
        %2525 = vmatprep.subr.bf16.mxu0 0
        %2526 = vmatpush1.bf16.xpose.msra.mxu0 0
        %2527 = vmatprep.subr.bf16.mxu0 0
        %2528 = vmatpush1.bf16.xpose.msra.mxu0 0
        %2529 = vmatprep.subr.bf16.mxu0 0
        %2530 = vmatpush1.bf16.xpose.msra.mxu0 0
        %2531 = vmatprep.subr.bf16.mxu0 0
        %2532 = vmatpush1.bf16.xpose.msra.mxu0 0
        %2533 = vmatprep.mubr.bf16.mxu0 0
        %2534 = vmatmul.mubr.bf16.gmra.mrb[0].mxu0 %v2496
        %v2535 = vpop.f32.mrb[0].mxu0
        %v2536 = vadd.f32 %v2493, %v2535
        %v2537 = vpop.f32.mrb[0].mxu0
        %v2538 = vpop.f32.mrb[0].mxu0
        %v2539 = vpop.f32.mrb[0].mxu0
        %2540 = vdwg.mxu0
        %2542 = vrot.lane.b32.xlu0 %v2439, 121
        %v2543 = vpop.permute.xlu0 %2542
        %v2546 = vsel %vm2049, %v1967, 0
        %v2549 = vsel %vm2049, %v2011, 0
        %2551 = vmatprep.subr.bf16.mxu0 0
        %2552 = vmatpush1.bf16.xpose.msra.mxu0 %v2549
        %2553 = vmatprep.subr.bf16.mxu0 0
        %2554 = vmatpush1.bf16.xpose.msra.mxu0 0
        %2555 = vmatprep.subr.bf16.mxu0 0
        %2556 = vmatpush1.bf16.xpose.msra.mxu0 0
        %2557 = vmatprep.subr.bf16.mxu0 0
        %2558 = vmatpush1.bf16.xpose.msra.mxu0 0
        %2559 = vmatprep.subr.bf16.mxu0 0
        %2560 = vmatpush1.bf16.xpose.msra.mxu0 0
        %2561 = vmatprep.subr.bf16.mxu0 0
        %2562 = vmatpush1.bf16.xpose.msra.mxu0 0
        %2563 = vmatprep.subr.bf16.mxu0 0
        %2564 = vmatpush1.bf16.xpose.msra.mxu0 0
        %2565 = vmatprep.subr.bf16.mxu0 0
        %2566 = vmatpush1.bf16.xpose.msra.mxu0 0
        %2567 = vmatprep.subr.bf16.mxu0 0
        %2568 = vmatpush1.bf16.xpose.msra.mxu0 0
        %2569 = vmatprep.subr.bf16.mxu0 0
        %2570 = vmatpush1.bf16.xpose.msra.mxu0 0
        %2571 = vmatprep.subr.bf16.mxu0 0
        %2572 = vmatpush1.bf16.xpose.msra.mxu0 0
        %2573 = vmatprep.subr.bf16.mxu0 0
        %2574 = vmatpush1.bf16.xpose.msra.mxu0 0
        %2575 = vmatprep.subr.bf16.mxu0 0
        %2576 = vmatpush1.bf16.xpose.msra.mxu0 0
        %2577 = vmatprep.subr.bf16.mxu0 0
        %2578 = vmatpush1.bf16.xpose.msra.mxu0 0
        %2579 = vmatprep.subr.bf16.mxu0 0
        %2580 = vmatpush1.bf16.xpose.msra.mxu0 0
        %2581 = vmatprep.subr.bf16.mxu0 0
        %2582 = vmatpush1.bf16.xpose.msra.mxu0 0
        %2583 = vmatprep.mubr.bf16.mxu0 0
        %2584 = vmatmul.mubr.bf16.gmra.mrb[0].mxu0 %v2546
        %v2585 = vpop.f32.mrb[0].mxu0
        %v2586 = vadd.f32 %v2543, %v2585
        %v2587 = vpop.f32.mrb[0].mxu0
        %v2588 = vpop.f32.mrb[0].mxu0
        %v2589 = vpop.f32.mrb[0].mxu0
        %2590 = vdwg.mxu0
        %2592 = vrot.lane.b32.xlu0 %v2440, 121
        %v2593 = vpop.permute.xlu0 %2592
        %v2596 = vsel %vm2049, %v1968, 0
        %v2599 = vsel %vm2049, %v2012, 0
        %2601 = vmatprep.subr.bf16.mxu0 0
        %2602 = vmatpush1.bf16.xpose.msra.mxu0 %v2599
        %2603 = vmatprep.subr.bf16.mxu0 0
        %2604 = vmatpush1.bf16.xpose.msra.mxu0 0
        %2605 = vmatprep.subr.bf16.mxu0 0
        %2606 = vmatpush1.bf16.xpose.msra.mxu0 0
        %2607 = vmatprep.subr.bf16.mxu0 0
        %2608 = vmatpush1.bf16.xpose.msra.mxu0 0
        %2609 = vmatprep.subr.bf16.mxu0 0
        %2610 = vmatpush1.bf16.xpose.msra.mxu0 0
        %2611 = vmatprep.subr.bf16.mxu0 0
        %2612 = vmatpush1.bf16.xpose.msra.mxu0 0
        %2613 = vmatprep.subr.bf16.mxu0 0
        %2614 = vmatpush1.bf16.xpose.msra.mxu0 0
        %2615 = vmatprep.subr.bf16.mxu0 0
        %2616 = vmatpush1.bf16.xpose.msra.mxu0 0
        %2617 = vmatprep.subr.bf16.mxu0 0
        %2618 = vmatpush1.bf16.xpose.msra.mxu0 0
        %2619 = vmatprep.subr.bf16.mxu0 0
        %2620 = vmatpush1.bf16.xpose.msra.mxu0 0
        %2621 = vmatprep.subr.bf16.mxu0 0
        %2622 = vmatpush1.bf16.xpose.msra.mxu0 0
        %2623 = vmatprep.subr.bf16.mxu0 0
        %2624 = vmatpush1.bf16.xpose.msra.mxu0 0
        %2625 = vmatprep.subr.bf16.mxu0 0
        %2626 = vmatpush1.bf16.xpose.msra.mxu0 0
        %2627 = vmatprep.subr.bf16.mxu0 0
        %2628 = vmatpush1.bf16.xpose.msra.mxu0 0
        %2629 = vmatprep.subr.bf16.mxu0 0
        %2630 = vmatpush1.bf16.xpose.msra.mxu0 0
        %2631 = vmatprep.subr.bf16.mxu0 0
        %2632 = vmatpush1.bf16.xpose.msra.mxu0 0
        %2633 = vmatprep.mubr.bf16.mxu0 0
        %2634 = vmatmul.mubr.bf16.gmra.mrb[0].mxu0 %v2596
        %v2635 = vpop.f32.mrb[0].mxu0
        %v2636 = vadd.f32 %v2593, %v2635
        %v2637 = vpop.f32.mrb[0].mxu0
        %v2638 = vpop.f32.mrb[0].mxu0
        %v2639 = vpop.f32.mrb[0].mxu0
        %2640 = vdwg.mxu0
        %v2641 = vld [vmem:[%s602] sm:$0x1]
        %v2643 = vlaneseq
        %v2644 = vshrl.u32 %v2643, 7
        %v2645 = vsub.s32 0, %v2644
        %v2646 = vrot.slane %v2641, %v2645
        %v2648 = vadd.f32 %v2486, %v2646
        %v2649 = vadd.f32 %v2536, %v2646
        %v2650 = vadd.f32 %v2586, %v2646
        %v2651 = vadd.f32 %v2636, %v2646
        %v2652 = vsel %vm2049, %v2648, -inf
        %2653 = vmax.xlane.f32.xlu0 %v2652
        %v2654 = vpop.xlane.xlu0 %2653
        %v2655 = vsel %vm2049, %v2649, -inf
        %2656 = vmax.xlane.f32.xlu0 %v2655
        %v2657 = vpop.xlane.xlu0 %2656
        %v2658 = vsel %vm2049, %v2650, -inf
        %2659 = vmax.xlane.f32.xlu0 %v2658
        %v2660 = vpop.xlane.xlu0 %2659
        %v2661 = vsel %vm2049, %v2651, -inf
        %2662 = vmax.xlane.f32.xlu0 %v2661
        %v2663 = vpop.xlane.xlu0 %2662
        %v2664 = vsub.f32 %v2648, %v2654
        %v2665 = vsub.f32 %v2649, %v2657
        %v2666 = vsub.f32 %v2650, %v2660
        %v2667 = vsub.f32 %v2651, %v2663
        %v2668 = vmul.f32 %v2664, 1.442695
        %v2669 = vpow.pop %v2668
        %v2670 = vmul.f32 %v2665, 1.442695
        %v2671 = vpow.pop %v2670
        %v2672 = vmul.f32 %v2666, 1.442695
        %v2673 = vpow.pop %v2672
        %v2674 = vmul.f32 %v2667, 1.442695
        %v2675 = vpow.pop %v2674
        %v2676 = vsel %vm2049, %v2669, 0.0
        %2677 = vadd.xlane.f32.xlu0 %v2676
        %v2678 = vpop.xlane.xlu0 %2677
        %v2679 = vsel %vm2049, %v2671, 0.0
        %2680 = vadd.xlane.f32.xlu0 %v2679
        %v2681 = vpop.xlane.xlu0 %2680
        %v2682 = vsel %vm2049, %v2673, 0.0
        %2683 = vadd.xlane.f32.xlu0 %v2682
        %v2684 = vpop.xlane.xlu0 %2683
        %v2685 = vsel %vm2049, %v2675, 0.0
        %2686 = vadd.xlane.f32.xlu0 %v2685
        %v2687 = vpop.xlane.xlu0 %2686
        %v2688 = vrcp.pop %v2678
        %v2689 = vrcp.pop %v2681
        %v2690 = vrcp.pop %v2684
        %v2691 = vrcp.pop %v2687
        %v2692 = vmul.f32 %v2669, %v2688
        %v2693 = vmul.f32 %v2671, %v2689
        %v2694 = vmul.f32 %v2673, %v2690
        %v2695 = vmul.f32 %v2675, %v2691
        %v2696 = vpack.c.bf16 %v2692, %v2692
        %v2697 = vpack.c.bf16 %v2693, %v2693
        %v2698 = vpack.c.bf16 %v2694, %v2694
        %v2699 = vpack.c.bf16 %v2695, %v2695
        %v2701 = vsel %vm2049, %v2696, 0
        %v2704 = vsel %vm2421, %v2013, 0
        %2706 = vmatprep.subr.bf16.mxu0 0
        %2707 = vmatpush1.bf16.msra.mxu0 %v2704
        %2708 = vmatprep.subr.bf16.mxu0 0
        %2709 = vmatpush1.bf16.msra.mxu0 0
        %2710 = vmatprep.subr.bf16.mxu0 0
        %2711 = vmatpush1.bf16.msra.mxu0 0
        %2712 = vmatprep.subr.bf16.mxu0 0
        %2713 = vmatpush1.bf16.msra.mxu0 0
        %2714 = vmatprep.subr.bf16.mxu0 0
        %2715 = vmatpush1.bf16.msra.mxu0 0
        %2716 = vmatprep.subr.bf16.mxu0 0
        %2717 = vmatpush1.bf16.msra.mxu0 0
        %2718 = vmatprep.subr.bf16.mxu0 0
        %2719 = vmatpush1.bf16.msra.mxu0 0
        %2720 = vmatprep.subr.bf16.mxu0 0
        %2721 = vmatpush1.bf16.msra.mxu0 0
        %2722 = vmatprep.subr.bf16.mxu0 0
        %2723 = vmatpush1.bf16.msra.mxu0 0
        %2724 = vmatprep.subr.bf16.mxu0 0
        %2725 = vmatpush1.bf16.msra.mxu0 0
        %2726 = vmatprep.subr.bf16.mxu0 0
        %2727 = vmatpush1.bf16.msra.mxu0 0
        %2728 = vmatprep.subr.bf16.mxu0 0
        %2729 = vmatpush1.bf16.msra.mxu0 0
        %2730 = vmatprep.subr.bf16.mxu0 0
        %2731 = vmatpush1.bf16.msra.mxu0 0
        %2732 = vmatprep.subr.bf16.mxu0 0
        %2733 = vmatpush1.bf16.msra.mxu0 0
        %2734 = vmatprep.subr.bf16.mxu0 0
        %2735 = vmatpush1.bf16.msra.mxu0 0
        %2736 = vmatprep.subr.bf16.mxu0 0
        %2737 = vmatpush1.bf16.msra.mxu0 0
        %2738 = vmatprep.mubr.bf16.mxu0 0
        %2739 = vmatmul.mubr.bf16.gmra.mrb[0].mxu0 %v2701
        %v2740 = vpop.f32.mrb[0].mxu0
        %v2741 = vadd.f32 0.0, %v2740
        %v2742 = vpop.f32.mrb[0].mxu0
        %v2743 = vpop.f32.mrb[0].mxu0
        %v2744 = vpop.f32.mrb[0].mxu0
        %2745 = vdwg.mxu0
        %v2747 = vsel %vm2049, %v2697, 0
        %v2750 = vsel %vm2421, %v2014, 0
        %2752 = vmatprep.subr.bf16.mxu0 0
        %2753 = vmatpush1.bf16.msra.mxu0 %v2750
        %2754 = vmatprep.subr.bf16.mxu0 0
        %2755 = vmatpush1.bf16.msra.mxu0 0
        %2756 = vmatprep.subr.bf16.mxu0 0
        %2757 = vmatpush1.bf16.msra.mxu0 0
        %2758 = vmatprep.subr.bf16.mxu0 0
        %2759 = vmatpush1.bf16.msra.mxu0 0
        %2760 = vmatprep.subr.bf16.mxu0 0
        %2761 = vmatpush1.bf16.msra.mxu0 0
        %2762 = vmatprep.subr.bf16.mxu0 0
        %2763 = vmatpush1.bf16.msra.mxu0 0
        %2764 = vmatprep.subr.bf16.mxu0 0
        %2765 = vmatpush1.bf16.msra.mxu0 0
        %2766 = vmatprep.subr.bf16.mxu0 0
        %2767 = vmatpush1.bf16.msra.mxu0 0
        %2768 = vmatprep.subr.bf16.mxu0 0
        %2769 = vmatpush1.bf16.msra.mxu0 0
        %2770 = vmatprep.subr.bf16.mxu0 0
        %2771 = vmatpush1.bf16.msra.mxu0 0
        %2772 = vmatprep.subr.bf16.mxu0 0
        %2773 = vmatpush1.bf16.msra.mxu0 0
        %2774 = vmatprep.subr.bf16.mxu0 0
        %2775 = vmatpush1.bf16.msra.mxu0 0
        %2776 = vmatprep.subr.bf16.mxu0 0
        %2777 = vmatpush1.bf16.msra.mxu0 0
        %2778 = vmatprep.subr.bf16.mxu0 0
        %2779 = vmatpush1.bf16.msra.mxu0 0
        %2780 = vmatprep.subr.bf16.mxu0 0
        %2781 = vmatpush1.bf16.msra.mxu0 0
        %2782 = vmatprep.subr.bf16.mxu0 0
        %2783 = vmatpush1.bf16.msra.mxu0 0
        %2784 = vmatprep.mubr.bf16.mxu0 0
        %2785 = vmatmul.mubr.bf16.gmra.mrb[0].mxu0 %v2747
        %v2786 = vpop.f32.mrb[0].mxu0
        %v2787 = vadd.f32 0.0, %v2786
        %v2788 = vpop.f32.mrb[0].mxu0
        %v2789 = vpop.f32.mrb[0].mxu0
        %v2790 = vpop.f32.mrb[0].mxu0
        %2791 = vdwg.mxu0
        %v2793 = vsel %vm2049, %v2698, 0
        %v2796 = vsel %vm2421, %v2015, 0
        %2798 = vmatprep.subr.bf16.mxu0 0
        %2799 = vmatpush1.bf16.msra.mxu0 %v2796
        %2800 = vmatprep.subr.bf16.mxu0 0
        %2801 = vmatpush1.bf16.msra.mxu0 0
        %2802 = vmatprep.subr.bf16.mxu0 0
        %2803 = vmatpush1.bf16.msra.mxu0 0
        %2804 = vmatprep.subr.bf16.mxu0 0
        %2805 = vmatpush1.bf16.msra.mxu0 0
        %2806 = vmatprep.subr.bf16.mxu0 0
        %2807 = vmatpush1.bf16.msra.mxu0 0
        %2808 = vmatprep.subr.bf16.mxu0 0
        %2809 = vmatpush1.bf16.msra.mxu0 0
        %2810 = vmatprep.subr.bf16.mxu0 0
        %2811 = vmatpush1.bf16.msra.mxu0 0
        %2812 = vmatprep.subr.bf16.mxu0 0
        %2813 = vmatpush1.bf16.msra.mxu0 0
        %2814 = vmatprep.subr.bf16.mxu0 0
        %2815 = vmatpush1.bf16.msra.mxu0 0
        %2816 = vmatprep.subr.bf16.mxu0 0
        %2817 = vmatpush1.bf16.msra.mxu0 0
        %2818 = vmatprep.subr.bf16.mxu0 0
        %2819 = vmatpush1.bf16.msra.mxu0 0
        %2820 = vmatprep.subr.bf16.mxu0 0
        %2821 = vmatpush1.bf16.msra.mxu0 0
        %2822 = vmatprep.subr.bf16.mxu0 0
        %2823 = vmatpush1.bf16.msra.mxu0 0
        %2824 = vmatprep.subr.bf16.mxu0 0
        %2825 = vmatpush1.bf16.msra.mxu0 0
        %2826 = vmatprep.subr.bf16.mxu0 0
        %2827 = vmatpush1.bf16.msra.mxu0 0
        %2828 = vmatprep.subr.bf16.mxu0 0
        %2829 = vmatpush1.bf16.msra.mxu0 0
        %2830 = vmatprep.mubr.bf16.mxu0 0
        %2831 = vmatmul.mubr.bf16.gmra.mrb[0].mxu0 %v2793
        %v2832 = vpop.f32.mrb[0].mxu0
        %v2833 = vadd.f32 0.0, %v2832
        %v2834 = vpop.f32.mrb[0].mxu0
        %v2835 = vpop.f32.mrb[0].mxu0
        %v2836 = vpop.f32.mrb[0].mxu0
        %2837 = vdwg.mxu0
        %v2839 = vsel %vm2049, %v2699, 0
        %v2842 = vsel %vm2421, %v2016, 0
        %2844 = vmatprep.subr.bf16.mxu0 0
        %2845 = vmatpush1.bf16.msra.mxu0 %v2842
        %2846 = vmatprep.subr.bf16.mxu0 0
        %2847 = vmatpush1.bf16.msra.mxu0 0
        %2848 = vmatprep.subr.bf16.mxu0 0
        %2849 = vmatpush1.bf16.msra.mxu0 0
        %2850 = vmatprep.subr.bf16.mxu0 0
        %2851 = vmatpush1.bf16.msra.mxu0 0
        %2852 = vmatprep.subr.bf16.mxu0 0
        %2853 = vmatpush1.bf16.msra.mxu0 0
        %2854 = vmatprep.subr.bf16.mxu0 0
        %2855 = vmatpush1.bf16.msra.mxu0 0
        %2856 = vmatprep.subr.bf16.mxu0 0
        %2857 = vmatpush1.bf16.msra.mxu0 0
        %2858 = vmatprep.subr.bf16.mxu0 0
        %2859 = vmatpush1.bf16.msra.mxu0 0
        %2860 = vmatprep.subr.bf16.mxu0 0
        %2861 = vmatpush1.bf16.msra.mxu0 0
        %2862 = vmatprep.subr.bf16.mxu0 0
        %2863 = vmatpush1.bf16.msra.mxu0 0
        %2864 = vmatprep.subr.bf16.mxu0 0
        %2865 = vmatpush1.bf16.msra.mxu0 0
        %2866 = vmatprep.subr.bf16.mxu0 0
        %2867 = vmatpush1.bf16.msra.mxu0 0
        %2868 = vmatprep.subr.bf16.mxu0 0
        %2869 = vmatpush1.bf16.msra.mxu0 0
        %2870 = vmatprep.subr.bf16.mxu0 0
        %2871 = vmatpush1.bf16.msra.mxu0 0
        %2872 = vmatprep.subr.bf16.mxu0 0
        %2873 = vmatpush1.bf16.msra.mxu0 0
        %2874 = vmatprep.subr.bf16.mxu0 0
        %2875 = vmatpush1.bf16.msra.mxu0 0
        %2876 = vmatprep.mubr.bf16.mxu0 0
        %2877 = vmatmul.mubr.bf16.gmra.mrb[0].mxu0 %v2839
        %v2878 = vpop.f32.mrb[0].mxu0
        %v2879 = vadd.f32 0.0, %v2878
        %v2880 = vpop.f32.mrb[0].mxu0
        %v2881 = vpop.f32.mrb[0].mxu0
        %v2882 = vpop.f32.mrb[0].mxu0
        %2883 = vdwg.mxu0
        %v2884 = vpack.c.bf16 %v2741, %v2741
        %v2885 = vpack.c.bf16 %v2787, %v2787
        %v2886 = vpack.c.bf16 %v2833, %v2833
        %v2887 = vpack.c.bf16 %v2879, %v2879
        %v2888 = vld [vmem:[%s9] sm:$0xf]
        %v2889 = vld [vmem:[%s9 + $0x4] sm:$0xf]
        %v2890 = vld [vmem:[%s9 + $0x8] sm:$0xf]
        %v2891 = vld [vmem:[%s9 + $0xc] sm:$0xf]
        %v2893 = vsel %vm2049, %v2884, 0
        %v2896 = vsel %vm2421, %v2888, 0
        %2898 = vmatprep.subr.bf16.mxu0 0
        %2899 = vmatpush1.bf16.msra.mxu0 %v2896
        %2900 = vmatprep.subr.bf16.mxu0 0
        %2901 = vmatpush1.bf16.msra.mxu0 0
        %2902 = vmatprep.subr.bf16.mxu0 0
        %2903 = vmatpush1.bf16.msra.mxu0 0
        %2904 = vmatprep.subr.bf16.mxu0 0
        %2905 = vmatpush1.bf16.msra.mxu0 0
        %2906 = vmatprep.subr.bf16.mxu0 0
        %2907 = vmatpush1.bf16.msra.mxu0 0
        %2908 = vmatprep.subr.bf16.mxu0 0
        %2909 = vmatpush1.bf16.msra.mxu0 0
        %2910 = vmatprep.subr.bf16.mxu0 0
        %2911 = vmatpush1.bf16.msra.mxu0 0
        %2912 = vmatprep.subr.bf16.mxu0 0
        %2913 = vmatpush1.bf16.msra.mxu0 0
        %2914 = vmatprep.subr.bf16.mxu0 0
        %2915 = vmatpush1.bf16.msra.mxu0 0
        %2916 = vmatprep.subr.bf16.mxu0 0
        %2917 = vmatpush1.bf16.msra.mxu0 0
        %2918 = vmatprep.subr.bf16.mxu0 0
        %2919 = vmatpush1.bf16.msra.mxu0 0
        %2920 = vmatprep.subr.bf16.mxu0 0
        %2921 = vmatpush1.bf16.msra.mxu0 0
        %2922 = vmatprep.subr.bf16.mxu0 0
        %2923 = vmatpush1.bf16.msra.mxu0 0
        %2924 = vmatprep.subr.bf16.mxu0 0
        %2925 = vmatpush1.bf16.msra.mxu0 0
        %2926 = vmatprep.subr.bf16.mxu0 0
        %2927 = vmatpush1.bf16.msra.mxu0 0
        %2928 = vmatprep.subr.bf16.mxu0 0
        %2929 = vmatpush1.bf16.msra.mxu0 0
        %2930 = vmatprep.mubr.bf16.mxu0 0
        %2931 = vmatmul.mubr.bf16.gmra.mrb[0].mxu0 %v2893
        %v2932 = vpop.f32.mrb[0].mxu0
        %v2933 = vadd.f32 0.0, %v2932
        %v2934 = vpop.f32.mrb[0].mxu0
        %v2935 = vpop.f32.mrb[0].mxu0
        %v2936 = vpop.f32.mrb[0].mxu0
        %2937 = vdwg.mxu0
        %v2939 = vsel %vm2049, %v2885, 0
        %v2942 = vsel %vm2421, %v2889, 0
        %2944 = vmatprep.subr.bf16.mxu0 0
        %2945 = vmatpush1.bf16.msra.mxu0 %v2942
        %2946 = vmatprep.subr.bf16.mxu0 0
        %2947 = vmatpush1.bf16.msra.mxu0 0
        %2948 = vmatprep.subr.bf16.mxu0 0
        %2949 = vmatpush1.bf16.msra.mxu0 0
        %2950 = vmatprep.subr.bf16.mxu0 0
        %2951 = vmatpush1.bf16.msra.mxu0 0
        %2952 = vmatprep.subr.bf16.mxu0 0
        %2953 = vmatpush1.bf16.msra.mxu0 0
        %2954 = vmatprep.subr.bf16.mxu0 0
        %2955 = vmatpush1.bf16.msra.mxu0 0
        %2956 = vmatprep.subr.bf16.mxu0 0
        %2957 = vmatpush1.bf16.msra.mxu0 0
        %2958 = vmatprep.subr.bf16.mxu0 0
        %2959 = vmatpush1.bf16.msra.mxu0 0
        %2960 = vmatprep.subr.bf16.mxu0 0
        %2961 = vmatpush1.bf16.msra.mxu0 0
        %2962 = vmatprep.subr.bf16.mxu0 0
        %2963 = vmatpush1.bf16.msra.mxu0 0
        %2964 = vmatprep.subr.bf16.mxu0 0
        %2965 = vmatpush1.bf16.msra.mxu0 0
        %2966 = vmatprep.subr.bf16.mxu0 0
        %2967 = vmatpush1.bf16.msra.mxu0 0
        %2968 = vmatprep.subr.bf16.mxu0 0
        %2969 = vmatpush1.bf16.msra.mxu0 0
        %2970 = vmatprep.subr.bf16.mxu0 0
        %2971 = vmatpush1.bf16.msra.mxu0 0
        %2972 = vmatprep.subr.bf16.mxu0 0
        %2973 = vmatpush1.bf16.msra.mxu0 0
        %2974 = vmatprep.subr.bf16.mxu0 0
        %2975 = vmatpush1.bf16.msra.mxu0 0
        %2976 = vmatprep.mubr.bf16.mxu0 0
        %2977 = vmatmul.mubr.bf16.gmra.mrb[0].mxu0 %v2939
        %v2978 = vpop.f32.mrb[0].mxu0
        %v2979 = vadd.f32 0.0, %v2978
        %v2980 = vpop.f32.mrb[0].mxu0
        %v2981 = vpop.f32.mrb[0].mxu0
        %v2982 = vpop.f32.mrb[0].mxu0
        %2983 = vdwg.mxu0
        %v2985 = vsel %vm2049, %v2886, 0
        %v2988 = vsel %vm2421, %v2890, 0
        %2990 = vmatprep.subr.bf16.mxu0 0
        %2991 = vmatpush1.bf16.msra.mxu0 %v2988
        %2992 = vmatprep.subr.bf16.mxu0 0
        %2993 = vmatpush1.bf16.msra.mxu0 0
        %2994 = vmatprep.subr.bf16.mxu0 0
        %2995 = vmatpush1.bf16.msra.mxu0 0
        %2996 = vmatprep.subr.bf16.mxu0 0
        %2997 = vmatpush1.bf16.msra.mxu0 0
        %2998 = vmatprep.subr.bf16.mxu0 0
        %2999 = vmatpush1.bf16.msra.mxu0 0
        %3000 = vmatprep.subr.bf16.mxu0 0
        %3001 = vmatpush1.bf16.msra.mxu0 0
        %3002 = vmatprep.subr.bf16.mxu0 0
        %3003 = vmatpush1.bf16.msra.mxu0 0
        %3004 = vmatprep.subr.bf16.mxu0 0
        %3005 = vmatpush1.bf16.msra.mxu0 0
        %3006 = vmatprep.subr.bf16.mxu0 0
        %3007 = vmatpush1.bf16.msra.mxu0 0
        %3008 = vmatprep.subr.bf16.mxu0 0
        %3009 = vmatpush1.bf16.msra.mxu0 0
        %3010 = vmatprep.subr.bf16.mxu0 0
        %3011 = vmatpush1.bf16.msra.mxu0 0
        %3012 = vmatprep.subr.bf16.mxu0 0
        %3013 = vmatpush1.bf16.msra.mxu0 0
        %3014 = vmatprep.subr.bf16.mxu0 0
        %3015 = vmatpush1.bf16.msra.mxu0 0
        %3016 = vmatprep.subr.bf16.mxu0 0
        %3017 = vmatpush1.bf16.msra.mxu0 0
        %3018 = vmatprep.subr.bf16.mxu0 0
        %3019 = vmatpush1.bf16.msra.mxu0 0
        %3020 = vmatprep.subr.bf16.mxu0 0
        %3021 = vmatpush1.bf16.msra.mxu0 0
        %3022 = vmatprep.mubr.bf16.mxu0 0
        %3023 = vmatmul.mubr.bf16.gmra.mrb[0].mxu0 %v2985
        %v3024 = vpop.f32.mrb[0].mxu0
        %v3025 = vadd.f32 0.0, %v3024
        %v3026 = vpop.f32.mrb[0].mxu0
        %v3027 = vpop.f32.mrb[0].mxu0
        %v3028 = vpop.f32.mrb[0].mxu0
        %3029 = vdwg.mxu0
        %v3031 = vsel %vm2049, %v2887, 0
        %v3034 = vsel %vm2421, %v2891, 0
        %3036 = vmatprep.subr.bf16.mxu0 0
        %3037 = vmatpush1.bf16.msra.mxu0 %v3034
        %3038 = vmatprep.subr.bf16.mxu0 0
        %3039 = vmatpush1.bf16.msra.mxu0 0
        %3040 = vmatprep.subr.bf16.mxu0 0
        %3041 = vmatpush1.bf16.msra.mxu0 0
        %3042 = vmatprep.subr.bf16.mxu0 0
        %3043 = vmatpush1.bf16.msra.mxu0 0
        %3044 = vmatprep.subr.bf16.mxu0 0
        %3045 = vmatpush1.bf16.msra.mxu0 0
        %3046 = vmatprep.subr.bf16.mxu0 0
        %3047 = vmatpush1.bf16.msra.mxu0 0
        %3048 = vmatprep.subr.bf16.mxu0 0
        %3049 = vmatpush1.bf16.msra.mxu0 0
        %3050 = vmatprep.subr.bf16.mxu0 0
        %3051 = vmatpush1.bf16.msra.mxu0 0
        %3052 = vmatprep.subr.bf16.mxu0 0
        %3053 = vmatpush1.bf16.msra.mxu0 0
        %3054 = vmatprep.subr.bf16.mxu0 0
        %3055 = vmatpush1.bf16.msra.mxu0 0
        %3056 = vmatprep.subr.bf16.mxu0 0
        %3057 = vmatpush1.bf16.msra.mxu0 0
        %3058 = vmatprep.subr.bf16.mxu0 0
        %3059 = vmatpush1.bf16.msra.mxu0 0
        %3060 = vmatprep.subr.bf16.mxu0 0
        %3061 = vmatpush1.bf16.msra.mxu0 0
        %3062 = vmatprep.subr.bf16.mxu0 0
        %3063 = vmatpush1.bf16.msra.mxu0 0
        %3064 = vmatprep.subr.bf16.mxu0 0
        %3065 = vmatpush1.bf16.msra.mxu0 0
        %3066 = vmatprep.subr.bf16.mxu0 0
        %3067 = vmatpush1.bf16.msra.mxu0 0
        %3068 = vmatprep.mubr.bf16.mxu0 0
        %3069 = vmatmul.mubr.bf16.gmra.mrb[0].mxu0 %v3031
        %v3070 = vpop.f32.mrb[0].mxu0
        %v3071 = vadd.f32 0.0, %v3070
        %v3072 = vpop.f32.mrb[0].mxu0
        %v3073 = vpop.f32.mrb[0].mxu0
        %v3074 = vpop.f32.mrb[0].mxu0
        %3075 = vdwg.mxu0
        %v3076 = vsel %vm639, %v2933, 0.0
        %v3077 = vsel %vm639, %v2979, 0.0
        %v3078 = vadd.f32 %v3076, %v3077
        %v3079 = vsel %vm639, %v3025, 0.0
        %v3080 = vadd.f32 %v3078, %v3079
        %v3081 = vsel %vm639, %v3071, 0.0
        %v3082 = vadd.f32 %v3080, %v3081
        %v3083 = vld [vmem:[%s13] sm:$0x1]
        %v3085 = vlaneseq
        %v3086 = vshrl.u32 %v3085, 7
        %v3087 = vsub.s32 0, %v3086
        %v3088 = vrot.slane %v3083, %v3087
        %v3090 = vadd.f32 %v3082, %v3088
        %3091 = vst.msk [vmem:[%s580] sm:$0xff] %vm639, %v3090
        %v3092 = vsel %vm2049, %v2692, 0.0
        %v3093 = vsel %vm2049, %v2693, 0.0
        %v3094 = vadd.f32 %v3092, %v3093
        %v3095 = vsel %vm2049, %v2694, 0.0
        %v3096 = vadd.f32 %v3094, %v3095
        %v3097 = vsel %vm2049, %v2695, 0.0
        %v3098 = vadd.f32 %v3096, %v3097
        %v3099 = vrcp.pop 4.0
        %v3100 = vmul.f32 %v3098, %v3099
        %3101 = vst.msk [vmem:[%s587] sm:$0xff] %vm2049, %v3100
        %s3102 = sand.u32 %s399, 1
        %s3103 = scalar_lea.sflag [#allocation3], %s3102
        %s3104 = sand.u32 %s399, 1
        %s3105 = smul.addr %s3104, 8
        %s3106 = scalar_lea.vmem [#allocation2], %s3105
        %s3107 = sand.u32 %s425, 1
        %s3108 = scalar_lea.sflag [#allocation5], %s3107
        %s3109 = sand.u32 %s425, 1
        %s3110 = smul.addr %s3109, 8
        %s3111 = scalar_lea.vmem [#allocation4], %s3110
        // Predicated region
        $region85: #{tpu_custom_call.1} parent=83 // pred_check
          %p3112 = pneg %p409
        $region86: #{tpu_custom_call.1} parent=83 // pred_check_branch
          %3114 = sbr.rel (%p3112) target = $region88
        $region87: #{tpu_custom_call.1} parent=83 // pred_region
          %s3116 = ssub.s32 128, 128
          %3117 = vsyncadd %s3103, %s3116
          %s3118 = smul.addr %s35, 128
          %s3119 = scalar_lea.hbm %s16, %s3118
          %s3121 = sshll.u32 %s3106, 4
          %s3122 = int_to_ptr.vmem [resolvable:$true] %s3121
          %3124 = dma.vmem_to_hbm [thread:$0]  %s3122, 128, %s3119, %s3103
        $region88: #{tpu_custom_call.1} parent=83 // pred_fallthru
          _
        // Predicated region
        $region89: #{tpu_custom_call.1} parent=83 // pred_check
          %p3125 = pneg %p435
        $region90: #{tpu_custom_call.1} parent=83 // pred_check_branch
          %3127 = sbr.rel (%p3125) target = $region92
        $region91: #{tpu_custom_call.1} parent=83 // pred_region
          %s3129 = ssub.s32 128, 128
          %3130 = vsyncadd %s3108, %s3129
          %s3131 = smul.addr %s35, 128
          %s3132 = scalar_lea.hbm %s17, %s3131
          %s3134 = sshll.u32 %s3111, 4
          %s3135 = int_to_ptr.vmem [resolvable:$true] %s3134
          %3137 = dma.vmem_to_hbm [thread:$0]  %s3135, 128, %s3132, %s3108
        $region92: #{tpu_custom_call.1} parent=83 // pred_fallthru
          _
      $region84: #{tpu_custom_call.1} parent=5 // pred_fallthru
        _
      %p3138 = scmp.le.s32.totalorder 2, %s30
      // Predicated region
      $region93: #{tpu_custom_call.1} parent=5 // pred_check
        %p3139 = pneg %p3138
      $region94: #{tpu_custom_call.1} parent=5 // pred_check_branch
        %3141 = sbr.rel (%p3139) target = $region96
      $region95: #{tpu_custom_call.1} parent=5 // pred_region
        %s3142 = ssub.s32 %s30, 2
        // Predicated region
        $region97: #{tpu_custom_call.1} parent=95 // pred_check
          %p3143 = pneg %p415
        $region98: #{tpu_custom_call.1} parent=95 // pred_check_branch
          %3145 = sbr.rel (%p3143) target = $region100
        $region99: #{tpu_custom_call.1} parent=95 // pred_region
          %s3146 = sand.u32 %s400, 1
          %s3147 = scalar_lea.sflag [#allocation3], %s3146
          %s3148 = sand.u32 %s400, 1
          %s3149 = smul.addr %s3148, 8
          %s3150 = scalar_lea.vmem [#allocation2], %s3149
          %3151 = dma.done %s3147, 128
        $region100: #{tpu_custom_call.1} parent=95 // pred_fallthru
          _
        // Predicated region
        $region101: #{tpu_custom_call.1} parent=95 // pred_check
          %p3152 = pneg %p441
        $region102: #{tpu_custom_call.1} parent=95 // pred_check_branch
          %3154 = sbr.rel (%p3152) target = $region104
        $region103: #{tpu_custom_call.1} parent=95 // pred_region
          %s3155 = sand.u32 %s426, 1
          %s3156 = scalar_lea.sflag [#allocation5], %s3155
          %s3157 = sand.u32 %s426, 1
          %s3158 = smul.addr %s3157, 8
          %s3159 = scalar_lea.vmem [#allocation4], %s3158
          %3160 = dma.done %s3156, 128
        $region104: #{tpu_custom_call.1} parent=95 // pred_fallthru
          _
      $region96: #{tpu_custom_call.1} parent=5 // pred_fallthru
        _
    $region6: #{tpu_custom_call.1} parent=1 // loop_footer
      %s34 = sadd.s32 1, %s30
    $region7: #{tpu_custom_call.1} parent=1 // loop_footer_branch
      %29 = sbr.rel target = $region3
    $region8: #{tpu_custom_call.1} parent=1 // loop_exit
      _
    %3161 = vsyncpa [#allocation3], 1
    %s3162 = scalar_lea.sflag [#allocation3], 1
    %3163 = vsyncpa %s3162, 1
    %3164 = vsyncpa [#allocation5], 1
    %s3165 = scalar_lea.sflag [#allocation5], 1
    %3166 = vsyncpa %s3165, 1

</llo_original>
